<compile_context>
chip_gen: v6e
topology: v6e:2x2x1
jax: 0.10.0
libtpu: 0.0.40
codegen_flags: <defaults>
</compile_context>

<pallas_src>
import functools
import math

import jax
import jax.numpy as jnp
from jax.experimental import pallas as pl
from jax.experimental.pallas import tpu as pltpu


# ----------------------------------------------------------------------------
# Fused encoder kernel: one grid step == one batch element, weights resident.
# ----------------------------------------------------------------------------
def _encoder_kernel(x_ref, mb_ref, eg_ref, eb_ref,
                    wqkv_ref, bqkv_ref, wo_ref, bo_ref,
                    ln1g_ref, ln1b_ref, w1_ref, b1_ref, w2_ref, b2_ref,
                    ln2g_ref, ln2b_ref, pw_ref, pb_ref,
                    o_ref, *, num_layers, num_heads, eps):
    S, H = x_ref.shape                       # [seq, hidden] for this batch
    dh = H // num_heads
    scale = 1.0 / math.sqrt(dh)

    def layer_norm(y, g, b):
        mean = jnp.mean(y, axis=-1, keepdims=True)
        var = jnp.mean((y - mean) ** 2, axis=-1, keepdims=True)
        return (y - mean) * jax.lax.rsqrt(var + eps) * g + b

    x = x_ref[...].astype(jnp.float32)                     # [S, H]
    x = layer_norm(x, eg_ref[...], eb_ref[...])            # embedding LN
    mask_bias = mb_ref[0].astype(jnp.float32)              # [S, S] additive key mask

    for l in range(num_layers):
        # ---- fused QKV projection: single [H, 3H] matmul ----
        qkv = (jnp.dot(x, wqkv_ref[l], preferred_element_type=jnp.float32)
               + bqkv_ref[l])                              # [S, 3H]
        wo_l = wo_ref[l]                                   # [H, H]

        # ---- per-head attention, concat-free head merge ----
        attn_out = jnp.zeros((S, H), jnp.float32)
        for h in range(num_heads):
            qh = qkv[:, h * dh:(h + 1) * dh]               # [S, dh]
            kh = qkv[:, H + h * dh:H + (h + 1) * dh]
            vh = qkv[:, 2 * H + h * dh:2 * H + (h + 1) * dh]
            s = jax.lax.dot_general(
                qh, kh, (((1,), (1,)), ((), ())),
                preferred_element_type=jnp.float32) * scale + mask_bias
            m = jnp.max(s, axis=-1, keepdims=True)
            p = jnp.exp(s - m)
            p = p / jnp.sum(p, axis=-1, keepdims=True)     # exact softmax
            ctx_h = jnp.dot(p, vh, preferred_element_type=jnp.float32)
            # decomposed output projection: sum over heads of ctx_h @ Wo[h]
            attn_out = attn_out + jnp.dot(
                ctx_h, wo_l[h * dh:(h + 1) * dh, :],
                preferred_element_type=jnp.float32)
        attn_out = attn_out + bo_ref[l]

        # ---- residual + LN fused in-kernel ----
        x = layer_norm(x + attn_out, ln1g_ref[l], ln1b_ref[l])

        # ---- FFN ----
        ffn = (jnp.dot(x, w1_ref[l], preferred_element_type=jnp.float32)
               + b1_ref[l])
        # TODO(synk): HF BERT uses exact (erf) GELU; tanh approximation kept
        # here because it lowers cleanly on Mosaic.
        ffn = jax.nn.gelu(ffn, approximate=True)
        ffn = (jnp.dot(ffn, w2_ref[l], preferred_element_type=jnp.float32)
               + b2_ref[l])
        x = layer_norm(x + ffn, ln2g_ref[l], ln2b_ref[l])

    # ---- CLS pooling + final projection (fused, no extra pallas_call) ----
    cls = x[0:1, :]                                        # [1, H]
    out = (jnp.dot(cls, pw_ref[...], preferred_element_type=jnp.float32)
           + pb_ref[...])                                  # [1, H]
    o_ref[0] = out.astype(o_ref.dtype)


# ----------------------------------------------------------------------------
# Synthetic BERT-style parameters
# ----------------------------------------------------------------------------
def init_params(key, *, vocab=100, max_pos=64, type_vocab=2,
                hidden=32, num_heads=4, intermediate=64, num_layers=2):
    keys = iter(jax.random.split(key, 8 + num_layers * 16))

    def nrm(shape):
        return (0.02 * jax.random.normal(next(keys), shape)).astype(jnp.float32)

    p = {
        "word_emb": nrm((vocab, hidden)),
        "pos_emb": nrm((max_pos, hidden)),
        "type_emb": nrm((type_vocab, hidden)),
        "emb_ln_g": jnp.ones((hidden,), jnp.float32),
        "emb_ln_b": jnp.zeros((hidden,), jnp.float32),
        "layers": [],
        "proj_w": nrm((hidden, hidden)),
        "proj_b": jnp.zeros((hidden,), jnp.float32),
    }
    for _ in range(num_layers):
        layer = {
            "wq": nrm((hidden, hidden)), "bq": jnp.zeros((hidden,), jnp.float32),
            "wk": nrm((hidden, hidden)), "bk": jnp.zeros((hidden,), jnp.float32),
            "wv": nrm((hidden, hidden)), "bv": jnp.zeros((hidden,), jnp.float32),
            "wo": nrm((hidden, hidden)), "bo": jnp.zeros((hidden,), jnp.float32),
            "ln1_g": jnp.ones((hidden,), jnp.float32),
            "ln1_b": jnp.zeros((hidden,), jnp.float32),
            "w1": nrm((hidden, intermediate)),
            "b1": jnp.zeros((intermediate,), jnp.float32),
            "w2": nrm((intermediate, hidden)),
            "b2": jnp.zeros((hidden,), jnp.float32),
            "ln2_g": jnp.ones((hidden,), jnp.float32),
            "ln2_b": jnp.zeros((hidden,), jnp.float32),
        }
        p["layers"].append(layer)
    return p


# ----------------------------------------------------------------------------
# Forward pass wrapper (embedding gathers stay in JAX; everything else fused)
# ----------------------------------------------------------------------------
def problem_description_encoder(params, input_ids, attention_mask,
                                *, num_heads=4):
    B, S = input_ids.shape
    H = params["word_emb"].shape[1]
    L = len(params["layers"])

    # ---- embeddings (gather/add = glue ops) ----
    x_emb = (params["word_emb"][input_ids]
             + params["pos_emb"][:S][None, :, :]
             + params["type_emb"][0][None, None, :]
             ).reshape(B * S, H).astype(jnp.float32)            # [B*S, H]

    # ---- additive key-padding mask bias, precomputed once ----
    key_bias = (1.0 - attention_mask.astype(jnp.float32)) * -10000.0   # [B, S]
    mask_bias = jnp.broadcast_to(key_bias[:, None, :], (B, S, S))      # [B, S, S]

    # ---- stack per-layer weights so the kernel has a fixed arg list ----
    layers = params["layers"]
    wqkv = jnp.stack([jnp.concatenate([lp["wq"], lp["wk"], lp["wv"]], axis=1)
                      for lp in layers])                               # [L, H, 3H]
    bqkv = jnp.stack([jnp.concatenate([lp["bq"], lp["bk"], lp["bv"]])[None, :]
                      for lp in layers])                               # [L, 1, 3H]
    wo = jnp.stack([lp["wo"] for lp in layers])                        # [L, H, H]
    bo = jnp.stack([lp["bo"][None, :] for lp in layers])               # [L, 1, H]
    ln1g = jnp.stack([lp["ln1_g"][None, :] for lp in layers])
    ln1b = jnp.stack([lp["ln1_b"][None, :] for lp in layers])
    w1 = jnp.stack([lp["w1"] for lp in layers])                        # [L, H, I]
    b1 = jnp.stack([lp["b1"][None, :] for lp in layers])               # [L, 1, I]
    w2 = jnp.stack([lp["w2"] for lp in layers])                        # [L, I, H]
    b2 = jnp.stack([lp["b2"][None, :] for lp in layers])               # [L, 1, H]
    ln2g = jnp.stack([lp["ln2_g"][None, :] for lp in layers])
    ln2b = jnp.stack([lp["ln2_b"][None, :] for lp in layers])

    eg = params["emb_ln_g"][None, :]
    eb = params["emb_ln_b"][None, :]
    pw = params["proj_w"]
    pb = params["proj_b"][None, :]

    inputs = (x_emb, mask_bias, eg, eb, wqkv, bqkv, wo, bo,
              ln1g, ln1b, w1, b1, w2, b2, ln2g, ln2b, pw, pb)

    def _const_spec(a):
        # whole-array block, resident across all grid steps (constant index map)
        return pl.BlockSpec(a.shape, lambda b, _n=a.ndim: (0,) * _n)

    in_specs = [
        pl.BlockSpec((S, H), lambda b: (b, 0)),        # x_emb: one batch slab
        pl.BlockSpec((1, S, S), lambda b: (b, 0, 0)),  # mask bias for this batch
    ] + [_const_spec(a) for a in inputs[2:]]

    kern = functools.partial(_encoder_kernel, num_layers=L,
                             num_heads=num_heads, eps=1e-12)

    out = pl.pallas_call(
        kern,
        out_shape=jax.ShapeDtypeStruct((B, 1, H), jnp.float32),
        grid=(B,),
        in_specs=in_specs,
        out_specs=pl.BlockSpec((1, 1, H), lambda b: (b, 0, 0)),
        compiler_params=pltpu.CompilerParams(
            dimension_semantics=("parallel",)),
    )(*inputs)

    return out.reshape(B, H)


# ----------------------------------------------------------------------------
if __name__ == "__main__":
    B, S = 2, 8
    HIDDEN, NUM_HEADS, INTERMEDIATE, LAYERS = 32, 4, 64, 2
    VOCAB = 100

    key = jax.random.PRNGKey(0)
    k_param, k_ids = jax.random.split(key)

    params = init_params(k_param, vocab=VOCAB, hidden=HIDDEN,
                         num_heads=NUM_HEADS, intermediate=INTERMEDIATE,
                         num_layers=LAYERS)

    input_ids = jax.random.randint(k_ids, (B, S), 0, VOCAB, dtype=jnp.int32)
    attention_mask = jnp.ones((B, S), jnp.int32).at[1, 5:].set(0)  # padded tail

    out = problem_description_encoder(params, input_ids, attention_mask,
                                      num_heads=NUM_HEADS)
    out = jax.block_until_ready(out)
    assert out.shape == (B, HIDDEN)

    print("KERNEL_OK")
</pallas_src>

<mosaic_0001>
module attributes {stable_mosaic.version = 11 : i64} {
  func.func @_encoder_kernel(%arg0: i32, %arg1: memref<8x32xf32, #tpu.memory_space<vmem>>, %arg2: memref<1x8x8xf32, #tpu.memory_space<vmem>>, %arg3: memref<1x32xf32, #tpu.memory_space<vmem>>, %arg4: memref<1x32xf32, #tpu.memory_space<vmem>>, %arg5: memref<2x32x96xf32, #tpu.memory_space<vmem>>, %arg6: memref<2x1x96xf32, #tpu.memory_space<vmem>>, %arg7: memref<2x32x32xf32, #tpu.memory_space<vmem>>, %arg8: memref<2x1x32xf32, #tpu.memory_space<vmem>>, %arg9: memref<2x1x32xf32, #tpu.memory_space<vmem>>, %arg10: memref<2x1x32xf32, #tpu.memory_space<vmem>>, %arg11: memref<2x32x64xf32, #tpu.memory_space<vmem>>, %arg12: memref<2x1x64xf32, #tpu.memory_space<vmem>>, %arg13: memref<2x64x32xf32, #tpu.memory_space<vmem>>, %arg14: memref<2x1x32xf32, #tpu.memory_space<vmem>>, %arg15: memref<2x1x32xf32, #tpu.memory_space<vmem>>, %arg16: memref<2x1x32xf32, #tpu.memory_space<vmem>>, %arg17: memref<32x32xf32, #tpu.memory_space<vmem>>, %arg18: memref<1x32xf32, #tpu.memory_space<vmem>>, %arg19: memref<1x1x32xf32, #tpu.memory_space<vmem>>) attributes {dimension_semantics = [#tpu.dimension_semantics<parallel>], iteration_bounds = array<i64: 2>, scalar_prefetch = 0 : i64, scratch_operands = 0 : i64, tpu.core_type = #tpu.core_type<tc>, window_params = [{transform_indices = @transform_0, window_bounds = array<i64: 8, 32>}, {transform_indices = @transform_1, window_bounds = array<i64: 1, 8, 8>}, {pipeline_mode = #tpu.pipeline_mode<synchronous>, transform_indices = @transform_2, window_bounds = array<i64: 1, 32>}, {pipeline_mode = #tpu.pipeline_mode<synchronous>, transform_indices = @transform_3, window_bounds = array<i64: 1, 32>}, {pipeline_mode = #tpu.pipeline_mode<synchronous>, transform_indices = @transform_4, window_bounds = array<i64: 2, 32, 96>}, {pipeline_mode = #tpu.pipeline_mode<synchronous>, transform_indices = @transform_5, window_bounds = array<i64: 2, 1, 96>}, {pipeline_mode = #tpu.pipeline_mode<synchronous>, transform_indices = @transform_6, window_bounds = array<i64: 2, 32, 32>}, {pipeline_mode = #tpu.pipeline_mode<synchronous>, transform_indices = @transform_7, window_bounds = array<i64: 2, 1, 32>}, {pipeline_mode = #tpu.pipeline_mode<synchronous>, transform_indices = @transform_8, window_bounds = array<i64: 2, 1, 32>}, {pipeline_mode = #tpu.pipeline_mode<synchronous>, transform_indices = @transform_9, window_bounds = array<i64: 2, 1, 32>}, {pipeline_mode = #tpu.pipeline_mode<synchronous>, transform_indices = @transform_10, window_bounds = array<i64: 2, 32, 64>}, {pipeline_mode = #tpu.pipeline_mode<synchronous>, transform_indices = @transform_11, window_bounds = array<i64: 2, 1, 64>}, {pipeline_mode = #tpu.pipeline_mode<synchronous>, transform_indices = @transform_12, window_bounds = array<i64: 2, 64, 32>}, {pipeline_mode = #tpu.pipeline_mode<synchronous>, transform_indices = @transform_13, window_bounds = array<i64: 2, 1, 32>}, {pipeline_mode = #tpu.pipeline_mode<synchronous>, transform_indices = @transform_14, window_bounds = array<i64: 2, 1, 32>}, {pipeline_mode = #tpu.pipeline_mode<synchronous>, transform_indices = @transform_15, window_bounds = array<i64: 2, 1, 32>}, {pipeline_mode = #tpu.pipeline_mode<synchronous>, transform_indices = @transform_16, window_bounds = array<i64: 32, 32>}, {pipeline_mode = #tpu.pipeline_mode<synchronous>, transform_indices = @transform_17, window_bounds = array<i64: 1, 32>}, {transform_indices = @transform_18, window_bounds = array<i64: 1, 1, 32>}]} {
    %c0 = arith.constant 0 : index
    %c0_0 = arith.constant 0 : index
    %0 = vector.load %arg1[%c0, %c0_0] : memref<8x32xf32, #tpu.memory_space<vmem>>, vector<8x32xf32>
    %c0_1 = arith.constant 0 : index
    %c0_2 = arith.constant 0 : index
    %1 = vector.load %arg3[%c0_1, %c0_2] : memref<1x32xf32, #tpu.memory_space<vmem>>, vector<1x32xf32>
    %c0_3 = arith.constant 0 : index
    %c0_4 = arith.constant 0 : index
    %2 = vector.load %arg4[%c0_3, %c0_4] : memref<1x32xf32, #tpu.memory_space<vmem>>, vector<1x32xf32>
    %cst = arith.constant dense<0.000000e+00> : vector<8xf32>
    %3 = vector.multi_reduction <add>, %0, %cst [1] : vector<8x32xf32> to vector<8xf32>
    %4 = vector.shape_cast %3 : vector<8xf32> to vector<8x1xf32>
    %cst_5 = arith.constant 3.200000e+01 : f32
    %5 = vector.broadcast %cst_5 : f32 to vector<8x1xf32>
    %6 = arith.divf %4, %5 : vector<8x1xf32>
    %7 = vector.broadcast %6 : vector<8x1xf32> to vector<8x32xf32>
    %8 = arith.subf %0, %7 : vector<8x32xf32>
    %9 = arith.mulf %8, %8 : vector<8x32xf32>
    %cst_6 = arith.constant dense<0.000000e+00> : vector<8xf32>
    %10 = vector.multi_reduction <add>, %9, %cst_6 [1] : vector<8x32xf32> to vector<8xf32>
    %11 = vector.shape_cast %10 : vector<8xf32> to vector<8x1xf32>
    %cst_7 = arith.constant 3.200000e+01 : f32
    %12 = vector.broadcast %cst_7 : f32 to vector<8x1xf32>
    %13 = arith.divf %11, %12 : vector<8x1xf32>
    %14 = vector.broadcast %6 : vector<8x1xf32> to vector<8x32xf32>
    %15 = arith.subf %0, %14 : vector<8x32xf32>
    %cst_8 = arith.constant 9.99999996E-13 : f32
    %16 = vector.broadcast %cst_8 : f32 to vector<8x1xf32>
    %17 = arith.addf %13, %16 : vector<8x1xf32>
    %18 = math.rsqrt %17 : vector<8x1xf32>
    %19 = vector.broadcast %18 : vector<8x1xf32> to vector<8x32xf32>
    %20 = arith.mulf %15, %19 : vector<8x32xf32>
    %21 = vector.broadcast %1 : vector<1x32xf32> to vector<8x32xf32>
    %22 = arith.mulf %20, %21 : vector<8x32xf32>
    %23 = vector.broadcast %2 : vector<1x32xf32> to vector<8x32xf32>
    %24 = arith.addf %22, %23 : vector<8x32xf32>
    %c0_9 = arith.constant 0 : index
    %c0_10 = arith.constant 0 : index
    %c0_11 = arith.constant 0 : index
    %25 = vector.load %arg2[%c0_9, %c0_10, %c0_11] : memref<1x8x8xf32, #tpu.memory_space<vmem>>, vector<1x8x8xf32>
    %26 = vector.shape_cast %25 : vector<1x8x8xf32> to vector<8x8xf32>
    %c0_12 = arith.constant 0 : index
    %c0_13 = arith.constant 0 : index
    %c0_14 = arith.constant 0 : index
    %27 = vector.load %arg5[%c0_12, %c0_13, %c0_14] : memref<2x32x96xf32, #tpu.memory_space<vmem>>, vector<1x32x96xf32>
    %28 = vector.shape_cast %27 : vector<1x32x96xf32> to vector<32x96xf32>
    %cst_15 = arith.constant dense<0.000000e+00> : vector<8x96xf32>
    %29 = tpu.matmul %24, %28, %cst_15 {dimension_numbers = #tpu.dot_dimension_numbers<[1], [0], [0], [1], [0, 0, 1, 1], [], []>} : vector<8x32xf32>, vector<32x96xf32>, vector<8x96xf32> -> vector<8x96xf32>
    %c0_16 = arith.constant 0 : index
    %c0_17 = arith.constant 0 : index
    %c0_18 = arith.constant 0 : index
    %30 = vector.load %arg6[%c0_16, %c0_17, %c0_18] : memref<2x1x96xf32, #tpu.memory_space<vmem>>, vector<1x1x96xf32>
    %31 = vector.shape_cast %30 : vector<1x1x96xf32> to vector<1x96xf32>
    %32 = vector.broadcast %31 : vector<1x96xf32> to vector<8x96xf32>
    %33 = arith.addf %29, %32 : vector<8x96xf32>
    %c0_19 = arith.constant 0 : index
    %c0_20 = arith.constant 0 : index
    %c0_21 = arith.constant 0 : index
    %34 = vector.load %arg7[%c0_19, %c0_20, %c0_21] : memref<2x32x32xf32, #tpu.memory_space<vmem>>, vector<1x32x32xf32>
    %35 = vector.shape_cast %34 : vector<1x32x32xf32> to vector<32x32xf32>
    %cst_22 = arith.constant 0.000000e+00 : f32
    %36 = vector.broadcast %cst_22 : f32 to vector<8x32xf32>
    %37 = vector.extract_strided_slice %33 {offsets = [0, 0], sizes = [8, 8], strides = [1, 1]} : vector<8x96xf32> to vector<8x8xf32>
    %38 = vector.extract_strided_slice %33 {offsets = [0, 32], sizes = [8, 8], strides = [1, 1]} : vector<8x96xf32> to vector<8x8xf32>
    %39 = vector.extract_strided_slice %33 {offsets = [0, 64], sizes = [8, 8], strides = [1, 1]} : vector<8x96xf32> to vector<8x8xf32>
    %cst_23 = arith.constant dense<0.000000e+00> : vector<8x8xf32>
    %40 = tpu.matmul %37, %38, %cst_23 {dimension_numbers = #tpu.dot_dimension_numbers<[1], [1], [0], [0], [0, 0, 1, 0], [], []>} : vector<8x8xf32>, vector<8x8xf32>, vector<8x8xf32> -> vector<8x8xf32>
    %cst_24 = arith.constant 0.353553385 : f32
    %41 = vector.broadcast %cst_24 : f32 to vector<8x8xf32>
    %42 = arith.mulf %40, %41 : vector<8x8xf32>
    %43 = arith.addf %42, %26 : vector<8x8xf32>
    %cst_25 = arith.constant dense<0xFF800000> : vector<8xf32>
    %44 = vector.multi_reduction <maximumf>, %43, %cst_25 [1] : vector<8x8xf32> to vector<8xf32>
    %45 = vector.shape_cast %44 : vector<8xf32> to vector<8x1xf32>
    %46 = vector.broadcast %45 : vector<8x1xf32> to vector<8x8xf32>
    %47 = arith.subf %43, %46 : vector<8x8xf32>
    %48 = math.exp %47 : vector<8x8xf32>
    %cst_26 = arith.constant dense<0.000000e+00> : vector<8xf32>
    %49 = vector.multi_reduction <add>, %48, %cst_26 [1] : vector<8x8xf32> to vector<8xf32>
    %50 = vector.shape_cast %49 : vector<8xf32> to vector<8x1xf32>
    %51 = vector.broadcast %50 : vector<8x1xf32> to vector<8x8xf32>
    %52 = arith.divf %48, %51 : vector<8x8xf32>
    %cst_27 = arith.constant dense<0.000000e+00> : vector<8x8xf32>
    %53 = tpu.matmul %52, %39, %cst_27 {dimension_numbers = #tpu.dot_dimension_numbers<[1], [0], [0], [1], [0, 0, 1, 1], [], []>} : vector<8x8xf32>, vector<8x8xf32>, vector<8x8xf32> -> vector<8x8xf32>
    %54 = vector.extract_strided_slice %35 {offsets = [0, 0], sizes = [8, 32], strides = [1, 1]} : vector<32x32xf32> to vector<8x32xf32>
    %cst_28 = arith.constant dense<0.000000e+00> : vector<8x32xf32>
    %55 = tpu.matmul %53, %54, %cst_28 {dimension_numbers = #tpu.dot_dimension_numbers<[1], [0], [0], [1], [0, 0, 1, 1], [], []>} : vector<8x8xf32>, vector<8x32xf32>, vector<8x32xf32> -> vector<8x32xf32>
    %56 = arith.addf %36, %55 : vector<8x32xf32>
    %57 = vector.extract_strided_slice %33 {offsets = [0, 8], sizes = [8, 8], strides = [1, 1]} : vector<8x96xf32> to vector<8x8xf32>
    %58 = vector.extract_strided_slice %33 {offsets = [0, 40], sizes = [8, 8], strides = [1, 1]} : vector<8x96xf32> to vector<8x8xf32>
    %59 = vector.extract_strided_slice %33 {offsets = [0, 72], sizes = [8, 8], strides = [1, 1]} : vector<8x96xf32> to vector<8x8xf32>
    %cst_29 = arith.constant dense<0.000000e+00> : vector<8x8xf32>
    %60 = tpu.matmul %57, %58, %cst_29 {dimension_numbers = #tpu.dot_dimension_numbers<[1], [1], [0], [0], [0, 0, 1, 0], [], []>} : vector<8x8xf32>, vector<8x8xf32>, vector<8x8xf32> -> vector<8x8xf32>
    %cst_30 = arith.constant 0.353553385 : f32
    %61 = vector.broadcast %cst_30 : f32 to vector<8x8xf32>
    %62 = arith.mulf %60, %61 : vector<8x8xf32>
    %63 = arith.addf %62, %26 : vector<8x8xf32>
    %cst_31 = arith.constant dense<0xFF800000> : vector<8xf32>
    %64 = vector.multi_reduction <maximumf>, %63, %cst_31 [1] : vector<8x8xf32> to vector<8xf32>
    %65 = vector.shape_cast %64 : vector<8xf32> to vector<8x1xf32>
    %66 = vector.broadcast %65 : vector<8x1xf32> to vector<8x8xf32>
    %67 = arith.subf %63, %66 : vector<8x8xf32>
    %68 = math.exp %67 : vector<8x8xf32>
    %cst_32 = arith.constant dense<0.000000e+00> : vector<8xf32>
    %69 = vector.multi_reduction <add>, %68, %cst_32 [1] : vector<8x8xf32> to vector<8xf32>
    %70 = vector.shape_cast %69 : vector<8xf32> to vector<8x1xf32>
    %71 = vector.broadcast %70 : vector<8x1xf32> to vector<8x8xf32>
    %72 = arith.divf %68, %71 : vector<8x8xf32>
    %cst_33 = arith.constant dense<0.000000e+00> : vector<8x8xf32>
    %73 = tpu.matmul %72, %59, %cst_33 {dimension_numbers = #tpu.dot_dimension_numbers<[1], [0], [0], [1], [0, 0, 1, 1], [], []>} : vector<8x8xf32>, vector<8x8xf32>, vector<8x8xf32> -> vector<8x8xf32>
    %74 = vector.extract_strided_slice %35 {offsets = [8, 0], sizes = [8, 32], strides = [1, 1]} : vector<32x32xf32> to vector<8x32xf32>
    %cst_34 = arith.constant dense<0.000000e+00> : vector<8x32xf32>
    %75 = tpu.matmul %73, %74, %cst_34 {dimension_numbers = #tpu.dot_dimension_numbers<[1], [0], [0], [1], [0, 0, 1, 1], [], []>} : vector<8x8xf32>, vector<8x32xf32>, vector<8x32xf32> -> vector<8x32xf32>
    %76 = arith.addf %56, %75 : vector<8x32xf32>
    %77 = vector.extract_strided_slice %33 {offsets = [0, 16], sizes = [8, 8], strides = [1, 1]} : vector<8x96xf32> to vector<8x8xf32>
    %78 = vector.extract_strided_slice %33 {offsets = [0, 48], sizes = [8, 8], strides = [1, 1]} : vector<8x96xf32> to vector<8x8xf32>
    %79 = vector.extract_strided_slice %33 {offsets = [0, 80], sizes = [8, 8], strides = [1, 1]} : vector<8x96xf32> to vector<8x8xf32>
    %cst_35 = arith.constant dense<0.000000e+00> : vector<8x8xf32>
    %80 = tpu.matmul %77, %78, %cst_35 {dimension_numbers = #tpu.dot_dimension_numbers<[1], [1], [0], [0], [0, 0, 1, 0], [], []>} : vector<8x8xf32>, vector<8x8xf32>, vector<8x8xf32> -> vector<8x8xf32>
    %cst_36 = arith.constant 0.353553385 : f32
    %81 = vector.broadcast %cst_36 : f32 to vector<8x8xf32>
    %82 = arith.mulf %80, %81 : vector<8x8xf32>
    %83 = arith.addf %82, %26 : vector<8x8xf32>
    %cst_37 = arith.constant dense<0xFF800000> : vector<8xf32>
    %84 = vector.multi_reduction <maximumf>, %83, %cst_37 [1] : vector<8x8xf32> to vector<8xf32>
    %85 = vector.shape_cast %84 : vector<8xf32> to vector<8x1xf32>
    %86 = vector.broadcast %85 : vector<8x1xf32> to vector<8x8xf32>
    %87 = arith.subf %83, %86 : vector<8x8xf32>
    %88 = math.exp %87 : vector<8x8xf32>
    %cst_38 = arith.constant dense<0.000000e+00> : vector<8xf32>
    %89 = vector.multi_reduction <add>, %88, %cst_38 [1] : vector<8x8xf32> to vector<8xf32>
    %90 = vector.shape_cast %89 : vector<8xf32> to vector<8x1xf32>
    %91 = vector.broadcast %90 : vector<8x1xf32> to vector<8x8xf32>
    %92 = arith.divf %88, %91 : vector<8x8xf32>
    %cst_39 = arith.constant dense<0.000000e+00> : vector<8x8xf32>
    %93 = tpu.matmul %92, %79, %cst_39 {dimension_numbers = #tpu.dot_dimension_numbers<[1], [0], [0], [1], [0, 0, 1, 1], [], []>} : vector<8x8xf32>, vector<8x8xf32>, vector<8x8xf32> -> vector<8x8xf32>
    %94 = vector.extract_strided_slice %35 {offsets = [16, 0], sizes = [8, 32], strides = [1, 1]} : vector<32x32xf32> to vector<8x32xf32>
    %cst_40 = arith.constant dense<0.000000e+00> : vector<8x32xf32>
    %95 = tpu.matmul %93, %94, %cst_40 {dimension_numbers = #tpu.dot_dimension_numbers<[1], [0], [0], [1], [0, 0, 1, 1], [], []>} : vector<8x8xf32>, vector<8x32xf32>, vector<8x32xf32> -> vector<8x32xf32>
    %96 = arith.addf %76, %95 : vector<8x32xf32>
    %97 = vector.extract_strided_slice %33 {offsets = [0, 24], sizes = [8, 8], strides = [1, 1]} : vector<8x96xf32> to vector<8x8xf32>
    %98 = vector.extract_strided_slice %33 {offsets = [0, 56], sizes = [8, 8], strides = [1, 1]} : vector<8x96xf32> to vector<8x8xf32>
    %99 = vector.extract_strided_slice %33 {offsets = [0, 88], sizes = [8, 8], strides = [1, 1]} : vector<8x96xf32> to vector<8x8xf32>
    %cst_41 = arith.constant dense<0.000000e+00> : vector<8x8xf32>
    %100 = tpu.matmul %97, %98, %cst_41 {dimension_numbers = #tpu.dot_dimension_numbers<[1], [1], [0], [0], [0, 0, 1, 0], [], []>} : vector<8x8xf32>, vector<8x8xf32>, vector<8x8xf32> -> vector<8x8xf32>
    %cst_42 = arith.constant 0.353553385 : f32
    %101 = vector.broadcast %cst_42 : f32 to vector<8x8xf32>
    %102 = arith.mulf %100, %101 : vector<8x8xf32>
    %103 = arith.addf %102, %26 : vector<8x8xf32>
    %cst_43 = arith.constant dense<0xFF800000> : vector<8xf32>
    %104 = vector.multi_reduction <maximumf>, %103, %cst_43 [1] : vector<8x8xf32> to vector<8xf32>
    %105 = vector.shape_cast %104 : vector<8xf32> to vector<8x1xf32>
    %106 = vector.broadcast %105 : vector<8x1xf32> to vector<8x8xf32>
    %107 = arith.subf %103, %106 : vector<8x8xf32>
    %108 = math.exp %107 : vector<8x8xf32>
    %cst_44 = arith.constant dense<0.000000e+00> : vector<8xf32>
    %109 = vector.multi_reduction <add>, %108, %cst_44 [1] : vector<8x8xf32> to vector<8xf32>
    %110 = vector.shape_cast %109 : vector<8xf32> to vector<8x1xf32>
    %111 = vector.broadcast %110 : vector<8x1xf32> to vector<8x8xf32>
    %112 = arith.divf %108, %111 : vector<8x8xf32>
    %cst_45 = arith.constant dense<0.000000e+00> : vector<8x8xf32>
    %113 = tpu.matmul %112, %99, %cst_45 {dimension_numbers = #tpu.dot_dimension_numbers<[1], [0], [0], [1], [0, 0, 1, 1], [], []>} : vector<8x8xf32>, vector<8x8xf32>, vector<8x8xf32> -> vector<8x8xf32>
    %114 = vector.extract_strided_slice %35 {offsets = [24, 0], sizes = [8, 32], strides = [1, 1]} : vector<32x32xf32> to vector<8x32xf32>
    %cst_46 = arith.constant dense<0.000000e+00> : vector<8x32xf32>
    %115 = tpu.matmul %113, %114, %cst_46 {dimension_numbers = #tpu.dot_dimension_numbers<[1], [0], [0], [1], [0, 0, 1, 1], [], []>} : vector<8x8xf32>, vector<8x32xf32>, vector<8x32xf32> -> vector<8x32xf32>
    %116 = arith.addf %96, %115 : vector<8x32xf32>
    %c0_47 = arith.constant 0 : index
    %c0_48 = arith.constant 0 : index
    %c0_49 = arith.constant 0 : index
    %117 = vector.load %arg8[%c0_47, %c0_48, %c0_49] : memref<2x1x32xf32, #tpu.memory_space<vmem>>, vector<1x1x32xf32>
    %118 = vector.shape_cast %117 : vector<1x1x32xf32> to vector<1x32xf32>
    %119 = vector.broadcast %118 : vector<1x32xf32> to vector<8x32xf32>
    %120 = arith.addf %116, %119 : vector<8x32xf32>
    %121 = arith.addf %24, %120 : vector<8x32xf32>
    %c0_50 = arith.constant 0 : index
    %c0_51 = arith.constant 0 : index
    %c0_52 = arith.constant 0 : index
    %122 = vector.load %arg9[%c0_50, %c0_51, %c0_52] : memref<2x1x32xf32, #tpu.memory_space<vmem>>, vector<1x1x32xf32>
    %123 = vector.shape_cast %122 : vector<1x1x32xf32> to vector<1x32xf32>
    %c0_53 = arith.constant 0 : index
    %c0_54 = arith.constant 0 : index
    %c0_55 = arith.constant 0 : index
    %124 = vector.load %arg10[%c0_53, %c0_54, %c0_55] : memref<2x1x32xf32, #tpu.memory_space<vmem>>, vector<1x1x32xf32>
    %125 = vector.shape_cast %124 : vector<1x1x32xf32> to vector<1x32xf32>
    %cst_56 = arith.constant dense<0.000000e+00> : vector<8xf32>
    %126 = vector.multi_reduction <add>, %121, %cst_56 [1] : vector<8x32xf32> to vector<8xf32>
    %127 = vector.shape_cast %126 : vector<8xf32> to vector<8x1xf32>
    %cst_57 = arith.constant 3.200000e+01 : f32
    %128 = vector.broadcast %cst_57 : f32 to vector<8x1xf32>
    %129 = arith.divf %127, %128 : vector<8x1xf32>
    %130 = vector.broadcast %129 : vector<8x1xf32> to vector<8x32xf32>
    %131 = arith.subf %121, %130 : vector<8x32xf32>
    %132 = arith.mulf %131, %131 : vector<8x32xf32>
    %cst_58 = arith.constant dense<0.000000e+00> : vector<8xf32>
    %133 = vector.multi_reduction <add>, %132, %cst_58 [1] : vector<8x32xf32> to vector<8xf32>
    %134 = vector.shape_cast %133 : vector<8xf32> to vector<8x1xf32>
    %cst_59 = arith.constant 3.200000e+01 : f32
    %135 = vector.broadcast %cst_59 : f32 to vector<8x1xf32>
    %136 = arith.divf %134, %135 : vector<8x1xf32>
    %137 = vector.broadcast %129 : vector<8x1xf32> to vector<8x32xf32>
    %138 = arith.subf %121, %137 : vector<8x32xf32>
    %cst_60 = arith.constant 9.99999996E-13 : f32
    %139 = vector.broadcast %cst_60 : f32 to vector<8x1xf32>
    %140 = arith.addf %136, %139 : vector<8x1xf32>
    %141 = math.rsqrt %140 : vector<8x1xf32>
    %142 = vector.broadcast %141 : vector<8x1xf32> to vector<8x32xf32>
    %143 = arith.mulf %138, %142 : vector<8x32xf32>
    %144 = vector.broadcast %123 : vector<1x32xf32> to vector<8x32xf32>
    %145 = arith.mulf %143, %144 : vector<8x32xf32>
    %146 = vector.broadcast %125 : vector<1x32xf32> to vector<8x32xf32>
    %147 = arith.addf %145, %146 : vector<8x32xf32>
    %c0_61 = arith.constant 0 : index
    %c0_62 = arith.constant 0 : index
    %c0_63 = arith.constant 0 : index
    %148 = vector.load %arg11[%c0_61, %c0_62, %c0_63] : memref<2x32x64xf32, #tpu.memory_space<vmem>>, vector<1x32x64xf32>
    %149 = vector.shape_cast %148 : vector<1x32x64xf32> to vector<32x64xf32>
    %cst_64 = arith.constant dense<0.000000e+00> : vector<8x64xf32>
    %150 = tpu.matmul %147, %149, %cst_64 {dimension_numbers = #tpu.dot_dimension_numbers<[1], [0], [0], [1], [0, 0, 1, 1], [], []>} : vector<8x32xf32>, vector<32x64xf32>, vector<8x64xf32> -> vector<8x64xf32>
    %c0_65 = arith.constant 0 : index
    %c0_66 = arith.constant 0 : index
    %c0_67 = arith.constant 0 : index
    %151 = vector.load %arg12[%c0_65, %c0_66, %c0_67] : memref<2x1x64xf32, #tpu.memory_space<vmem>>, vector<1x1x64xf32>
    %152 = vector.shape_cast %151 : vector<1x1x64xf32> to vector<1x64xf32>
    %153 = vector.broadcast %152 : vector<1x64xf32> to vector<8x64xf32>
    %154 = arith.addf %150, %153 : vector<8x64xf32>
    %155 = arith.mulf %154, %154 : vector<8x64xf32>
    %156 = arith.mulf %154, %155 : vector<8x64xf32>
    %cst_68 = arith.constant 4.471500e-02 : f32
    %157 = vector.broadcast %cst_68 : f32 to vector<8x64xf32>
    %158 = arith.mulf %157, %156 : vector<8x64xf32>
    %159 = arith.addf %154, %158 : vector<8x64xf32>
    %cst_69 = arith.constant 0.797884583 : f32
    %160 = vector.broadcast %cst_69 : f32 to vector<8x64xf32>
    %161 = arith.mulf %160, %159 : vector<8x64xf32>
    %162 = math.tanh %161 : vector<8x64xf32>
    %cst_70 = arith.constant 1.000000e+00 : f32
    %163 = vector.broadcast %cst_70 : f32 to vector<8x64xf32>
    %164 = arith.addf %163, %162 : vector<8x64xf32>
    %cst_71 = arith.constant 5.000000e-01 : f32
    %165 = vector.broadcast %cst_71 : f32 to vector<8x64xf32>
    %166 = arith.mulf %165, %164 : vector<8x64xf32>
    %167 = arith.mulf %154, %166 : vector<8x64xf32>
    %c0_72 = arith.constant 0 : index
    %c0_73 = arith.constant 0 : index
    %c0_74 = arith.constant 0 : index
    %168 = vector.load %arg13[%c0_72, %c0_73, %c0_74] : memref<2x64x32xf32, #tpu.memory_space<vmem>>, vector<1x64x32xf32>
    %169 = vector.shape_cast %168 : vector<1x64x32xf32> to vector<64x32xf32>
    %cst_75 = arith.constant dense<0.000000e+00> : vector<8x32xf32>
    %170 = tpu.matmul %167, %169, %cst_75 {dimension_numbers = #tpu.dot_dimension_numbers<[1], [0], [0], [1], [0, 0, 1, 1], [], []>} : vector<8x64xf32>, vector<64x32xf32>, vector<8x32xf32> -> vector<8x32xf32>
    %c0_76 = arith.constant 0 : index
    %c0_77 = arith.constant 0 : index
    %c0_78 = arith.constant 0 : index
    %171 = vector.load %arg14[%c0_76, %c0_77, %c0_78] : memref<2x1x32xf32, #tpu.memory_space<vmem>>, vector<1x1x32xf32>
    %172 = vector.shape_cast %171 : vector<1x1x32xf32> to vector<1x32xf32>
    %173 = vector.broadcast %172 : vector<1x32xf32> to vector<8x32xf32>
    %174 = arith.addf %170, %173 : vector<8x32xf32>
    %175 = arith.addf %147, %174 : vector<8x32xf32>
    %c0_79 = arith.constant 0 : index
    %c0_80 = arith.constant 0 : index
    %c0_81 = arith.constant 0 : index
    %176 = vector.load %arg15[%c0_79, %c0_80, %c0_81] : memref<2x1x32xf32, #tpu.memory_space<vmem>>, vector<1x1x32xf32>
    %177 = vector.shape_cast %176 : vector<1x1x32xf32> to vector<1x32xf32>
    %c0_82 = arith.constant 0 : index
    %c0_83 = arith.constant 0 : index
    %c0_84 = arith.constant 0 : index
    %178 = vector.load %arg16[%c0_82, %c0_83, %c0_84] : memref<2x1x32xf32, #tpu.memory_space<vmem>>, vector<1x1x32xf32>
    %179 = vector.shape_cast %178 : vector<1x1x32xf32> to vector<1x32xf32>
    %cst_85 = arith.constant dense<0.000000e+00> : vector<8xf32>
    %180 = vector.multi_reduction <add>, %175, %cst_85 [1] : vector<8x32xf32> to vector<8xf32>
    %181 = vector.shape_cast %180 : vector<8xf32> to vector<8x1xf32>
    %cst_86 = arith.constant 3.200000e+01 : f32
    %182 = vector.broadcast %cst_86 : f32 to vector<8x1xf32>
    %183 = arith.divf %181, %182 : vector<8x1xf32>
    %184 = vector.broadcast %183 : vector<8x1xf32> to vector<8x32xf32>
    %185 = arith.subf %175, %184 : vector<8x32xf32>
    %186 = arith.mulf %185, %185 : vector<8x32xf32>
    %cst_87 = arith.constant dense<0.000000e+00> : vector<8xf32>
    %187 = vector.multi_reduction <add>, %186, %cst_87 [1] : vector<8x32xf32> to vector<8xf32>
    %188 = vector.shape_cast %187 : vector<8xf32> to vector<8x1xf32>
    %cst_88 = arith.constant 3.200000e+01 : f32
    %189 = vector.broadcast %cst_88 : f32 to vector<8x1xf32>
    %190 = arith.divf %188, %189 : vector<8x1xf32>
    %191 = vector.broadcast %183 : vector<8x1xf32> to vector<8x32xf32>
    %192 = arith.subf %175, %191 : vector<8x32xf32>
    %cst_89 = arith.constant 9.99999996E-13 : f32
    %193 = vector.broadcast %cst_89 : f32 to vector<8x1xf32>
    %194 = arith.addf %190, %193 : vector<8x1xf32>
    %195 = math.rsqrt %194 : vector<8x1xf32>
    %196 = vector.broadcast %195 : vector<8x1xf32> to vector<8x32xf32>
    %197 = arith.mulf %192, %196 : vector<8x32xf32>
    %198 = vector.broadcast %177 : vector<1x32xf32> to vector<8x32xf32>
    %199 = arith.mulf %197, %198 : vector<8x32xf32>
    %200 = vector.broadcast %179 : vector<1x32xf32> to vector<8x32xf32>
    %201 = arith.addf %199, %200 : vector<8x32xf32>
    %c1 = arith.constant 1 : index
    %c0_90 = arith.constant 0 : index
    %c0_91 = arith.constant 0 : index
    %202 = vector.load %arg5[%c1, %c0_90, %c0_91] : memref<2x32x96xf32, #tpu.memory_space<vmem>>, vector<1x32x96xf32>
    %203 = vector.shape_cast %202 : vector<1x32x96xf32> to vector<32x96xf32>
    %cst_92 = arith.constant dense<0.000000e+00> : vector<8x96xf32>
    %204 = tpu.matmul %201, %203, %cst_92 {dimension_numbers = #tpu.dot_dimension_numbers<[1], [0], [0], [1], [0, 0, 1, 1], [], []>} : vector<8x32xf32>, vector<32x96xf32>, vector<8x96xf32> -> vector<8x96xf32>
    %c1_93 = arith.constant 1 : index
    %c0_94 = arith.constant 0 : index
    %c0_95 = arith.constant 0 : index
    %205 = vector.load %arg6[%c1_93, %c0_94, %c0_95] : memref<2x1x96xf32, #tpu.memory_space<vmem>>, vector<1x1x96xf32>
    %206 = vector.shape_cast %205 : vector<1x1x96xf32> to vector<1x96xf32>
    %207 = vector.broadcast %206 : vector<1x96xf32> to vector<8x96xf32>
    %208 = arith.addf %204, %207 : vector<8x96xf32>
    %c1_96 = arith.constant 1 : index
    %c0_97 = arith.constant 0 : index
    %c0_98 = arith.constant 0 : index
    %209 = vector.load %arg7[%c1_96, %c0_97, %c0_98] : memref<2x32x32xf32, #tpu.memory_space<vmem>>, vector<1x32x32xf32>
    %210 = vector.shape_cast %209 : vector<1x32x32xf32> to vector<32x32xf32>
    %cst_99 = arith.constant 0.000000e+00 : f32
    %211 = vector.broadcast %cst_99 : f32 to vector<8x32xf32>
    %212 = vector.extract_strided_slice %208 {offsets = [0, 0], sizes = [8, 8], strides = [1, 1]} : vector<8x96xf32> to vector<8x8xf32>
    %213 = vector.extract_strided_slice %208 {offsets = [0, 32], sizes = [8, 8], strides = [1, 1]} : vector<8x96xf32> to vector<8x8xf32>
    %214 = vector.extract_strided_slice %208 {offsets = [0, 64], sizes = [8, 8], strides = [1, 1]} : vector<8x96xf32> to vector<8x8xf32>
    %cst_100 = arith.constant dense<0.000000e+00> : vector<8x8xf32>
    %215 = tpu.matmul %212, %213, %cst_100 {dimension_numbers = #tpu.dot_dimension_numbers<[1], [1], [0], [0], [0, 0, 1, 0], [], []>} : vector<8x8xf32>, vector<8x8xf32>, vector<8x8xf32> -> vector<8x8xf32>
    %cst_101 = arith.constant 0.353553385 : f32
    %216 = vector.broadcast %cst_101 : f32 to vector<8x8xf32>
    %217 = arith.mulf %215, %216 : vector<8x8xf32>
    %218 = arith.addf %217, %26 : vector<8x8xf32>
    %cst_102 = arith.constant dense<0xFF800000> : vector<8xf32>
    %219 = vector.multi_reduction <maximumf>, %218, %cst_102 [1] : vector<8x8xf32> to vector<8xf32>
    %220 = vector.shape_cast %219 : vector<8xf32> to vector<8x1xf32>
    %221 = vector.broadcast %220 : vector<8x1xf32> to vector<8x8xf32>
    %222 = arith.subf %218, %221 : vector<8x8xf32>
    %223 = math.exp %222 : vector<8x8xf32>
    %cst_103 = arith.constant dense<0.000000e+00> : vector<8xf32>
    %224 = vector.multi_reduction <add>, %223, %cst_103 [1] : vector<8x8xf32> to vector<8xf32>
    %225 = vector.shape_cast %224 : vector<8xf32> to vector<8x1xf32>
    %226 = vector.broadcast %225 : vector<8x1xf32> to vector<8x8xf32>
    %227 = arith.divf %223, %226 : vector<8x8xf32>
    %cst_104 = arith.constant dense<0.000000e+00> : vector<8x8xf32>
    %228 = tpu.matmul %227, %214, %cst_104 {dimension_numbers = #tpu.dot_dimension_numbers<[1], [0], [0], [1], [0, 0, 1, 1], [], []>} : vector<8x8xf32>, vector<8x8xf32>, vector<8x8xf32> -> vector<8x8xf32>
    %229 = vector.extract_strided_slice %210 {offsets = [0, 0], sizes = [8, 32], strides = [1, 1]} : vector<32x32xf32> to vector<8x32xf32>
    %cst_105 = arith.constant dense<0.000000e+00> : vector<8x32xf32>
    %230 = tpu.matmul %228, %229, %cst_105 {dimension_numbers = #tpu.dot_dimension_numbers<[1], [0], [0], [1], [0, 0, 1, 1], [], []>} : vector<8x8xf32>, vector<8x32xf32>, vector<8x32xf32> -> vector<8x32xf32>
    %231 = arith.addf %211, %230 : vector<8x32xf32>
    %232 = vector.extract_strided_slice %208 {offsets = [0, 8], sizes = [8, 8], strides = [1, 1]} : vector<8x96xf32> to vector<8x8xf32>
    %233 = vector.extract_strided_slice %208 {offsets = [0, 40], sizes = [8, 8], strides = [1, 1]} : vector<8x96xf32> to vector<8x8xf32>
    %234 = vector.extract_strided_slice %208 {offsets = [0, 72], sizes = [8, 8], strides = [1, 1]} : vector<8x96xf32> to vector<8x8xf32>
    %cst_106 = arith.constant dense<0.000000e+00> : vector<8x8xf32>
    %235 = tpu.matmul %232, %233, %cst_106 {dimension_numbers = #tpu.dot_dimension_numbers<[1], [1], [0], [0], [0, 0, 1, 0], [], []>} : vector<8x8xf32>, vector<8x8xf32>, vector<8x8xf32> -> vector<8x8xf32>
    %cst_107 = arith.constant 0.353553385 : f32
    %236 = vector.broadcast %cst_107 : f32 to vector<8x8xf32>
    %237 = arith.mulf %235, %236 : vector<8x8xf32>
    %238 = arith.addf %237, %26 : vector<8x8xf32>
    %cst_108 = arith.constant dense<0xFF800000> : vector<8xf32>
    %239 = vector.multi_reduction <maximumf>, %238, %cst_108 [1] : vector<8x8xf32> to vector<8xf32>
    %240 = vector.shape_cast %239 : vector<8xf32> to vector<8x1xf32>
    %241 = vector.broadcast %240 : vector<8x1xf32> to vector<8x8xf32>
    %242 = arith.subf %238, %241 : vector<8x8xf32>
    %243 = math.exp %242 : vector<8x8xf32>
    %cst_109 = arith.constant dense<0.000000e+00> : vector<8xf32>
    %244 = vector.multi_reduction <add>, %243, %cst_109 [1] : vector<8x8xf32> to vector<8xf32>
    %245 = vector.shape_cast %244 : vector<8xf32> to vector<8x1xf32>
    %246 = vector.broadcast %245 : vector<8x1xf32> to vector<8x8xf32>
    %247 = arith.divf %243, %246 : vector<8x8xf32>
    %cst_110 = arith.constant dense<0.000000e+00> : vector<8x8xf32>
    %248 = tpu.matmul %247, %234, %cst_110 {dimension_numbers = #tpu.dot_dimension_numbers<[1], [0], [0], [1], [0, 0, 1, 1], [], []>} : vector<8x8xf32>, vector<8x8xf32>, vector<8x8xf32> -> vector<8x8xf32>
    %249 = vector.extract_strided_slice %210 {offsets = [8, 0], sizes = [8, 32], strides = [1, 1]} : vector<32x32xf32> to vector<8x32xf32>
    %cst_111 = arith.constant dense<0.000000e+00> : vector<8x32xf32>
    %250 = tpu.matmul %248, %249, %cst_111 {dimension_numbers = #tpu.dot_dimension_numbers<[1], [0], [0], [1], [0, 0, 1, 1], [], []>} : vector<8x8xf32>, vector<8x32xf32>, vector<8x32xf32> -> vector<8x32xf32>
    %251 = arith.addf %231, %250 : vector<8x32xf32>
    %252 = vector.extract_strided_slice %208 {offsets = [0, 16], sizes = [8, 8], strides = [1, 1]} : vector<8x96xf32> to vector<8x8xf32>
    %253 = vector.extract_strided_slice %208 {offsets = [0, 48], sizes = [8, 8], strides = [1, 1]} : vector<8x96xf32> to vector<8x8xf32>
    %254 = vector.extract_strided_slice %208 {offsets = [0, 80], sizes = [8, 8], strides = [1, 1]} : vector<8x96xf32> to vector<8x8xf32>
    %cst_112 = arith.constant dense<0.000000e+00> : vector<8x8xf32>
    %255 = tpu.matmul %252, %253, %cst_112 {dimension_numbers = #tpu.dot_dimension_numbers<[1], [1], [0], [0], [0, 0, 1, 0], [], []>} : vector<8x8xf32>, vector<8x8xf32>, vector<8x8xf32> -> vector<8x8xf32>
    %cst_113 = arith.constant 0.353553385 : f32
    %256 = vector.broadcast %cst_113 : f32 to vector<8x8xf32>
    %257 = arith.mulf %255, %256 : vector<8x8xf32>
    %258 = arith.addf %257, %26 : vector<8x8xf32>
    %cst_114 = arith.constant dense<0xFF800000> : vector<8xf32>
    %259 = vector.multi_reduction <maximumf>, %258, %cst_114 [1] : vector<8x8xf32> to vector<8xf32>
    %260 = vector.shape_cast %259 : vector<8xf32> to vector<8x1xf32>
    %261 = vector.broadcast %260 : vector<8x1xf32> to vector<8x8xf32>
    %262 = arith.subf %258, %261 : vector<8x8xf32>
    %263 = math.exp %262 : vector<8x8xf32>
    %cst_115 = arith.constant dense<0.000000e+00> : vector<8xf32>
    %264 = vector.multi_reduction <add>, %263, %cst_115 [1] : vector<8x8xf32> to vector<8xf32>
    %265 = vector.shape_cast %264 : vector<8xf32> to vector<8x1xf32>
    %266 = vector.broadcast %265 : vector<8x1xf32> to vector<8x8xf32>
    %267 = arith.divf %263, %266 : vector<8x8xf32>
    %cst_116 = arith.constant dense<0.000000e+00> : vector<8x8xf32>
    %268 = tpu.matmul %267, %254, %cst_116 {dimension_numbers = #tpu.dot_dimension_numbers<[1], [0], [0], [1], [0, 0, 1, 1], [], []>} : vector<8x8xf32>, vector<8x8xf32>, vector<8x8xf32> -> vector<8x8xf32>
    %269 = vector.extract_strided_slice %210 {offsets = [16, 0], sizes = [8, 32], strides = [1, 1]} : vector<32x32xf32> to vector<8x32xf32>
    %cst_117 = arith.constant dense<0.000000e+00> : vector<8x32xf32>
    %270 = tpu.matmul %268, %269, %cst_117 {dimension_numbers = #tpu.dot_dimension_numbers<[1], [0], [0], [1], [0, 0, 1, 1], [], []>} : vector<8x8xf32>, vector<8x32xf32>, vector<8x32xf32> -> vector<8x32xf32>
    %271 = arith.addf %251, %270 : vector<8x32xf32>
    %272 = vector.extract_strided_slice %208 {offsets = [0, 24], sizes = [8, 8], strides = [1, 1]} : vector<8x96xf32> to vector<8x8xf32>
    %273 = vector.extract_strided_slice %208 {offsets = [0, 56], sizes = [8, 8], strides = [1, 1]} : vector<8x96xf32> to vector<8x8xf32>
    %274 = vector.extract_strided_slice %208 {offsets = [0, 88], sizes = [8, 8], strides = [1, 1]} : vector<8x96xf32> to vector<8x8xf32>
    %cst_118 = arith.constant dense<0.000000e+00> : vector<8x8xf32>
    %275 = tpu.matmul %272, %273, %cst_118 {dimension_numbers = #tpu.dot_dimension_numbers<[1], [1], [0], [0], [0, 0, 1, 0], [], []>} : vector<8x8xf32>, vector<8x8xf32>, vector<8x8xf32> -> vector<8x8xf32>
    %cst_119 = arith.constant 0.353553385 : f32
    %276 = vector.broadcast %cst_119 : f32 to vector<8x8xf32>
    %277 = arith.mulf %275, %276 : vector<8x8xf32>
    %278 = arith.addf %277, %26 : vector<8x8xf32>
    %cst_120 = arith.constant dense<0xFF800000> : vector<8xf32>
    %279 = vector.multi_reduction <maximumf>, %278, %cst_120 [1] : vector<8x8xf32> to vector<8xf32>
    %280 = vector.shape_cast %279 : vector<8xf32> to vector<8x1xf32>
    %281 = vector.broadcast %280 : vector<8x1xf32> to vector<8x8xf32>
    %282 = arith.subf %278, %281 : vector<8x8xf32>
    %283 = math.exp %282 : vector<8x8xf32>
    %cst_121 = arith.constant dense<0.000000e+00> : vector<8xf32>
    %284 = vector.multi_reduction <add>, %283, %cst_121 [1] : vector<8x8xf32> to vector<8xf32>
    %285 = vector.shape_cast %284 : vector<8xf32> to vector<8x1xf32>
    %286 = vector.broadcast %285 : vector<8x1xf32> to vector<8x8xf32>
    %287 = arith.divf %283, %286 : vector<8x8xf32>
    %cst_122 = arith.constant dense<0.000000e+00> : vector<8x8xf32>
    %288 = tpu.matmul %287, %274, %cst_122 {dimension_numbers = #tpu.dot_dimension_numbers<[1], [0], [0], [1], [0, 0, 1, 1], [], []>} : vector<8x8xf32>, vector<8x8xf32>, vector<8x8xf32> -> vector<8x8xf32>
    %289 = vector.extract_strided_slice %210 {offsets = [24, 0], sizes = [8, 32], strides = [1, 1]} : vector<32x32xf32> to vector<8x32xf32>
    %cst_123 = arith.constant dense<0.000000e+00> : vector<8x32xf32>
    %290 = tpu.matmul %288, %289, %cst_123 {dimension_numbers = #tpu.dot_dimension_numbers<[1], [0], [0], [1], [0, 0, 1, 1], [], []>} : vector<8x8xf32>, vector<8x32xf32>, vector<8x32xf32> -> vector<8x32xf32>
    %291 = arith.addf %271, %290 : vector<8x32xf32>
    %c1_124 = arith.constant 1 : index
    %c0_125 = arith.constant 0 : index
    %c0_126 = arith.constant 0 : index
    %292 = vector.load %arg8[%c1_124, %c0_125, %c0_126] : memref<2x1x32xf32, #tpu.memory_space<vmem>>, vector<1x1x32xf32>
    %293 = vector.shape_cast %292 : vector<1x1x32xf32> to vector<1x32xf32>
    %294 = vector.broadcast %293 : vector<1x32xf32> to vector<8x32xf32>
    %295 = arith.addf %291, %294 : vector<8x32xf32>
    %296 = arith.addf %201, %295 : vector<8x32xf32>
    %c1_127 = arith.constant 1 : index
    %c0_128 = arith.constant 0 : index
    %c0_129 = arith.constant 0 : index
    %297 = vector.load %arg9[%c1_127, %c0_128, %c0_129] : memref<2x1x32xf32, #tpu.memory_space<vmem>>, vector<1x1x32xf32>
    %298 = vector.shape_cast %297 : vector<1x1x32xf32> to vector<1x32xf32>
    %c1_130 = arith.constant 1 : index
    %c0_131 = arith.constant 0 : index
    %c0_132 = arith.constant 0 : index
    %299 = vector.load %arg10[%c1_130, %c0_131, %c0_132] : memref<2x1x32xf32, #tpu.memory_space<vmem>>, vector<1x1x32xf32>
    %300 = vector.shape_cast %299 : vector<1x1x32xf32> to vector<1x32xf32>
    %cst_133 = arith.constant dense<0.000000e+00> : vector<8xf32>
    %301 = vector.multi_reduction <add>, %296, %cst_133 [1] : vector<8x32xf32> to vector<8xf32>
    %302 = vector.shape_cast %301 : vector<8xf32> to vector<8x1xf32>
    %cst_134 = arith.constant 3.200000e+01 : f32
    %303 = vector.broadcast %cst_134 : f32 to vector<8x1xf32>
    %304 = arith.divf %302, %303 : vector<8x1xf32>
    %305 = vector.broadcast %304 : vector<8x1xf32> to vector<8x32xf32>
    %306 = arith.subf %296, %305 : vector<8x32xf32>
    %307 = arith.mulf %306, %306 : vector<8x32xf32>
    %cst_135 = arith.constant dense<0.000000e+00> : vector<8xf32>
    %308 = vector.multi_reduction <add>, %307, %cst_135 [1] : vector<8x32xf32> to vector<8xf32>
    %309 = vector.shape_cast %308 : vector<8xf32> to vector<8x1xf32>
    %cst_136 = arith.constant 3.200000e+01 : f32
    %310 = vector.broadcast %cst_136 : f32 to vector<8x1xf32>
    %311 = arith.divf %309, %310 : vector<8x1xf32>
    %312 = vector.broadcast %304 : vector<8x1xf32> to vector<8x32xf32>
    %313 = arith.subf %296, %312 : vector<8x32xf32>
    %cst_137 = arith.constant 9.99999996E-13 : f32
    %314 = vector.broadcast %cst_137 : f32 to vector<8x1xf32>
    %315 = arith.addf %311, %314 : vector<8x1xf32>
    %316 = math.rsqrt %315 : vector<8x1xf32>
    %317 = vector.broadcast %316 : vector<8x1xf32> to vector<8x32xf32>
    %318 = arith.mulf %313, %317 : vector<8x32xf32>
    %319 = vector.broadcast %298 : vector<1x32xf32> to vector<8x32xf32>
    %320 = arith.mulf %318, %319 : vector<8x32xf32>
    %321 = vector.broadcast %300 : vector<1x32xf32> to vector<8x32xf32>
    %322 = arith.addf %320, %321 : vector<8x32xf32>
    %c1_138 = arith.constant 1 : index
    %c0_139 = arith.constant 0 : index
    %c0_140 = arith.constant 0 : index
    %323 = vector.load %arg11[%c1_138, %c0_139, %c0_140] : memref<2x32x64xf32, #tpu.memory_space<vmem>>, vector<1x32x64xf32>
    %324 = vector.shape_cast %323 : vector<1x32x64xf32> to vector<32x64xf32>
    %cst_141 = arith.constant dense<0.000000e+00> : vector<8x64xf32>
    %325 = tpu.matmul %322, %324, %cst_141 {dimension_numbers = #tpu.dot_dimension_numbers<[1], [0], [0], [1], [0, 0, 1, 1], [], []>} : vector<8x32xf32>, vector<32x64xf32>, vector<8x64xf32> -> vector<8x64xf32>
    %c1_142 = arith.constant 1 : index
    %c0_143 = arith.constant 0 : index
    %c0_144 = arith.constant 0 : index
    %326 = vector.load %arg12[%c1_142, %c0_143, %c0_144] : memref<2x1x64xf32, #tpu.memory_space<vmem>>, vector<1x1x64xf32>
    %327 = vector.shape_cast %326 : vector<1x1x64xf32> to vector<1x64xf32>
    %328 = vector.broadcast %327 : vector<1x64xf32> to vector<8x64xf32>
    %329 = arith.addf %325, %328 : vector<8x64xf32>
    %330 = arith.mulf %329, %329 : vector<8x64xf32>
    %331 = arith.mulf %329, %330 : vector<8x64xf32>
    %cst_145 = arith.constant 4.471500e-02 : f32
    %332 = vector.broadcast %cst_145 : f32 to vector<8x64xf32>
    %333 = arith.mulf %332, %331 : vector<8x64xf32>
    %334 = arith.addf %329, %333 : vector<8x64xf32>
    %cst_146 = arith.constant 0.797884583 : f32
    %335 = vector.broadcast %cst_146 : f32 to vector<8x64xf32>
    %336 = arith.mulf %335, %334 : vector<8x64xf32>
    %337 = math.tanh %336 : vector<8x64xf32>
    %cst_147 = arith.constant 1.000000e+00 : f32
    %338 = vector.broadcast %cst_147 : f32 to vector<8x64xf32>
    %339 = arith.addf %338, %337 : vector<8x64xf32>
    %cst_148 = arith.constant 5.000000e-01 : f32
    %340 = vector.broadcast %cst_148 : f32 to vector<8x64xf32>
    %341 = arith.mulf %340, %339 : vector<8x64xf32>
    %342 = arith.mulf %329, %341 : vector<8x64xf32>
    %c1_149 = arith.constant 1 : index
    %c0_150 = arith.constant 0 : index
    %c0_151 = arith.constant 0 : index
    %343 = vector.load %arg13[%c1_149, %c0_150, %c0_151] : memref<2x64x32xf32, #tpu.memory_space<vmem>>, vector<1x64x32xf32>
    %344 = vector.shape_cast %343 : vector<1x64x32xf32> to vector<64x32xf32>
    %cst_152 = arith.constant dense<0.000000e+00> : vector<8x32xf32>
    %345 = tpu.matmul %342, %344, %cst_152 {dimension_numbers = #tpu.dot_dimension_numbers<[1], [0], [0], [1], [0, 0, 1, 1], [], []>} : vector<8x64xf32>, vector<64x32xf32>, vector<8x32xf32> -> vector<8x32xf32>
    %c1_153 = arith.constant 1 : index
    %c0_154 = arith.constant 0 : index
    %c0_155 = arith.constant 0 : index
    %346 = vector.load %arg14[%c1_153, %c0_154, %c0_155] : memref<2x1x32xf32, #tpu.memory_space<vmem>>, vector<1x1x32xf32>
    %347 = vector.shape_cast %346 : vector<1x1x32xf32> to vector<1x32xf32>
    %348 = vector.broadcast %347 : vector<1x32xf32> to vector<8x32xf32>
    %349 = arith.addf %345, %348 : vector<8x32xf32>
    %350 = arith.addf %322, %349 : vector<8x32xf32>
    %c1_156 = arith.constant 1 : index
    %c0_157 = arith.constant 0 : index
    %c0_158 = arith.constant 0 : index
    %351 = vector.load %arg15[%c1_156, %c0_157, %c0_158] : memref<2x1x32xf32, #tpu.memory_space<vmem>>, vector<1x1x32xf32>
    %352 = vector.shape_cast %351 : vector<1x1x32xf32> to vector<1x32xf32>
    %c1_159 = arith.constant 1 : index
    %c0_160 = arith.constant 0 : index
    %c0_161 = arith.constant 0 : index
    %353 = vector.load %arg16[%c1_159, %c0_160, %c0_161] : memref<2x1x32xf32, #tpu.memory_space<vmem>>, vector<1x1x32xf32>
    %354 = vector.shape_cast %353 : vector<1x1x32xf32> to vector<1x32xf32>
    %cst_162 = arith.constant dense<0.000000e+00> : vector<8xf32>
    %355 = vector.multi_reduction <add>, %350, %cst_162 [1] : vector<8x32xf32> to vector<8xf32>
    %356 = vector.shape_cast %355 : vector<8xf32> to vector<8x1xf32>
    %cst_163 = arith.constant 3.200000e+01 : f32
    %357 = vector.broadcast %cst_163 : f32 to vector<8x1xf32>
    %358 = arith.divf %356, %357 : vector<8x1xf32>
    %359 = vector.broadcast %358 : vector<8x1xf32> to vector<8x32xf32>
    %360 = arith.subf %350, %359 : vector<8x32xf32>
    %361 = arith.mulf %360, %360 : vector<8x32xf32>
    %cst_164 = arith.constant dense<0.000000e+00> : vector<8xf32>
    %362 = vector.multi_reduction <add>, %361, %cst_164 [1] : vector<8x32xf32> to vector<8xf32>
    %363 = vector.shape_cast %362 : vector<8xf32> to vector<8x1xf32>
    %cst_165 = arith.constant 3.200000e+01 : f32
    %364 = vector.broadcast %cst_165 : f32 to vector<8x1xf32>
    %365 = arith.divf %363, %364 : vector<8x1xf32>
    %366 = vector.broadcast %358 : vector<8x1xf32> to vector<8x32xf32>
    %367 = arith.subf %350, %366 : vector<8x32xf32>
    %cst_166 = arith.constant 9.99999996E-13 : f32
    %368 = vector.broadcast %cst_166 : f32 to vector<8x1xf32>
    %369 = arith.addf %365, %368 : vector<8x1xf32>
    %370 = math.rsqrt %369 : vector<8x1xf32>
    %371 = vector.broadcast %370 : vector<8x1xf32> to vector<8x32xf32>
    %372 = arith.mulf %367, %371 : vector<8x32xf32>
    %373 = vector.broadcast %352 : vector<1x32xf32> to vector<8x32xf32>
    %374 = arith.mulf %372, %373 : vector<8x32xf32>
    %375 = vector.broadcast %354 : vector<1x32xf32> to vector<8x32xf32>
    %376 = arith.addf %374, %375 : vector<8x32xf32>
    %377 = vector.extract_strided_slice %376 {offsets = [0, 0], sizes = [1, 32], strides = [1, 1]} : vector<8x32xf32> to vector<1x32xf32>
    %c0_167 = arith.constant 0 : index
    %c0_168 = arith.constant 0 : index
    %378 = vector.load %arg17[%c0_167, %c0_168] : memref<32x32xf32, #tpu.memory_space<vmem>>, vector<32x32xf32>
    %cst_169 = arith.constant dense<0.000000e+00> : vector<1x32xf32>
    %379 = tpu.matmul %377, %378, %cst_169 {dimension_numbers = #tpu.dot_dimension_numbers<[1], [0], [0], [1], [0, 0, 1, 1], [], []>} : vector<1x32xf32>, vector<32x32xf32>, vector<1x32xf32> -> vector<1x32xf32>
    %c0_170 = arith.constant 0 : index
    %c0_171 = arith.constant 0 : index
    %380 = vector.load %arg18[%c0_170, %c0_171] : memref<1x32xf32, #tpu.memory_space<vmem>>, vector<1x32xf32>
    %381 = arith.addf %379, %380 : vector<1x32xf32>
    %c0_172 = arith.constant 0 : index
    %c0_173 = arith.constant 0 : index
    %c0_174 = arith.constant 0 : index
    %382 = vector.load %arg19[%c0_172, %c0_173, %c0_174] : memref<1x1x32xf32, #tpu.memory_space<vmem>>, vector<1x1x32xf32>
    %383 = vector.shape_cast %382 : vector<1x1x32xf32> to vector<1x32xf32>
    %384 = vector.shape_cast %381 : vector<1x32xf32> to vector<1x1x32xf32>
    tpu.vector_store %arg19[%c0_172, %c0_173, %c0_174], %384 {strides = array<i32>} : memref<1x1x32xf32, #tpu.memory_space<vmem>>, vector<1x1x32xf32>,
    return
  }
  func.func @transform_0(%arg0: i32) -> (i32, i32) {
    %c0_i32 = arith.constant 0 : i32
    %c0_i32_0 = arith.constant 0 : i32
    return %arg0, %c0_i32 : i32, i32
  }
  func.func @transform_1(%arg0: i32) -> (i32, i32, i32) {
    %c0_i32 = arith.constant 0 : i32
    %c0_i32_0 = arith.constant 0 : i32
    %c0_i32_1 = arith.constant 0 : i32
    return %arg0, %c0_i32, %c0_i32_0 : i32, i32, i32
  }
  func.func @transform_2(%arg0: i32) -> (i32, i32) {
    %c0_i32 = arith.constant 0 : i32
    %c0_i32_0 = arith.constant 0 : i32
    %c0_i32_1 = arith.constant 0 : i32
    return %c0_i32, %c0_i32_0 : i32, i32
  }
  func.func @transform_3(%arg0: i32) -> (i32, i32) {
    %c0_i32 = arith.constant 0 : i32
    %c0_i32_0 = arith.constant 0 : i32
    %c0_i32_1 = arith.constant 0 : i32
    return %c0_i32, %c0_i32_0 : i32, i32
  }
  func.func @transform_4(%arg0: i32) -> (i32, i32, i32) {
    %c0_i32 = arith.constant 0 : i32
    %c0_i32_0 = arith.constant 0 : i32
    %c0_i32_1 = arith.constant 0 : i32
    %c0_i32_2 = arith.constant 0 : i32
    return %c0_i32, %c0_i32_0, %c0_i32_1 : i32, i32, i32
  }
  func.func @transform_5(%arg0: i32) -> (i32, i32, i32) {
    %c0_i32 = arith.constant 0 : i32
    %c0_i32_0 = arith.constant 0 : i32
    %c0_i32_1 = arith.constant 0 : i32
    %c0_i32_2 = arith.constant 0 : i32
    return %c0_i32, %c0_i32_0, %c0_i32_1 : i32, i32, i32
  }
  func.func @transform_6(%arg0: i32) -> (i32, i32, i32) {
    %c0_i32 = arith.constant 0 : i32
    %c0_i32_0 = arith.constant 0 : i32
    %c0_i32_1 = arith.constant 0 : i32
    %c0_i32_2 = arith.constant 0 : i32
    return %c0_i32, %c0_i32_0, %c0_i32_1 : i32, i32, i32
  }
  func.func @transform_7(%arg0: i32) -> (i32, i32, i32) {
    %c0_i32 = arith.constant 0 : i32
    %c0_i32_0 = arith.constant 0 : i32
    %c0_i32_1 = arith.constant 0 : i32
    %c0_i32_2 = arith.constant 0 : i32
    return %c0_i32, %c0_i32_0, %c0_i32_1 : i32, i32, i32
  }
  func.func @transform_8(%arg0: i32) -> (i32, i32, i32) {
    %c0_i32 = arith.constant 0 : i32
    %c0_i32_0 = arith.constant 0 : i32
    %c0_i32_1 = arith.constant 0 : i32
    %c0_i32_2 = arith.constant 0 : i32
    return %c0_i32, %c0_i32_0, %c0_i32_1 : i32, i32, i32
  }
  func.func @transform_9(%arg0: i32) -> (i32, i32, i32) {
    %c0_i32 = arith.constant 0 : i32
    %c0_i32_0 = arith.constant 0 : i32
    %c0_i32_1 = arith.constant 0 : i32
    %c0_i32_2 = arith.constant 0 : i32
    return %c0_i32, %c0_i32_0, %c0_i32_1 : i32, i32, i32
  }
  func.func @transform_10(%arg0: i32) -> (i32, i32, i32) {
    %c0_i32 = arith.constant 0 : i32
    %c0_i32_0 = arith.constant 0 : i32
    %c0_i32_1 = arith.constant 0 : i32
    %c0_i32_2 = arith.constant 0 : i32
    return %c0_i32, %c0_i32_0, %c0_i32_1 : i32, i32, i32
  }
  func.func @transform_11(%arg0: i32) -> (i32, i32, i32) {
    %c0_i32 = arith.constant 0 : i32
    %c0_i32_0 = arith.constant 0 : i32
    %c0_i32_1 = arith.constant 0 : i32
    %c0_i32_2 = arith.constant 0 : i32
    return %c0_i32, %c0_i32_0, %c0_i32_1 : i32, i32, i32
  }
  func.func @transform_12(%arg0: i32) -> (i32, i32, i32) {
    %c0_i32 = arith.constant 0 : i32
    %c0_i32_0 = arith.constant 0 : i32
    %c0_i32_1 = arith.constant 0 : i32
    %c0_i32_2 = arith.constant 0 : i32
    return %c0_i32, %c0_i32_0, %c0_i32_1 : i32, i32, i32
  }
  func.func @transform_13(%arg0: i32) -> (i32, i32, i32) {
    %c0_i32 = arith.constant 0 : i32
    %c0_i32_0 = arith.constant 0 : i32
    %c0_i32_1 = arith.constant 0 : i32
    %c0_i32_2 = arith.constant 0 : i32
    return %c0_i32, %c0_i32_0, %c0_i32_1 : i32, i32, i32
  }
  func.func @transform_14(%arg0: i32) -> (i32, i32, i32) {
    %c0_i32 = arith.constant 0 : i32
    %c0_i32_0 = arith.constant 0 : i32
    %c0_i32_1 = arith.constant 0 : i32
    %c0_i32_2 = arith.constant 0 : i32
    return %c0_i32, %c0_i32_0, %c0_i32_1 : i32, i32, i32
  }
  func.func @transform_15(%arg0: i32) -> (i32, i32, i32) {
    %c0_i32 = arith.constant 0 : i32
    %c0_i32_0 = arith.constant 0 : i32
    %c0_i32_1 = arith.constant 0 : i32
    %c0_i32_2 = arith.constant 0 : i32
    return %c0_i32, %c0_i32_0, %c0_i32_1 : i32, i32, i32
  }
  func.func @transform_16(%arg0: i32) -> (i32, i32) {
    %c0_i32 = arith.constant 0 : i32
    %c0_i32_0 = arith.constant 0 : i32
    %c0_i32_1 = arith.constant 0 : i32
    return %c0_i32, %c0_i32_0 : i32, i32
  }
  func.func @transform_17(%arg0: i32) -> (i32, i32) {
    %c0_i32 = arith.constant 0 : i32
    %c0_i32_0 = arith.constant 0 : i32
    %c0_i32_1 = arith.constant 0 : i32
    return %c0_i32, %c0_i32_0 : i32, i32
  }
  func.func @transform_18(%arg0: i32) -> (i32, i32, i32) {
    %c0_i32 = arith.constant 0 : i32
    %c0_i32_0 = arith.constant 0 : i32
    %c0_i32_1 = arith.constant 0 : i32
    return %arg0, %c0_i32, %c0_i32_0 : i32, i32, i32
  }
}

</mosaic_0001>

<llo_original>
// kernel: tpu_custom_call.1
$region0: #{tpu_custom_call.1}
  #allocation0 [shape = 'u32[]', space=smem, size = 0x4, offset = 0x4, fixed_abs, tag = 'smem constant byte address 0x4 - core index']
  #allocation1 [shape = 'u32[144,128]{1,0:T(1,128)}', space=vmem, size = 0x12000, scoped, tag = 'internal scratch']
  %s0 = inlined_call_operand.hbm [shape: f32[16,32], index: 0, kind: input, shape index: {}]
  %s1 = inlined_call_operand.hbm [shape: f32[2,8,8], index: 1, kind: input, shape index: {}]
  %s2 = inlined_call_operand.hbm [shape: f32[1,32], index: 2, kind: input, shape index: {}]
  %s3 = inlined_call_operand.hbm [shape: f32[1,32], index: 3, kind: input, shape index: {}]
  %s4 = inlined_call_operand.vmem [shape: f32[2,32,96], index: 4, kind: input, shape index: {}]
  %s5 = inlined_call_operand.vmem [shape: f32[2,1,96], index: 5, kind: input, shape index: {}]
  %s6 = inlined_call_operand.vmem [shape: f32[2,32,32], index: 6, kind: input, shape index: {}]
  %s7 = inlined_call_operand.vmem [shape: f32[2,1,32], index: 7, kind: input, shape index: {}]
  %s8 = inlined_call_operand.vmem [shape: f32[2,1,32], index: 8, kind: input, shape index: {}]
  %s9 = inlined_call_operand.vmem [shape: f32[2,1,32], index: 9, kind: input, shape index: {}]
  %s10 = inlined_call_operand.vmem [shape: f32[2,32,64], index: 10, kind: input, shape index: {}]
  %s11 = inlined_call_operand.vmem [shape: f32[2,1,64], index: 11, kind: input, shape index: {}]
  %s12 = inlined_call_operand.vmem [shape: f32[2,64,32], index: 12, kind: input, shape index: {}]
  %s13 = inlined_call_operand.vmem [shape: f32[2,1,32], index: 13, kind: input, shape index: {}]
  %s14 = inlined_call_operand.vmem [shape: f32[2,1,32], index: 14, kind: input, shape index: {}]
  %s15 = inlined_call_operand.vmem [shape: f32[2,1,32], index: 15, kind: input, shape index: {}]
  %s16 = inlined_call_operand.hbm [shape: f32[32,32], index: 16, kind: input, shape index: {}]
  %s17 = inlined_call_operand.vmem [shape: f32[1,32], index: 17, kind: input, shape index: {}]
  %s18 = inlined_call_operand.hbm [shape: f32[2,1,32], index: 18, kind: output, shape index: {}]
  %s19 = sld [smem:[#allocation0]]
  $region125: #{tpu_custom_call.1} parent=0
    _
  %s21 = ssub.s32 1, %s19
  %s22 = scalar_select 0, %s21, %s19
  $region1: #{tpu_custom_call.1} parent=0
    #allocation2 [shape = 'u8[8192]{0}', space=vmem, size = 0x2000, scoped, tag = 'input window, operand 0']
    #allocation3 [shape = 's32[2]{0}', space=sflag, size = 0x8, scoped, tag = 'scoped memory for tpu_custom_call.1']
    #allocation4 [shape = 's32[2]{0}', space=sflag, size = 0x8, scoped, tag = 'scoped memory for tpu_custom_call.1']
    #allocation5 [shape = 'u8[8192]{0}', space=vmem, size = 0x2000, scoped, tag = 'input window, operand 1']
    #allocation6 [shape = 's32[2]{0}', space=sflag, size = 0x8, scoped, tag = 'scoped memory for tpu_custom_call.1']
    #allocation7 [shape = 'u8[512]{0}', space=vmem, size = 0x400, scoped, tag = 'input window, operand 2, single buffered']
    #allocation8 [shape = 'u8[512]{0}', space=vmem, size = 0x400, scoped, tag = 'input window, operand 3, single buffered']
    #allocation9 [shape = 's32[1]{0}', space=sflag, size = 0x4, scoped, tag = 'scoped memory for tpu_custom_call.1']
    #allocation10 [shape = 'u8[16384]{0}', space=vmem, size = 0x4000, scoped, tag = 'input window, operand 16, single buffered']
    #allocation11 [shape = 'u8[1024]{0}', space=vmem, size = 0x400, scoped, tag = 'output window, operand 0']
    %23 = vsyncpa [#allocation3], 0
    %s24 = scalar_lea.sflag [#allocation3], 1
    %25 = vsyncpa %s24, 0
    %26 = vsyncpa [#allocation6], 0
    %s27 = scalar_lea.sflag [#allocation6], 1
    %28 = vsyncpa %s27, 0
    %29 = vsyncpa [#allocation9], 0
    %30 = vsyncpa [#allocation4], 0
    %s31 = scalar_lea.sflag [#allocation4], 1
    %32 = vsyncpa %s31, 0
    loop: start=0, step=1, limit=4
    $region2: #{tpu_custom_call.1} parent=1 // loop_pre_header
      _
    $region3: #{tpu_custom_call.1} parent=1 // loop_header
      %s34 = sphi 0, %s38
      %p35 = scmp.ge.s32.totalorder %s34, 4
      %s44 = sphi 0, %s46
      %s47 = sphi 0, %s44
      %s48 = sphi 0, %s47
      %s64 = sphi 0, %s48
      %s70 = sphi 0, %s72
      %s73 = sphi 0, %s70
      %s74 = sphi 0, %s73
      %s90 = sphi 0, %s74
      %s94 = sphi 0, %s94
      %s96 = sphi 0, %s94
      %s97 = sphi 0, %s96
      %s111 = sphi 0, %s97
      %s115 = sphi 0, %s115
      %s117 = sphi 0, %s115
      %s118 = sphi 0, %s117
      %s132 = sphi 0, %s118
      %s136 = sphi 0, %s136
      %s138 = sphi 0, %s136
      %s139 = sphi 0, %s138
      %s153 = sphi 0, %s139
      %s157 = sphi 0, %s157
      %s159 = sphi 0, %s157
      %s160 = sphi 0, %s159
      %s174 = sphi 0, %s160
      %s178 = sphi 0, %s178
      %s180 = sphi 0, %s178
      %s181 = sphi 0, %s180
      %s195 = sphi 0, %s181
      %s199 = sphi 0, %s199
      %s201 = sphi 0, %s199
      %s202 = sphi 0, %s201
      %s216 = sphi 0, %s202
      %s220 = sphi 0, %s220
      %s222 = sphi 0, %s220
      %s223 = sphi 0, %s222
      %s237 = sphi 0, %s223
      %s241 = sphi 0, %s241
      %s243 = sphi 0, %s241
      %s244 = sphi 0, %s243
      %s258 = sphi 0, %s244
      %s262 = sphi 0, %s262
      %s264 = sphi 0, %s262
      %s265 = sphi 0, %s264
      %s279 = sphi 0, %s265
      %s283 = sphi 0, %s283
      %s285 = sphi 0, %s283
      %s286 = sphi 0, %s285
      %s300 = sphi 0, %s286
      %s304 = sphi 0, %s304
      %s306 = sphi 0, %s304
      %s307 = sphi 0, %s306
      %s321 = sphi 0, %s307
      %s325 = sphi 0, %s325
      %s327 = sphi 0, %s325
      %s328 = sphi 0, %s327
      %s342 = sphi 0, %s328
      %s346 = sphi 0, %s346
      %s348 = sphi 0, %s346
      %s349 = sphi 0, %s348
      %s363 = sphi 0, %s349
      %s367 = sphi 0, %s367
      %s369 = sphi 0, %s367
      %s370 = sphi 0, %s369
      %s384 = sphi 0, %s370
      %s388 = sphi 0, %s388
      %s390 = sphi 0, %s388
      %s391 = sphi 0, %s390
      %s405 = sphi 0, %s391
      %s409 = sphi 0, %s409
      %s411 = sphi 0, %s409
      %s412 = sphi 0, %s411
      %s426 = sphi 0, %s412
      %s432 = sphi 0, %s434
      %s435 = sphi 0, %s432
      %s436 = sphi 0, %s435
      %s452 = sphi 0, %s436
    $region4: #{tpu_custom_call.1} parent=1 // loop_header_branch
      %37 = sbr.rel (%p35) target = $region8
    $region5: #{tpu_custom_call.1} parent=1 // loop_body
      %s39 = ssub.s32 %s34, 1
      %s40 = ssub.s32 %s34, 2
      %s41 = sadd.s32 %s34, 1
      %s42 = ssub.s32 %s34, %s41
      %p43 = scmp.eq.s32.totalorder %s42, 0
      %s45 = sadd.s32 %s44, 1
      %s46 = scalar_select %p43, %s44, %s45
      %p49 = pneg %p43
      %p50 = scmp.eq.s32.totalorder %s34, 1
      %p51 = por %p49, %p50
      %p52 = scmp.ne.s32.totalorder %s44, %s47
      %p53 = scmp.eq.s32.totalorder %s34, 0
      %p54 = por %p52, %p53
      %p55 = scmp.ne.s32.totalorder %s44, %s47
      %p56 = scmp.eq.s32.totalorder %s39, 1
      %p57 = por %p55, %p56
      %p58 = scmp.ne.s32.totalorder %s47, %s48
      %p59 = scmp.eq.s32.totalorder %s39, 0
      %p60 = por %p58, %p59
      %p61 = scmp.ne.s32.totalorder %s47, %s48
      %p62 = scmp.eq.s32.totalorder %s40, 1
      %p63 = por %p61, %p62
      %p65 = scmp.ne.s32.totalorder %s48, %s64
      %p66 = scmp.eq.s32.totalorder %s40, 0
      %p67 = por %p65, %p66
      %s68 = ssub.s32 %s34, %s41
      %p69 = scmp.eq.s32.totalorder %s68, 0
      %s71 = sadd.s32 %s70, 1
      %s72 = scalar_select %p69, %s70, %s71
      %p75 = pneg %p69
      %p76 = scmp.eq.s32.totalorder %s34, 1
      %p77 = por %p75, %p76
      %p78 = scmp.ne.s32.totalorder %s70, %s73
      %p79 = scmp.eq.s32.totalorder %s34, 0
      %p80 = por %p78, %p79
      %p81 = scmp.ne.s32.totalorder %s70, %s73
      %p82 = scmp.eq.s32.totalorder %s39, 1
      %p83 = por %p81, %p82
      %p84 = scmp.ne.s32.totalorder %s73, %s74
      %p85 = scmp.eq.s32.totalorder %s39, 0
      %p86 = por %p84, %p85
      %p87 = scmp.ne.s32.totalorder %s73, %s74
      %p88 = scmp.eq.s32.totalorder %s40, 1
      %p89 = por %p87, %p88
      %p91 = scmp.ne.s32.totalorder %s74, %s90
      %p92 = scmp.eq.s32.totalorder %s40, 0
      %p93 = por %p91, %p92
      %s95 = sadd.s32 %s94, 1
      %p98 = scmp.eq.s32.totalorder %s34, 1
      %p99 = scmp.ne.s32.totalorder %s94, %s96
      %p100 = scmp.eq.s32.totalorder %s34, 0
      %p101 = por %p99, %p100
      %p102 = scmp.ne.s32.totalorder %s94, %s96
      %p103 = scmp.eq.s32.totalorder %s39, 1
      %p104 = por %p102, %p103
      %p105 = scmp.ne.s32.totalorder %s96, %s97
      %p106 = scmp.eq.s32.totalorder %s39, 0
      %p107 = por %p105, %p106
      %p108 = scmp.ne.s32.totalorder %s96, %s97
      %p109 = scmp.eq.s32.totalorder %s40, 1
      %p110 = por %p108, %p109
      %p112 = scmp.ne.s32.totalorder %s97, %s111
      %p113 = scmp.eq.s32.totalorder %s40, 0
      %p114 = por %p112, %p113
      %s116 = sadd.s32 %s115, 1
      %p119 = scmp.eq.s32.totalorder %s34, 1
      %p120 = scmp.ne.s32.totalorder %s115, %s117
      %p121 = scmp.eq.s32.totalorder %s34, 0
      %p122 = por %p120, %p121
      %p123 = scmp.ne.s32.totalorder %s115, %s117
      %p124 = scmp.eq.s32.totalorder %s39, 1
      %p125 = por %p123, %p124
      %p126 = scmp.ne.s32.totalorder %s117, %s118
      %p127 = scmp.eq.s32.totalorder %s39, 0
      %p128 = por %p126, %p127
      %p129 = scmp.ne.s32.totalorder %s117, %s118
      %p130 = scmp.eq.s32.totalorder %s40, 1
      %p131 = por %p129, %p130
      %p133 = scmp.ne.s32.totalorder %s118, %s132
      %p134 = scmp.eq.s32.totalorder %s40, 0
      %p135 = por %p133, %p134
      %s137 = sadd.s32 %s136, 1
      %p140 = scmp.eq.s32.totalorder %s34, 1
      %p141 = scmp.ne.s32.totalorder %s136, %s138
      %p142 = scmp.eq.s32.totalorder %s34, 0
      %p143 = por %p141, %p142
      %p144 = scmp.ne.s32.totalorder %s136, %s138
      %p145 = scmp.eq.s32.totalorder %s39, 1
      %p146 = por %p144, %p145
      %p147 = scmp.ne.s32.totalorder %s138, %s139
      %p148 = scmp.eq.s32.totalorder %s39, 0
      %p149 = por %p147, %p148
      %p150 = scmp.ne.s32.totalorder %s138, %s139
      %p151 = scmp.eq.s32.totalorder %s40, 1
      %p152 = por %p150, %p151
      %p154 = scmp.ne.s32.totalorder %s139, %s153
      %p155 = scmp.eq.s32.totalorder %s40, 0
      %p156 = por %p154, %p155
      %s158 = sadd.s32 %s157, 1
      %p161 = scmp.eq.s32.totalorder %s34, 1
      %p162 = scmp.ne.s32.totalorder %s157, %s159
      %p163 = scmp.eq.s32.totalorder %s34, 0
      %p164 = por %p162, %p163
      %p165 = scmp.ne.s32.totalorder %s157, %s159
      %p166 = scmp.eq.s32.totalorder %s39, 1
      %p167 = por %p165, %p166
      %p168 = scmp.ne.s32.totalorder %s159, %s160
      %p169 = scmp.eq.s32.totalorder %s39, 0
      %p170 = por %p168, %p169
      %p171 = scmp.ne.s32.totalorder %s159, %s160
      %p172 = scmp.eq.s32.totalorder %s40, 1
      %p173 = por %p171, %p172
      %p175 = scmp.ne.s32.totalorder %s160, %s174
      %p176 = scmp.eq.s32.totalorder %s40, 0
      %p177 = por %p175, %p176
      %s179 = sadd.s32 %s178, 1
      %p182 = scmp.eq.s32.totalorder %s34, 1
      %p183 = scmp.ne.s32.totalorder %s178, %s180
      %p184 = scmp.eq.s32.totalorder %s34, 0
      %p185 = por %p183, %p184
      %p186 = scmp.ne.s32.totalorder %s178, %s180
      %p187 = scmp.eq.s32.totalorder %s39, 1
      %p188 = por %p186, %p187
      %p189 = scmp.ne.s32.totalorder %s180, %s181
      %p190 = scmp.eq.s32.totalorder %s39, 0
      %p191 = por %p189, %p190
      %p192 = scmp.ne.s32.totalorder %s180, %s181
      %p193 = scmp.eq.s32.totalorder %s40, 1
      %p194 = por %p192, %p193
      %p196 = scmp.ne.s32.totalorder %s181, %s195
      %p197 = scmp.eq.s32.totalorder %s40, 0
      %p198 = por %p196, %p197
      %s200 = sadd.s32 %s199, 1
      %p203 = scmp.eq.s32.totalorder %s34, 1
      %p204 = scmp.ne.s32.totalorder %s199, %s201
      %p205 = scmp.eq.s32.totalorder %s34, 0
      %p206 = por %p204, %p205
      %p207 = scmp.ne.s32.totalorder %s199, %s201
      %p208 = scmp.eq.s32.totalorder %s39, 1
      %p209 = por %p207, %p208
      %p210 = scmp.ne.s32.totalorder %s201, %s202
      %p211 = scmp.eq.s32.totalorder %s39, 0
      %p212 = por %p210, %p211
      %p213 = scmp.ne.s32.totalorder %s201, %s202
      %p214 = scmp.eq.s32.totalorder %s40, 1
      %p215 = por %p213, %p214
      %p217 = scmp.ne.s32.totalorder %s202, %s216
      %p218 = scmp.eq.s32.totalorder %s40, 0
      %p219 = por %p217, %p218
      %s221 = sadd.s32 %s220, 1
      %p224 = scmp.eq.s32.totalorder %s34, 1
      %p225 = scmp.ne.s32.totalorder %s220, %s222
      %p226 = scmp.eq.s32.totalorder %s34, 0
      %p227 = por %p225, %p226
      %p228 = scmp.ne.s32.totalorder %s220, %s222
      %p229 = scmp.eq.s32.totalorder %s39, 1
      %p230 = por %p228, %p229
      %p231 = scmp.ne.s32.totalorder %s222, %s223
      %p232 = scmp.eq.s32.totalorder %s39, 0
      %p233 = por %p231, %p232
      %p234 = scmp.ne.s32.totalorder %s222, %s223
      %p235 = scmp.eq.s32.totalorder %s40, 1
      %p236 = por %p234, %p235
      %p238 = scmp.ne.s32.totalorder %s223, %s237
      %p239 = scmp.eq.s32.totalorder %s40, 0
      %p240 = por %p238, %p239
      %s242 = sadd.s32 %s241, 1
      %p245 = scmp.eq.s32.totalorder %s34, 1
      %p246 = scmp.ne.s32.totalorder %s241, %s243
      %p247 = scmp.eq.s32.totalorder %s34, 0
      %p248 = por %p246, %p247
      %p249 = scmp.ne.s32.totalorder %s241, %s243
      %p250 = scmp.eq.s32.totalorder %s39, 1
      %p251 = por %p249, %p250
      %p252 = scmp.ne.s32.totalorder %s243, %s244
      %p253 = scmp.eq.s32.totalorder %s39, 0
      %p254 = por %p252, %p253
      %p255 = scmp.ne.s32.totalorder %s243, %s244
      %p256 = scmp.eq.s32.totalorder %s40, 1
      %p257 = por %p255, %p256
      %p259 = scmp.ne.s32.totalorder %s244, %s258
      %p260 = scmp.eq.s32.totalorder %s40, 0
      %p261 = por %p259, %p260
      %s263 = sadd.s32 %s262, 1
      %p266 = scmp.eq.s32.totalorder %s34, 1
      %p267 = scmp.ne.s32.totalorder %s262, %s264
      %p268 = scmp.eq.s32.totalorder %s34, 0
      %p269 = por %p267, %p268
      %p270 = scmp.ne.s32.totalorder %s262, %s264
      %p271 = scmp.eq.s32.totalorder %s39, 1
      %p272 = por %p270, %p271
      %p273 = scmp.ne.s32.totalorder %s264, %s265
      %p274 = scmp.eq.s32.totalorder %s39, 0
      %p275 = por %p273, %p274
      %p276 = scmp.ne.s32.totalorder %s264, %s265
      %p277 = scmp.eq.s32.totalorder %s40, 1
      %p278 = por %p276, %p277
      %p280 = scmp.ne.s32.totalorder %s265, %s279
      %p281 = scmp.eq.s32.totalorder %s40, 0
      %p282 = por %p280, %p281
      %s284 = sadd.s32 %s283, 1
      %p287 = scmp.eq.s32.totalorder %s34, 1
      %p288 = scmp.ne.s32.totalorder %s283, %s285
      %p289 = scmp.eq.s32.totalorder %s34, 0
      %p290 = por %p288, %p289
      %p291 = scmp.ne.s32.totalorder %s283, %s285
      %p292 = scmp.eq.s32.totalorder %s39, 1
      %p293 = por %p291, %p292
      %p294 = scmp.ne.s32.totalorder %s285, %s286
      %p295 = scmp.eq.s32.totalorder %s39, 0
      %p296 = por %p294, %p295
      %p297 = scmp.ne.s32.totalorder %s285, %s286
      %p298 = scmp.eq.s32.totalorder %s40, 1
      %p299 = por %p297, %p298
      %p301 = scmp.ne.s32.totalorder %s286, %s300
      %p302 = scmp.eq.s32.totalorder %s40, 0
      %p303 = por %p301, %p302
      %s305 = sadd.s32 %s304, 1
      %p308 = scmp.eq.s32.totalorder %s34, 1
      %p309 = scmp.ne.s32.totalorder %s304, %s306
      %p310 = scmp.eq.s32.totalorder %s34, 0
      %p311 = por %p309, %p310
      %p312 = scmp.ne.s32.totalorder %s304, %s306
      %p313 = scmp.eq.s32.totalorder %s39, 1
      %p314 = por %p312, %p313
      %p315 = scmp.ne.s32.totalorder %s306, %s307
      %p316 = scmp.eq.s32.totalorder %s39, 0
      %p317 = por %p315, %p316
      %p318 = scmp.ne.s32.totalorder %s306, %s307
      %p319 = scmp.eq.s32.totalorder %s40, 1
      %p320 = por %p318, %p319
      %p322 = scmp.ne.s32.totalorder %s307, %s321
      %p323 = scmp.eq.s32.totalorder %s40, 0
      %p324 = por %p322, %p323
      %s326 = sadd.s32 %s325, 1
      %p329 = scmp.eq.s32.totalorder %s34, 1
      %p330 = scmp.ne.s32.totalorder %s325, %s327
      %p331 = scmp.eq.s32.totalorder %s34, 0
      %p332 = por %p330, %p331
      %p333 = scmp.ne.s32.totalorder %s325, %s327
      %p334 = scmp.eq.s32.totalorder %s39, 1
      %p335 = por %p333, %p334
      %p336 = scmp.ne.s32.totalorder %s327, %s328
      %p337 = scmp.eq.s32.totalorder %s39, 0
      %p338 = por %p336, %p337
      %p339 = scmp.ne.s32.totalorder %s327, %s328
      %p340 = scmp.eq.s32.totalorder %s40, 1
      %p341 = por %p339, %p340
      %p343 = scmp.ne.s32.totalorder %s328, %s342
      %p344 = scmp.eq.s32.totalorder %s40, 0
      %p345 = por %p343, %p344
      %s347 = sadd.s32 %s346, 1
      %p350 = scmp.eq.s32.totalorder %s34, 1
      %p351 = scmp.ne.s32.totalorder %s346, %s348
      %p352 = scmp.eq.s32.totalorder %s34, 0
      %p353 = por %p351, %p352
      %p354 = scmp.ne.s32.totalorder %s346, %s348
      %p355 = scmp.eq.s32.totalorder %s39, 1
      %p356 = por %p354, %p355
      %p357 = scmp.ne.s32.totalorder %s348, %s349
      %p358 = scmp.eq.s32.totalorder %s39, 0
      %p359 = por %p357, %p358
      %p360 = scmp.ne.s32.totalorder %s348, %s349
      %p361 = scmp.eq.s32.totalorder %s40, 1
      %p362 = por %p360, %p361
      %p364 = scmp.ne.s32.totalorder %s349, %s363
      %p365 = scmp.eq.s32.totalorder %s40, 0
      %p366 = por %p364, %p365
      %s368 = sadd.s32 %s367, 1
      %p371 = scmp.eq.s32.totalorder %s34, 1
      %p372 = scmp.ne.s32.totalorder %s367, %s369
      %p373 = scmp.eq.s32.totalorder %s34, 0
      %p374 = por %p372, %p373
      %p375 = scmp.ne.s32.totalorder %s367, %s369
      %p376 = scmp.eq.s32.totalorder %s39, 1
      %p377 = por %p375, %p376
      %p378 = scmp.ne.s32.totalorder %s369, %s370
      %p379 = scmp.eq.s32.totalorder %s39, 0
      %p380 = por %p378, %p379
      %p381 = scmp.ne.s32.totalorder %s369, %s370
      %p382 = scmp.eq.s32.totalorder %s40, 1
      %p383 = por %p381, %p382
      %p385 = scmp.ne.s32.totalorder %s370, %s384
      %p386 = scmp.eq.s32.totalorder %s40, 0
      %p387 = por %p385, %p386
      %s389 = sadd.s32 %s388, 1
      %p392 = scmp.eq.s32.totalorder %s34, 1
      %p393 = scmp.ne.s32.totalorder %s388, %s390
      %p394 = scmp.eq.s32.totalorder %s34, 0
      %p395 = por %p393, %p394
      %p396 = scmp.ne.s32.totalorder %s388, %s390
      %p397 = scmp.eq.s32.totalorder %s39, 1
      %p398 = por %p396, %p397
      %p399 = scmp.ne.s32.totalorder %s390, %s391
      %p400 = scmp.eq.s32.totalorder %s39, 0
      %p401 = por %p399, %p400
      %p402 = scmp.ne.s32.totalorder %s390, %s391
      %p403 = scmp.eq.s32.totalorder %s40, 1
      %p404 = por %p402, %p403
      %p406 = scmp.ne.s32.totalorder %s391, %s405
      %p407 = scmp.eq.s32.totalorder %s40, 0
      %p408 = por %p406, %p407
      %s410 = sadd.s32 %s409, 1
      %p413 = scmp.eq.s32.totalorder %s34, 1
      %p414 = scmp.ne.s32.totalorder %s409, %s411
      %p415 = scmp.eq.s32.totalorder %s34, 0
      %p416 = por %p414, %p415
      %p417 = scmp.ne.s32.totalorder %s409, %s411
      %p418 = scmp.eq.s32.totalorder %s39, 1
      %p419 = por %p417, %p418
      %p420 = scmp.ne.s32.totalorder %s411, %s412
      %p421 = scmp.eq.s32.totalorder %s39, 0
      %p422 = por %p420, %p421
      %p423 = scmp.ne.s32.totalorder %s411, %s412
      %p424 = scmp.eq.s32.totalorder %s40, 1
      %p425 = por %p423, %p424
      %p427 = scmp.ne.s32.totalorder %s412, %s426
      %p428 = scmp.eq.s32.totalorder %s40, 0
      %p429 = por %p427, %p428
      %s430 = ssub.s32 %s34, %s41
      %p431 = scmp.eq.s32.totalorder %s430, 0
      %s433 = sadd.s32 %s432, 1
      %s434 = scalar_select %p431, %s432, %s433
      %p437 = pneg %p431
      %p438 = scmp.eq.s32.totalorder %s34, 1
      %p439 = por %p437, %p438
      %p440 = scmp.ne.s32.totalorder %s432, %s435
      %p441 = scmp.eq.s32.totalorder %s34, 0
      %p442 = por %p440, %p441
      %p443 = scmp.ne.s32.totalorder %s432, %s435
      %p444 = scmp.eq.s32.totalorder %s39, 1
      %p445 = por %p443, %p444
      %p446 = scmp.ne.s32.totalorder %s435, %s436
      %p447 = scmp.eq.s32.totalorder %s39, 0
      %p448 = por %p446, %p447
      %p449 = scmp.ne.s32.totalorder %s435, %s436
      %p450 = scmp.eq.s32.totalorder %s40, 1
      %p451 = por %p449, %p450
      %p453 = scmp.ne.s32.totalorder %s436, %s452
      %p454 = scmp.eq.s32.totalorder %s40, 0
      %p455 = por %p453, %p454
      %p456 = scmp.le.s32.totalorder 1, %s34
      %p457 = scmp.lt.s32.totalorder %s34, 3
      %p458 = pnand %p456, %p457
      %p459 = pneg %p458
      // Predicated region
      $region9: #{tpu_custom_call.1} parent=5 // pred_check
        _
      $region10: #{tpu_custom_call.1} parent=5 // pred_check_branch
        %461 = sbr.rel (%p458) target = $region12
      $region11: #{tpu_custom_call.1} parent=5 // pred_region
        %s462 = ssub.s32 %s34, 1
        // Predicated region
        $region13: #{tpu_custom_call.1} parent=11 // pred_check
          %p463 = pneg %p107
        $region14: #{tpu_custom_call.1} parent=11 // pred_check_branch
          %465 = sbr.rel (%p463) target = $region16
        $region15: #{tpu_custom_call.1} parent=11 // pred_region
          %s467 = ssub.s32 16, 16
          %468 = vsyncadd [#allocation6], %s467
          %s470 = sshll.u32 [#allocation7], 4
          %s471 = int_to_ptr.vmem [resolvable:$true] %s470
          %473 = dma.hbm_to_vmem [thread:$0]  %s2, 16, %s471, [#allocation6]
        $region16: #{tpu_custom_call.1} parent=11 // pred_fallthru
          _
        // Predicated region
        $region17: #{tpu_custom_call.1} parent=11 // pred_check
          %p474 = pneg %p128
        $region18: #{tpu_custom_call.1} parent=11 // pred_check_branch
          %476 = sbr.rel (%p474) target = $region20
        $region19: #{tpu_custom_call.1} parent=11 // pred_region
          %s478 = ssub.s32 16, 16
          %479 = vsyncadd [#allocation9], %s478
          %s481 = sshll.u32 [#allocation8], 4
          %s482 = int_to_ptr.vmem [resolvable:$true] %s481
          %484 = dma.hbm_to_vmem [thread:$0]  %s3, 16, %s482, [#allocation9]
        $region20: #{tpu_custom_call.1} parent=11 // pred_fallthru
          _
        // Predicated region
        $region21: #{tpu_custom_call.1} parent=11 // pred_check
          %p485 = pneg %p149
        $region22: #{tpu_custom_call.1} parent=11 // pred_check_branch
          %487 = sbr.rel (%p485) target = $region24
        $region23: #{tpu_custom_call.1} parent=11 // pred_region
          _
        $region24: #{tpu_custom_call.1} parent=11 // pred_fallthru
          _
        // Predicated region
        $region25: #{tpu_custom_call.1} parent=11 // pred_check
          %p488 = pneg %p170
        $region26: #{tpu_custom_call.1} parent=11 // pred_check_branch
          %490 = sbr.rel (%p488) target = $region28
        $region27: #{tpu_custom_call.1} parent=11 // pred_region
          _
        $region28: #{tpu_custom_call.1} parent=11 // pred_fallthru
          _
        // Predicated region
        $region29: #{tpu_custom_call.1} parent=11 // pred_check
          %p491 = pneg %p191
        $region30: #{tpu_custom_call.1} parent=11 // pred_check_branch
          %493 = sbr.rel (%p491) target = $region32
        $region31: #{tpu_custom_call.1} parent=11 // pred_region
          _
        $region32: #{tpu_custom_call.1} parent=11 // pred_fallthru
          _
        // Predicated region
        $region33: #{tpu_custom_call.1} parent=11 // pred_check
          %p494 = pneg %p212
        $region34: #{tpu_custom_call.1} parent=11 // pred_check_branch
          %496 = sbr.rel (%p494) target = $region36
        $region35: #{tpu_custom_call.1} parent=11 // pred_region
          _
        $region36: #{tpu_custom_call.1} parent=11 // pred_fallthru
          _
        // Predicated region
        $region37: #{tpu_custom_call.1} parent=11 // pred_check
          %p497 = pneg %p233
        $region38: #{tpu_custom_call.1} parent=11 // pred_check_branch
          %499 = sbr.rel (%p497) target = $region40
        $region39: #{tpu_custom_call.1} parent=11 // pred_region
          _
        $region40: #{tpu_custom_call.1} parent=11 // pred_fallthru
          _
        // Predicated region
        $region41: #{tpu_custom_call.1} parent=11 // pred_check
          %p500 = pneg %p254
        $region42: #{tpu_custom_call.1} parent=11 // pred_check_branch
          %502 = sbr.rel (%p500) target = $region44
        $region43: #{tpu_custom_call.1} parent=11 // pred_region
          _
        $region44: #{tpu_custom_call.1} parent=11 // pred_fallthru
          _
        // Predicated region
        $region45: #{tpu_custom_call.1} parent=11 // pred_check
          %p503 = pneg %p275
        $region46: #{tpu_custom_call.1} parent=11 // pred_check_branch
          %505 = sbr.rel (%p503) target = $region48
        $region47: #{tpu_custom_call.1} parent=11 // pred_region
          _
        $region48: #{tpu_custom_call.1} parent=11 // pred_fallthru
          _
        // Predicated region
        $region49: #{tpu_custom_call.1} parent=11 // pred_check
          %p506 = pneg %p296
        $region50: #{tpu_custom_call.1} parent=11 // pred_check_branch
          %508 = sbr.rel (%p506) target = $region52
        $region51: #{tpu_custom_call.1} parent=11 // pred_region
          _
        $region52: #{tpu_custom_call.1} parent=11 // pred_fallthru
          _
        // Predicated region
        $region53: #{tpu_custom_call.1} parent=11 // pred_check
          %p509 = pneg %p317
        $region54: #{tpu_custom_call.1} parent=11 // pred_check_branch
          %511 = sbr.rel (%p509) target = $region56
        $region55: #{tpu_custom_call.1} parent=11 // pred_region
          _
        $region56: #{tpu_custom_call.1} parent=11 // pred_fallthru
          _
        // Predicated region
        $region57: #{tpu_custom_call.1} parent=11 // pred_check
          %p512 = pneg %p338
        $region58: #{tpu_custom_call.1} parent=11 // pred_check_branch
          %514 = sbr.rel (%p512) target = $region60
        $region59: #{tpu_custom_call.1} parent=11 // pred_region
          _
        $region60: #{tpu_custom_call.1} parent=11 // pred_fallthru
          _
        // Predicated region
        $region61: #{tpu_custom_call.1} parent=11 // pred_check
          %p515 = pneg %p359
        $region62: #{tpu_custom_call.1} parent=11 // pred_check_branch
          %517 = sbr.rel (%p515) target = $region64
        $region63: #{tpu_custom_call.1} parent=11 // pred_region
          _
        $region64: #{tpu_custom_call.1} parent=11 // pred_fallthru
          _
        // Predicated region
        $region65: #{tpu_custom_call.1} parent=11 // pred_check
          %p518 = pneg %p380
        $region66: #{tpu_custom_call.1} parent=11 // pred_check_branch
          %520 = sbr.rel (%p518) target = $region68
        $region67: #{tpu_custom_call.1} parent=11 // pred_region
          _
        $region68: #{tpu_custom_call.1} parent=11 // pred_fallthru
          _
        // Predicated region
        $region69: #{tpu_custom_call.1} parent=11 // pred_check
          %p521 = pneg %p401
        $region70: #{tpu_custom_call.1} parent=11 // pred_check_branch
          %523 = sbr.rel (%p521) target = $region72
        $region71: #{tpu_custom_call.1} parent=11 // pred_region
          %s525 = ssub.s32 512, 512
          %526 = vsyncadd [#allocation9], %s525
          %s527 = sshll.u32 [#allocation10], 4
          %s528 = int_to_ptr.vmem [resolvable:$true] %s527
          %533 = dma.hbm_to_vmem [thread:$0]  %s16, 512, %s528, [#allocation9], 128, 128, 8
        $region72: #{tpu_custom_call.1} parent=11 // pred_fallthru
          _
        // Predicated region
        $region73: #{tpu_custom_call.1} parent=11 // pred_check
          %p534 = pneg %p422
        $region74: #{tpu_custom_call.1} parent=11 // pred_check_branch
          %536 = sbr.rel (%p534) target = $region76
        $region75: #{tpu_custom_call.1} parent=11 // pred_region
          _
        $region76: #{tpu_custom_call.1} parent=11 // pred_fallthru
          _
      $region12: #{tpu_custom_call.1} parent=5 // pred_fallthru
        _
      %p537 = scmp.lt.s32.totalorder %s34, 2
      // Predicated region
      $region77: #{tpu_custom_call.1} parent=5 // pred_check
        %p538 = pneg %p537
      $region78: #{tpu_custom_call.1} parent=5 // pred_check_branch
        %540 = sbr.rel (%p538) target = $region80
      $region79: #{tpu_custom_call.1} parent=5 // pred_region
        // Predicated region
        $region81: #{tpu_custom_call.1} parent=79 // pred_check
          %p541 = pneg %p54
        $region82: #{tpu_custom_call.1} parent=79 // pred_check_branch
          %543 = sbr.rel (%p541) target = $region84
        $region83: #{tpu_custom_call.1} parent=79 // pred_region
          %s544 = sand.u32 %s44, 1
          %s545 = scalar_lea.sflag [#allocation3], %s544
          %s546 = sand.u32 %s44, 1
          %s547 = smul.addr %s546, 8
          %s548 = scalar_lea.vmem [#allocation2], %s547
          %s550 = ssub.s32 128, 128
          %551 = vsyncadd %s545, %s550
          %s552 = smul.addr %s34, 128
          %s553 = scalar_lea.hbm %s0, %s552
          %s555 = sshll.u32 %s548, 4
          %s556 = int_to_ptr.vmem [resolvable:$true] %s555
          %558 = dma.hbm_to_vmem [thread:$0]  %s553, 128, %s556, %s545
        $region84: #{tpu_custom_call.1} parent=79 // pred_fallthru
          _
        // Predicated region
        $region85: #{tpu_custom_call.1} parent=79 // pred_check
          %p559 = pneg %p80
        $region86: #{tpu_custom_call.1} parent=79 // pred_check_branch
          %561 = sbr.rel (%p559) target = $region88
        $region87: #{tpu_custom_call.1} parent=79 // pred_region
          %s562 = sand.u32 %s34, 1
          %s563 = scalar_lea.sflag [#allocation6], %s562
          %s564 = sand.u32 %s70, 1
          %s565 = smul.addr %s564, 8
          %s566 = scalar_lea.vmem [#allocation5], %s565
          %s568 = ssub.s32 128, 128
          %569 = vsyncadd %s563, %s568
          %s570 = smul.addr %s34, 128
          %s571 = scalar_lea.hbm %s1, %s570
          %s573 = sshll.u32 %s566, 4
          %s574 = int_to_ptr.vmem [resolvable:$true] %s573
          %576 = dma.hbm_to_vmem [thread:$0]  %s571, 128, %s574, %s563
        $region88: #{tpu_custom_call.1} parent=79 // pred_fallthru
          _
      $region80: #{tpu_custom_call.1} parent=5 // pred_fallthru
        _
      %p577 = scmp.le.s32.totalorder 1, %s34
      %p578 = scmp.lt.s32.totalorder %s34, 3
      %p579 = pnand %p577, %p578
      %p580 = pneg %p579
      // Predicated region
      $region89: #{tpu_custom_call.1} parent=5 // pred_check
        _
      $region90: #{tpu_custom_call.1} parent=5 // pred_check_branch
        %582 = sbr.rel (%p579) target = $region92
      $region91: #{tpu_custom_call.1} parent=5 // pred_region
        %s583 = ssub.s32 %s34, 1
        %s584 = sand.u32 %s47, 1
        %s585 = scalar_lea.sflag [#allocation3], %s584
        %s586 = sand.u32 %s47, 1
        %s587 = smul.addr %s586, 8
        %s588 = scalar_lea.vmem [#allocation2], %s587
        // Predicated region
        $region93: #{tpu_custom_call.1} parent=91 // pred_check
          %p589 = pneg %p60
        $region94: #{tpu_custom_call.1} parent=91 // pred_check_branch
          %591 = sbr.rel (%p589) target = $region96
        $region95: #{tpu_custom_call.1} parent=91 // pred_region
          %592 = dma.done %s585, 128
        $region96: #{tpu_custom_call.1} parent=91 // pred_fallthru
          _
        %s593 = sand.u32 %s39, 1
        %s594 = scalar_lea.sflag [#allocation6], %s593
        %s595 = sand.u32 %s73, 1
        %s596 = smul.addr %s595, 8
        %s597 = scalar_lea.vmem [#allocation5], %s596
        // Predicated region
        $region97: #{tpu_custom_call.1} parent=91 // pred_check
          %p598 = pneg %p86
        $region98: #{tpu_custom_call.1} parent=91 // pred_check_branch
          %600 = sbr.rel (%p598) target = $region100
        $region99: #{tpu_custom_call.1} parent=91 // pred_region
          %601 = dma.done %s594, 128
        $region100: #{tpu_custom_call.1} parent=91 // pred_fallthru
          _
        // Predicated region
        $region101: #{tpu_custom_call.1} parent=91 // pred_check
          %p602 = pneg %p107
        $region102: #{tpu_custom_call.1} parent=91 // pred_check_branch
          %604 = sbr.rel (%p602) target = $region104
        $region103: #{tpu_custom_call.1} parent=91 // pred_region
          %605 = dma.done [#allocation6], 16
        $region104: #{tpu_custom_call.1} parent=91 // pred_fallthru
          _
        // Predicated region
        $region105: #{tpu_custom_call.1} parent=91 // pred_check
          %p606 = pneg %p128
        $region106: #{tpu_custom_call.1} parent=91 // pred_check_branch
          %608 = sbr.rel (%p606) target = $region108
        $region107: #{tpu_custom_call.1} parent=91 // pred_region
          %609 = dma.done [#allocation9], 16
        $region108: #{tpu_custom_call.1} parent=91 // pred_fallthru
          _
        // Predicated region
        $region109: #{tpu_custom_call.1} parent=91 // pred_check
          %p610 = pneg %p401
        $region110: #{tpu_custom_call.1} parent=91 // pred_check_branch
          %612 = sbr.rel (%p610) target = $region112
        $region111: #{tpu_custom_call.1} parent=91 // pred_region
          %613 = dma.done [#allocation9], 512
        $region112: #{tpu_custom_call.1} parent=91 // pred_fallthru
          _
        %s614 = sand.u32 %s47, 1
        %s615 = scalar_lea.sflag [#allocation3], %s614
        %s616 = sand.u32 %s47, 1
        %s617 = smul.addr %s616, 8
        %s618 = scalar_lea.vmem [#allocation2], %s617
        %p619 = pneg %p60
        %p620 = pneg %p57
        %s621 = sand.u32 %s39, 1
        %s622 = scalar_lea.sflag [#allocation6], %s621
        %s623 = sand.u32 %s73, 1
        %s624 = smul.addr %s623, 8
        %s625 = scalar_lea.vmem [#allocation5], %s624
        %p626 = pneg %p86
        %p627 = pneg %p83
        %p628 = pneg %p107
        %p629 = pneg %p104
        %p630 = pneg %p128
        %p631 = pneg %p125
        %p632 = pneg %p149
        %p633 = pneg %p146
        %p634 = pneg %p170
        %p635 = pneg %p167
        %p636 = pneg %p191
        %p637 = pneg %p188
        %p638 = pneg %p212
        %p639 = pneg %p209
        %p640 = pneg %p233
        %p641 = pneg %p230
        %p642 = pneg %p254
        %p643 = pneg %p251
        %p644 = pneg %p275
        %p645 = pneg %p272
        %p646 = pneg %p296
        %p647 = pneg %p293
        %p648 = pneg %p317
        %p649 = pneg %p314
        %p650 = pneg %p338
        %p651 = pneg %p335
        %p652 = pneg %p359
        %p653 = pneg %p356
        %p654 = pneg %p380
        %p655 = pneg %p377
        %p656 = pneg %p401
        %p657 = pneg %p398
        %p658 = pneg %p422
        %p659 = pneg %p419
        %p660 = pneg %p448
        %p661 = pneg %p445
        %s662 = sand.u32 %s435, 1
        %s663 = scalar_lea.sflag [#allocation4], %s662
        %s664 = sand.u32 %s435, 1
        %s665 = scalar_lea.vmem [#allocation11], %s664
        %v666 = vld [vmem:[%s588] sm:$0xff]
        %v667 = vld [vmem:[#allocation7] sm:$0x1]
        %v668 = vld [vmem:[#allocation8] sm:$0x1]
        %vm669 = vcmask 261120
        %v670 = vsel %vm669, %v666, 0.0
        %671 = vadd.xlane.f32.xlu0 %v670
        %v672 = vpop.xlane.xlu0 %671
        %v673 = vrcp.pop 32.0
        %v674 = vmul.f32 %v672, %v673
        %v675 = vsub.f32 %v666, %v674
        %v676 = vmul.f32 %v675, %v675
        %v677 = vsel %vm669, %v676, 0.0
        %678 = vadd.xlane.f32.xlu0 %v677
        %v679 = vpop.xlane.xlu0 %678
        %v680 = vmul.f32 %v679, %v673
        %v681 = vadd.f32 %v680, 1e-12
        %v682 = vrsqrt.pop %v681
        %v683 = vmul.f32 %v675, %v682
        %v685 = vlaneseq
        %v686 = vshrl.u32 %v685, 7
        %v687 = vsub.s32 0, %v686
        %v688 = vrot.slane %v667, %v687
        %v690 = vmul.f32 %v683, %v688
        %v692 = vlaneseq
        %v693 = vshrl.u32 %v692, 7
        %v694 = vsub.s32 0, %v693
        %v695 = vrot.slane %v668, %v694
        %v697 = vadd.f32 %v690, %v695
        %v698 = vld [vmem:[%s597] sm:$0xff]
        %v699 = vld [vmem:[%s4] sm:$0xff]
        %v700 = vld [vmem:[%s4 + $0x8] sm:$0xff]
        %v701 = vld [vmem:[%s4 + $0x10] sm:$0xff]
        %v702 = vld [vmem:[%s4 + $0x18] sm:$0xff]
        %v703 = vld [vmem:[%s5] sm:$0x1]
        %v705 = vlaneseq
        %v706 = vshrl.u32 %v705, 7
        %v707 = vsub.s32 0, %v706
        %v708 = vrot.slane %v703, %v707
        %v711 = vsel %vm669, %v697, 0
        %713 = vmatprep.subr.mxu0 0.0
        %714 = vmatpush1.msra.mxu0 0.0
        %715 = vmatprep.subr.mxu0 0.0
        %716 = vmatpush1.msra.mxu0 0.0
        %717 = vmatprep.subr.mxu0 0.0
        %718 = vmatpush1.msra.mxu0 0.0
        %719 = vmatprep.subr.mxu0 0.0
        %720 = vmatpush1.msra.mxu0 0.0
        %721 = vmatprep.subr.mxu0 0.0
        %722 = vmatpush1.msra.mxu0 0.0
        %723 = vmatprep.subr.mxu0 0.0
        %724 = vmatpush1.msra.mxu0 0.0
        %725 = vmatprep.subr.mxu0 0.0
        %726 = vmatpush1.msra.mxu0 0.0
        %727 = vmatprep.subr.mxu0 0.0
        %728 = vmatpush1.msra.mxu0 0.0
        %729 = vmatprep.subr.mxu0 0.0
        %730 = vmatpush1.msra.mxu0 0.0
        %731 = vmatprep.subr.mxu0 0.0
        %732 = vmatpush1.msra.mxu0 0.0
        %733 = vmatprep.subr.mxu0 0.0
        %734 = vmatpush1.msra.mxu0 0.0
        %735 = vmatprep.subr.mxu0 0.0
        %736 = vmatpush1.msra.mxu0 0.0
        %737 = vmatprep.subr.mxu0 0.0
        %738 = vmatpush1.msra.mxu0 %v702
        %739 = vmatprep.subr.mxu0 0.0
        %740 = vmatpush1.msra.mxu0 %v701
        %741 = vmatprep.subr.mxu0 0.0
        %742 = vmatpush1.msra.mxu0 %v700
        %743 = vmatprep.subr.mxu0 0.0
        %744 = vmatpush1.msra.mxu0 %v699
        %745 = vmatprep.subr.mxu0 0.0
        %746 = vmatpush2.msra.mxu0 0.0
        %747 = vmatprep.subr.mxu0 0.0
        %748 = vmatpush2.msra.mxu0 0.0
        %749 = vmatprep.subr.mxu0 0.0
        %750 = vmatpush2.msra.mxu0 0.0
        %751 = vmatprep.subr.mxu0 0.0
        %752 = vmatpush2.msra.mxu0 0.0
        %753 = vmatprep.subr.mxu0 0.0
        %754 = vmatpush2.msra.mxu0 0.0
        %755 = vmatprep.subr.mxu0 0.0
        %756 = vmatpush2.msra.mxu0 0.0
        %757 = vmatprep.subr.mxu0 0.0
        %758 = vmatpush2.msra.mxu0 0.0
        %759 = vmatprep.subr.mxu0 0.0
        %760 = vmatpush2.msra.mxu0 0.0
        %761 = vmatprep.subr.mxu0 0.0
        %762 = vmatpush2.msra.mxu0 0.0
        %763 = vmatprep.subr.mxu0 0.0
        %764 = vmatpush2.msra.mxu0 0.0
        %765 = vmatprep.subr.mxu0 0.0
        %766 = vmatpush2.msra.mxu0 0.0
        %767 = vmatprep.subr.mxu0 0.0
        %768 = vmatpush2.msra.mxu0 0.0
        %769 = vmatprep.subr.mxu0 0.0
        %770 = vmatpush2.msra.mxu0 0.0
        %771 = vmatprep.subr.mxu0 0.0
        %772 = vmatpush2.msra.mxu0 0.0
        %773 = vmatprep.subr.mxu0 0.0
        %774 = vmatpush2.msra.mxu0 0.0
        %775 = vmatprep.subr.mxu0 0.0
        %776 = vmatpush2.msra.mxu0 0.0
        %777 = vmatprep.mubr.f32.mxu0 0.0
        %778 = vmatmul.mubr.f32.gmra.mxu0 %v711
        %v779 = vpop.f32.mrf.mxu0
        %v780 = vadd.f32 %v708, %v779
        %v781 = vpop.f32.mrf.mxu0
        %782 = vdwg.mxu0
        %v783 = vld [vmem:[%s6] sm:$0xff]
        %v784 = vld [vmem:[%s6 + $0x8] sm:$0xff]
        %v785 = vld [vmem:[%s6 + $0x10] sm:$0xff]
        %v786 = vld [vmem:[%s6 + $0x18] sm:$0xff]
        %788 = vrot.lane.b32.xlu0 %v780, 96
        %v789 = vpop.permute.xlu0 %788
        %vm790 = vcmask 64512
        %v791 = vsel %vm790, %v780, 0
        %v793 = vsel %vm790, %v789, 0
        %795 = vmatprep.subr.mxu0 0.0
        %796 = vmatpush1.xpose.msra.mxu0 0.0
        %797 = vmatprep.subr.mxu0 0.0
        %798 = vmatpush1.xpose.msra.mxu0 0.0
        %799 = vmatprep.subr.mxu0 0.0
        %800 = vmatpush1.xpose.msra.mxu0 0.0
        %801 = vmatprep.subr.mxu0 0.0
        %802 = vmatpush1.xpose.msra.mxu0 0.0
        %803 = vmatprep.subr.mxu0 0.0
        %804 = vmatpush1.xpose.msra.mxu0 0.0
        %805 = vmatprep.subr.mxu0 0.0
        %806 = vmatpush1.xpose.msra.mxu0 0.0
        %807 = vmatprep.subr.mxu0 0.0
        %808 = vmatpush1.xpose.msra.mxu0 0.0
        %809 = vmatprep.subr.mxu0 0.0
        %810 = vmatpush1.xpose.msra.mxu0 0.0
        %811 = vmatprep.subr.mxu0 0.0
        %812 = vmatpush1.xpose.msra.mxu0 0.0
        %813 = vmatprep.subr.mxu0 0.0
        %814 = vmatpush1.xpose.msra.mxu0 0.0
        %815 = vmatprep.subr.mxu0 0.0
        %816 = vmatpush1.xpose.msra.mxu0 0.0
        %817 = vmatprep.subr.mxu0 0.0
        %818 = vmatpush1.xpose.msra.mxu0 0.0
        %819 = vmatprep.subr.mxu0 0.0
        %820 = vmatpush1.xpose.msra.mxu0 0.0
        %821 = vmatprep.subr.mxu0 0.0
        %822 = vmatpush1.xpose.msra.mxu0 0.0
        %823 = vmatprep.subr.mxu0 0.0
        %824 = vmatpush1.xpose.msra.mxu0 0.0
        %825 = vmatprep.subr.mxu0 0.0
        %826 = vmatpush1.xpose.msra.mxu0 %v793
        %827 = vmatprep.subr.mxu0 0.0
        %828 = vmatpush2.xpose.msra.mxu0 0.0
        %829 = vmatprep.subr.mxu0 0.0
        %830 = vmatpush2.xpose.msra.mxu0 0.0
        %831 = vmatprep.subr.mxu0 0.0
        %832 = vmatpush2.xpose.msra.mxu0 0.0
        %833 = vmatprep.subr.mxu0 0.0
        %834 = vmatpush2.xpose.msra.mxu0 0.0
        %835 = vmatprep.subr.mxu0 0.0
        %836 = vmatpush2.xpose.msra.mxu0 0.0
        %837 = vmatprep.subr.mxu0 0.0
        %838 = vmatpush2.xpose.msra.mxu0 0.0
        %839 = vmatprep.subr.mxu0 0.0
        %840 = vmatpush2.xpose.msra.mxu0 0.0
        %841 = vmatprep.subr.mxu0 0.0
        %842 = vmatpush2.xpose.msra.mxu0 0.0
        %843 = vmatprep.subr.mxu0 0.0
        %844 = vmatpush2.xpose.msra.mxu0 0.0
        %845 = vmatprep.subr.mxu0 0.0
        %846 = vmatpush2.xpose.msra.mxu0 0.0
        %847 = vmatprep.subr.mxu0 0.0
        %848 = vmatpush2.xpose.msra.mxu0 0.0
        %849 = vmatprep.subr.mxu0 0.0
        %850 = vmatpush2.xpose.msra.mxu0 0.0
        %851 = vmatprep.subr.mxu0 0.0
        %852 = vmatpush2.xpose.msra.mxu0 0.0
        %853 = vmatprep.subr.mxu0 0.0
        %854 = vmatpush2.xpose.msra.mxu0 0.0
        %855 = vmatprep.subr.mxu0 0.0
        %856 = vmatpush2.xpose.msra.mxu0 0.0
        %857 = vmatprep.subr.mxu0 0.0
        %858 = vmatpush2.xpose.msra.mxu0 0.0
        %859 = vmatprep.mubr.f32.mxu0 0.0
        %860 = vmatmul.mubr.f32.gmra.mxu0 %v791
        %v861 = vpop.f32.mrf.mxu0
        %v862 = vadd.f32 0.0, %v861
        %v863 = vpop.f32.mrf.mxu0
        %864 = vdwg.mxu0
        %v865 = vmul.f32 %v862, 0.35355338
        %v866 = vadd.f32 %v865, %v698
        %v867 = vsel %vm790, %v866, -inf
        %868 = vmax.xlane.f32.xlu0 %v867
        %v869 = vpop.xlane.xlu0 %868
        %v870 = vsub.f32 %v866, %v869
        %v871 = vmul.f32 %v870, 1.442695
        %v872 = vpow.pop %v871
        %v873 = vsel %vm790, %v872, 0.0
        %874 = vadd.xlane.f32.xlu0 %v873
        %v875 = vpop.xlane.xlu0 %874
        %v876 = vrcp.pop %v875
        %v877 = vmul.f32 %v872, %v876
        %878 = vrot.lane.b32.xlu0 %v780, 64
        %v879 = vpop.permute.xlu0 %878
        %v882 = vsel %vm790, %v877, 0
        %884 = vmatprep.subr.mxu0 0.0
        %885 = vmatpush1.msra.mxu0 0.0
        %886 = vmatprep.subr.mxu0 0.0
        %887 = vmatpush1.msra.mxu0 0.0
        %888 = vmatprep.subr.mxu0 0.0
        %889 = vmatpush1.msra.mxu0 0.0
        %890 = vmatprep.subr.mxu0 0.0
        %891 = vmatpush1.msra.mxu0 0.0
        %892 = vmatprep.subr.mxu0 0.0
        %893 = vmatpush1.msra.mxu0 0.0
        %894 = vmatprep.subr.mxu0 0.0
        %895 = vmatpush1.msra.mxu0 0.0
        %896 = vmatprep.subr.mxu0 0.0
        %897 = vmatpush1.msra.mxu0 0.0
        %898 = vmatprep.subr.mxu0 0.0
        %899 = vmatpush1.msra.mxu0 0.0
        %900 = vmatprep.subr.mxu0 0.0
        %901 = vmatpush1.msra.mxu0 0.0
        %902 = vmatprep.subr.mxu0 0.0
        %903 = vmatpush1.msra.mxu0 0.0
        %904 = vmatprep.subr.mxu0 0.0
        %905 = vmatpush1.msra.mxu0 0.0
        %906 = vmatprep.subr.mxu0 0.0
        %907 = vmatpush1.msra.mxu0 0.0
        %908 = vmatprep.subr.mxu0 0.0
        %909 = vmatpush1.msra.mxu0 0.0
        %910 = vmatprep.subr.mxu0 0.0
        %911 = vmatpush1.msra.mxu0 0.0
        %912 = vmatprep.subr.mxu0 0.0
        %913 = vmatpush1.msra.mxu0 0.0
        %914 = vmatprep.subr.mxu0 0.0
        %915 = vmatpush1.msra.mxu0 %v879
        %916 = vmatprep.subr.mxu0 0.0
        %917 = vmatpush2.msra.mxu0 0.0
        %918 = vmatprep.subr.mxu0 0.0
        %919 = vmatpush2.msra.mxu0 0.0
        %920 = vmatprep.subr.mxu0 0.0
        %921 = vmatpush2.msra.mxu0 0.0
        %922 = vmatprep.subr.mxu0 0.0
        %923 = vmatpush2.msra.mxu0 0.0
        %924 = vmatprep.subr.mxu0 0.0
        %925 = vmatpush2.msra.mxu0 0.0
        %926 = vmatprep.subr.mxu0 0.0
        %927 = vmatpush2.msra.mxu0 0.0
        %928 = vmatprep.subr.mxu0 0.0
        %929 = vmatpush2.msra.mxu0 0.0
        %930 = vmatprep.subr.mxu0 0.0
        %931 = vmatpush2.msra.mxu0 0.0
        %932 = vmatprep.subr.mxu0 0.0
        %933 = vmatpush2.msra.mxu0 0.0
        %934 = vmatprep.subr.mxu0 0.0
        %935 = vmatpush2.msra.mxu0 0.0
        %936 = vmatprep.subr.mxu0 0.0
        %937 = vmatpush2.msra.mxu0 0.0
        %938 = vmatprep.subr.mxu0 0.0
        %939 = vmatpush2.msra.mxu0 0.0
        %940 = vmatprep.subr.mxu0 0.0
        %941 = vmatpush2.msra.mxu0 0.0
        %942 = vmatprep.subr.mxu0 0.0
        %943 = vmatpush2.msra.mxu0 0.0
        %944 = vmatprep.subr.mxu0 0.0
        %945 = vmatpush2.msra.mxu0 0.0
        %946 = vmatprep.subr.mxu0 0.0
        %947 = vmatpush2.msra.mxu0 0.0
        %948 = vmatprep.mubr.f32.mxu0 0.0
        %949 = vmatmul.mubr.f32.gmra.mxu0 %v882
        %v950 = vpop.f32.mrf.mxu0
        %v951 = vadd.f32 0.0, %v950
        %v952 = vpop.f32.mrf.mxu0
        %953 = vdwg.mxu0
        %954 = vrot.lane.b32.xlu0 %v780, 120
        %v955 = vpop.permute.xlu0 %954
        %956 = vrot.lane.b32.xlu0 %v780, 88
        %v957 = vpop.permute.xlu0 %956
        %v958 = vsel %vm790, %v955, 0
        %v960 = vsel %vm790, %v957, 0
        %962 = vmatprep.subr.mxu0 0.0
        %963 = vmatpush1.xpose.msra.mxu0 0.0
        %964 = vmatprep.subr.mxu0 0.0
        %965 = vmatpush1.xpose.msra.mxu0 0.0
        %966 = vmatprep.subr.mxu0 0.0
        %967 = vmatpush1.xpose.msra.mxu0 0.0
        %968 = vmatprep.subr.mxu0 0.0
        %969 = vmatpush1.xpose.msra.mxu0 0.0
        %970 = vmatprep.subr.mxu0 0.0
        %971 = vmatpush1.xpose.msra.mxu0 0.0
        %972 = vmatprep.subr.mxu0 0.0
        %973 = vmatpush1.xpose.msra.mxu0 0.0
        %974 = vmatprep.subr.mxu0 0.0
        %975 = vmatpush1.xpose.msra.mxu0 0.0
        %976 = vmatprep.subr.mxu0 0.0
        %977 = vmatpush1.xpose.msra.mxu0 0.0
        %978 = vmatprep.subr.mxu0 0.0
        %979 = vmatpush1.xpose.msra.mxu0 0.0
        %980 = vmatprep.subr.mxu0 0.0
        %981 = vmatpush1.xpose.msra.mxu0 0.0
        %982 = vmatprep.subr.mxu0 0.0
        %983 = vmatpush1.xpose.msra.mxu0 0.0
        %984 = vmatprep.subr.mxu0 0.0
        %985 = vmatpush1.xpose.msra.mxu0 0.0
        %986 = vmatprep.subr.mxu0 0.0
        %987 = vmatpush1.xpose.msra.mxu0 0.0
        %988 = vmatprep.subr.mxu0 0.0
        %989 = vmatpush1.xpose.msra.mxu0 0.0
        %990 = vmatprep.subr.mxu0 0.0
        %991 = vmatpush1.xpose.msra.mxu0 0.0
        %992 = vmatprep.subr.mxu0 0.0
        %993 = vmatpush1.xpose.msra.mxu0 %v960
        %994 = vmatprep.subr.mxu0 0.0
        %995 = vmatpush2.xpose.msra.mxu0 0.0
        %996 = vmatprep.subr.mxu0 0.0
        %997 = vmatpush2.xpose.msra.mxu0 0.0
        %998 = vmatprep.subr.mxu0 0.0
        %999 = vmatpush2.xpose.msra.mxu0 0.0
        %1000 = vmatprep.subr.mxu0 0.0
        %1001 = vmatpush2.xpose.msra.mxu0 0.0
        %1002 = vmatprep.subr.mxu0 0.0
        %1003 = vmatpush2.xpose.msra.mxu0 0.0
        %1004 = vmatprep.subr.mxu0 0.0
        %1005 = vmatpush2.xpose.msra.mxu0 0.0
        %1006 = vmatprep.subr.mxu0 0.0
        %1007 = vmatpush2.xpose.msra.mxu0 0.0
        %1008 = vmatprep.subr.mxu0 0.0
        %1009 = vmatpush2.xpose.msra.mxu0 0.0
        %1010 = vmatprep.subr.mxu0 0.0
        %1011 = vmatpush2.xpose.msra.mxu0 0.0
        %1012 = vmatprep.subr.mxu0 0.0
        %1013 = vmatpush2.xpose.msra.mxu0 0.0
        %1014 = vmatprep.subr.mxu0 0.0
        %1015 = vmatpush2.xpose.msra.mxu0 0.0
        %1016 = vmatprep.subr.mxu0 0.0
        %1017 = vmatpush2.xpose.msra.mxu0 0.0
        %1018 = vmatprep.subr.mxu0 0.0
        %1019 = vmatpush2.xpose.msra.mxu0 0.0
        %1020 = vmatprep.subr.mxu0 0.0
        %1021 = vmatpush2.xpose.msra.mxu0 0.0
        %1022 = vmatprep.subr.mxu0 0.0
        %1023 = vmatpush2.xpose.msra.mxu0 0.0
        %1024 = vmatprep.subr.mxu0 0.0
        %1025 = vmatpush2.xpose.msra.mxu0 0.0
        %1026 = vmatprep.mubr.f32.mxu0 0.0
        %1027 = vmatmul.mubr.f32.gmra.mxu0 %v958
        %v1028 = vpop.f32.mrf.mxu0
        %v1029 = vadd.f32 0.0, %v1028
        %v1030 = vpop.f32.mrf.mxu0
        %1031 = vdwg.mxu0
        %v1032 = vmul.f32 %v1029, 0.35355338
        %v1033 = vadd.f32 %v1032, %v698
        %v1034 = vsel %vm790, %v1033, -inf
        %1035 = vmax.xlane.f32.xlu0 %v1034
        %v1036 = vpop.xlane.xlu0 %1035
        %v1037 = vsub.f32 %v1033, %v1036
        %v1038 = vmul.f32 %v1037, 1.442695
        %v1039 = vpow.pop %v1038
        %v1040 = vsel %vm790, %v1039, 0.0
        %1041 = vadd.xlane.f32.xlu0 %v1040
        %v1042 = vpop.xlane.xlu0 %1041
        %v1043 = vrcp.pop %v1042
        %v1044 = vmul.f32 %v1039, %v1043
        %1045 = vrot.lane.b32.xlu0 %v780, 56
        %v1046 = vpop.permute.xlu0 %1045
        %v1049 = vsel %vm790, %v1044, 0
        %1051 = vmatprep.subr.mxu0 0.0
        %1052 = vmatpush1.msra.mxu0 0.0
        %1053 = vmatprep.subr.mxu0 0.0
        %1054 = vmatpush1.msra.mxu0 0.0
        %1055 = vmatprep.subr.mxu0 0.0
        %1056 = vmatpush1.msra.mxu0 0.0
        %1057 = vmatprep.subr.mxu0 0.0
        %1058 = vmatpush1.msra.mxu0 0.0
        %1059 = vmatprep.subr.mxu0 0.0
        %1060 = vmatpush1.msra.mxu0 0.0
        %1061 = vmatprep.subr.mxu0 0.0
        %1062 = vmatpush1.msra.mxu0 0.0
        %1063 = vmatprep.subr.mxu0 0.0
        %1064 = vmatpush1.msra.mxu0 0.0
        %1065 = vmatprep.subr.mxu0 0.0
        %1066 = vmatpush1.msra.mxu0 0.0
        %1067 = vmatprep.subr.mxu0 0.0
        %1068 = vmatpush1.msra.mxu0 0.0
        %1069 = vmatprep.subr.mxu0 0.0
        %1070 = vmatpush1.msra.mxu0 0.0
        %1071 = vmatprep.subr.mxu0 0.0
        %1072 = vmatpush1.msra.mxu0 0.0
        %1073 = vmatprep.subr.mxu0 0.0
        %1074 = vmatpush1.msra.mxu0 0.0
        %1075 = vmatprep.subr.mxu0 0.0
        %1076 = vmatpush1.msra.mxu0 0.0
        %1077 = vmatprep.subr.mxu0 0.0
        %1078 = vmatpush1.msra.mxu0 0.0
        %1079 = vmatprep.subr.mxu0 0.0
        %1080 = vmatpush1.msra.mxu0 0.0
        %1081 = vmatprep.subr.mxu0 0.0
        %1082 = vmatpush1.msra.mxu0 %v1046
        %1083 = vmatprep.subr.mxu0 0.0
        %1084 = vmatpush2.msra.mxu0 0.0
        %1085 = vmatprep.subr.mxu0 0.0
        %1086 = vmatpush2.msra.mxu0 0.0
        %1087 = vmatprep.subr.mxu0 0.0
        %1088 = vmatpush2.msra.mxu0 0.0
        %1089 = vmatprep.subr.mxu0 0.0
        %1090 = vmatpush2.msra.mxu0 0.0
        %1091 = vmatprep.subr.mxu0 0.0
        %1092 = vmatpush2.msra.mxu0 0.0
        %1093 = vmatprep.subr.mxu0 0.0
        %1094 = vmatpush2.msra.mxu0 0.0
        %1095 = vmatprep.subr.mxu0 0.0
        %1096 = vmatpush2.msra.mxu0 0.0
        %1097 = vmatprep.subr.mxu0 0.0
        %1098 = vmatpush2.msra.mxu0 0.0
        %1099 = vmatprep.subr.mxu0 0.0
        %1100 = vmatpush2.msra.mxu0 0.0
        %1101 = vmatprep.subr.mxu0 0.0
        %1102 = vmatpush2.msra.mxu0 0.0
        %1103 = vmatprep.subr.mxu0 0.0
        %1104 = vmatpush2.msra.mxu0 0.0
        %1105 = vmatprep.subr.mxu0 0.0
        %1106 = vmatpush2.msra.mxu0 0.0
        %1107 = vmatprep.subr.mxu0 0.0
        %1108 = vmatpush2.msra.mxu0 0.0
        %1109 = vmatprep.subr.mxu0 0.0
        %1110 = vmatpush2.msra.mxu0 0.0
        %1111 = vmatprep.subr.mxu0 0.0
        %1112 = vmatpush2.msra.mxu0 0.0
        %1113 = vmatprep.subr.mxu0 0.0
        %1114 = vmatpush2.msra.mxu0 0.0
        %1115 = vmatprep.mubr.f32.mxu0 0.0
        %1116 = vmatmul.mubr.f32.gmra.mxu0 %v1049
        %v1117 = vpop.f32.mrf.mxu0
        %v1118 = vadd.f32 0.0, %v1117
        %v1119 = vpop.f32.mrf.mxu0
        %1120 = vdwg.mxu0
        %v1122 = vsel %vm790, %v1118, 0
        %1124 = vmatprep.subr.mxu0 0.0
        %1125 = vmatpush1.msra.mxu0 0.0
        %1126 = vmatprep.subr.mxu0 0.0
        %1127 = vmatpush1.msra.mxu0 0.0
        %1128 = vmatprep.subr.mxu0 0.0
        %1129 = vmatpush1.msra.mxu0 0.0
        %1130 = vmatprep.subr.mxu0 0.0
        %1131 = vmatpush1.msra.mxu0 0.0
        %1132 = vmatprep.subr.mxu0 0.0
        %1133 = vmatpush1.msra.mxu0 0.0
        %1134 = vmatprep.subr.mxu0 0.0
        %1135 = vmatpush1.msra.mxu0 0.0
        %1136 = vmatprep.subr.mxu0 0.0
        %1137 = vmatpush1.msra.mxu0 0.0
        %1138 = vmatprep.subr.mxu0 0.0
        %1139 = vmatpush1.msra.mxu0 0.0
        %1140 = vmatprep.subr.mxu0 0.0
        %1141 = vmatpush1.msra.mxu0 0.0
        %1142 = vmatprep.subr.mxu0 0.0
        %1143 = vmatpush1.msra.mxu0 0.0
        %1144 = vmatprep.subr.mxu0 0.0
        %1145 = vmatpush1.msra.mxu0 0.0
        %1146 = vmatprep.subr.mxu0 0.0
        %1147 = vmatpush1.msra.mxu0 0.0
        %1148 = vmatprep.subr.mxu0 0.0
        %1149 = vmatpush1.msra.mxu0 0.0
        %1150 = vmatprep.subr.mxu0 0.0
        %1151 = vmatpush1.msra.mxu0 0.0
        %1152 = vmatprep.subr.mxu0 0.0
        %1153 = vmatpush1.msra.mxu0 0.0
        %1154 = vmatprep.subr.mxu0 0.0
        %1155 = vmatpush1.msra.mxu0 %v784
        %1156 = vmatprep.subr.mxu0 0.0
        %1157 = vmatpush2.msra.mxu0 0.0
        %1158 = vmatprep.subr.mxu0 0.0
        %1159 = vmatpush2.msra.mxu0 0.0
        %1160 = vmatprep.subr.mxu0 0.0
        %1161 = vmatpush2.msra.mxu0 0.0
        %1162 = vmatprep.subr.mxu0 0.0
        %1163 = vmatpush2.msra.mxu0 0.0
        %1164 = vmatprep.subr.mxu0 0.0
        %1165 = vmatpush2.msra.mxu0 0.0
        %1166 = vmatprep.subr.mxu0 0.0
        %1167 = vmatpush2.msra.mxu0 0.0
        %1168 = vmatprep.subr.mxu0 0.0
        %1169 = vmatpush2.msra.mxu0 0.0
        %1170 = vmatprep.subr.mxu0 0.0
        %1171 = vmatpush2.msra.mxu0 0.0
        %1172 = vmatprep.subr.mxu0 0.0
        %1173 = vmatpush2.msra.mxu0 0.0
        %1174 = vmatprep.subr.mxu0 0.0
        %1175 = vmatpush2.msra.mxu0 0.0
        %1176 = vmatprep.subr.mxu0 0.0
        %1177 = vmatpush2.msra.mxu0 0.0
        %1178 = vmatprep.subr.mxu0 0.0
        %1179 = vmatpush2.msra.mxu0 0.0
        %1180 = vmatprep.subr.mxu0 0.0
        %1181 = vmatpush2.msra.mxu0 0.0
        %1182 = vmatprep.subr.mxu0 0.0
        %1183 = vmatpush2.msra.mxu0 0.0
        %1184 = vmatprep.subr.mxu0 0.0
        %1185 = vmatpush2.msra.mxu0 0.0
        %1186 = vmatprep.subr.mxu0 0.0
        %1187 = vmatpush2.msra.mxu0 0.0
        %1188 = vmatprep.mubr.f32.mxu0 0.0
        %1189 = vmatmul.mubr.f32.gmra.mxu0 %v1122
        %v1190 = vpop.f32.mrf.mxu0
        %v1191 = vadd.f32 0.0, %v1190
        %v1192 = vpop.f32.mrf.mxu0
        %1193 = vdwg.mxu0
        %v1195 = vsel %vm790, %v951, 0
        %1197 = vmatprep.subr.mxu0 0.0
        %1198 = vmatpush1.msra.mxu0 0.0
        %1199 = vmatprep.subr.mxu0 0.0
        %1200 = vmatpush1.msra.mxu0 0.0
        %1201 = vmatprep.subr.mxu0 0.0
        %1202 = vmatpush1.msra.mxu0 0.0
        %1203 = vmatprep.subr.mxu0 0.0
        %1204 = vmatpush1.msra.mxu0 0.0
        %1205 = vmatprep.subr.mxu0 0.0
        %1206 = vmatpush1.msra.mxu0 0.0
        %1207 = vmatprep.subr.mxu0 0.0
        %1208 = vmatpush1.msra.mxu0 0.0
        %1209 = vmatprep.subr.mxu0 0.0
        %1210 = vmatpush1.msra.mxu0 0.0
        %1211 = vmatprep.subr.mxu0 0.0
        %1212 = vmatpush1.msra.mxu0 0.0
        %1213 = vmatprep.subr.mxu0 0.0
        %1214 = vmatpush1.msra.mxu0 0.0
        %1215 = vmatprep.subr.mxu0 0.0
        %1216 = vmatpush1.msra.mxu0 0.0
        %1217 = vmatprep.subr.mxu0 0.0
        %1218 = vmatpush1.msra.mxu0 0.0
        %1219 = vmatprep.subr.mxu0 0.0
        %1220 = vmatpush1.msra.mxu0 0.0
        %1221 = vmatprep.subr.mxu0 0.0
        %1222 = vmatpush1.msra.mxu0 0.0
        %1223 = vmatprep.subr.mxu0 0.0
        %1224 = vmatpush1.msra.mxu0 0.0
        %1225 = vmatprep.subr.mxu0 0.0
        %1226 = vmatpush1.msra.mxu0 0.0
        %1227 = vmatprep.subr.mxu0 0.0
        %1228 = vmatpush1.msra.mxu0 %v783
        %1229 = vmatprep.subr.mxu0 0.0
        %1230 = vmatpush2.msra.mxu0 0.0
        %1231 = vmatprep.subr.mxu0 0.0
        %1232 = vmatpush2.msra.mxu0 0.0
        %1233 = vmatprep.subr.mxu0 0.0
        %1234 = vmatpush2.msra.mxu0 0.0
        %1235 = vmatprep.subr.mxu0 0.0
        %1236 = vmatpush2.msra.mxu0 0.0
        %1237 = vmatprep.subr.mxu0 0.0
        %1238 = vmatpush2.msra.mxu0 0.0
        %1239 = vmatprep.subr.mxu0 0.0
        %1240 = vmatpush2.msra.mxu0 0.0
        %1241 = vmatprep.subr.mxu0 0.0
        %1242 = vmatpush2.msra.mxu0 0.0
        %1243 = vmatprep.subr.mxu0 0.0
        %1244 = vmatpush2.msra.mxu0 0.0
        %1245 = vmatprep.subr.mxu0 0.0
        %1246 = vmatpush2.msra.mxu0 0.0
        %1247 = vmatprep.subr.mxu0 0.0
        %1248 = vmatpush2.msra.mxu0 0.0
        %1249 = vmatprep.subr.mxu0 0.0
        %1250 = vmatpush2.msra.mxu0 0.0
        %1251 = vmatprep.subr.mxu0 0.0
        %1252 = vmatpush2.msra.mxu0 0.0
        %1253 = vmatprep.subr.mxu0 0.0
        %1254 = vmatpush2.msra.mxu0 0.0
        %1255 = vmatprep.subr.mxu0 0.0
        %1256 = vmatpush2.msra.mxu0 0.0
        %1257 = vmatprep.subr.mxu0 0.0
        %1258 = vmatpush2.msra.mxu0 0.0
        %1259 = vmatprep.subr.mxu0 0.0
        %1260 = vmatpush2.msra.mxu0 0.0
        %1261 = vmatprep.mubr.f32.mxu0 0.0
        %1262 = vmatmul.mubr.f32.gmra.mxu0 %v1195
        %v1263 = vpop.f32.mrf.mxu0
        %v1264 = vadd.f32 %v1191, %v1263
        %v1265 = vpop.f32.mrf.mxu0
        %1266 = vdwg.mxu0
        %1267 = vrot.lane.b32.xlu0 %v780, 112
        %v1268 = vpop.permute.xlu0 %1267
        %1269 = vrot.lane.b32.xlu0 %v780, 80
        %v1270 = vpop.permute.xlu0 %1269
        %v1271 = vsel %vm790, %v1268, 0
        %v1273 = vsel %vm790, %v1270, 0
        %1275 = vmatprep.subr.mxu0 0.0
        %1276 = vmatpush1.xpose.msra.mxu0 0.0
        %1277 = vmatprep.subr.mxu0 0.0
        %1278 = vmatpush1.xpose.msra.mxu0 0.0
        %1279 = vmatprep.subr.mxu0 0.0
        %1280 = vmatpush1.xpose.msra.mxu0 0.0
        %1281 = vmatprep.subr.mxu0 0.0
        %1282 = vmatpush1.xpose.msra.mxu0 0.0
        %1283 = vmatprep.subr.mxu0 0.0
        %1284 = vmatpush1.xpose.msra.mxu0 0.0
        %1285 = vmatprep.subr.mxu0 0.0
        %1286 = vmatpush1.xpose.msra.mxu0 0.0
        %1287 = vmatprep.subr.mxu0 0.0
        %1288 = vmatpush1.xpose.msra.mxu0 0.0
        %1289 = vmatprep.subr.mxu0 0.0
        %1290 = vmatpush1.xpose.msra.mxu0 0.0
        %1291 = vmatprep.subr.mxu0 0.0
        %1292 = vmatpush1.xpose.msra.mxu0 0.0
        %1293 = vmatprep.subr.mxu0 0.0
        %1294 = vmatpush1.xpose.msra.mxu0 0.0
        %1295 = vmatprep.subr.mxu0 0.0
        %1296 = vmatpush1.xpose.msra.mxu0 0.0
        %1297 = vmatprep.subr.mxu0 0.0
        %1298 = vmatpush1.xpose.msra.mxu0 0.0
        %1299 = vmatprep.subr.mxu0 0.0
        %1300 = vmatpush1.xpose.msra.mxu0 0.0
        %1301 = vmatprep.subr.mxu0 0.0
        %1302 = vmatpush1.xpose.msra.mxu0 0.0
        %1303 = vmatprep.subr.mxu0 0.0
        %1304 = vmatpush1.xpose.msra.mxu0 0.0
        %1305 = vmatprep.subr.mxu0 0.0
        %1306 = vmatpush1.xpose.msra.mxu0 %v1273
        %1307 = vmatprep.subr.mxu0 0.0
        %1308 = vmatpush2.xpose.msra.mxu0 0.0
        %1309 = vmatprep.subr.mxu0 0.0
        %1310 = vmatpush2.xpose.msra.mxu0 0.0
        %1311 = vmatprep.subr.mxu0 0.0
        %1312 = vmatpush2.xpose.msra.mxu0 0.0
        %1313 = vmatprep.subr.mxu0 0.0
        %1314 = vmatpush2.xpose.msra.mxu0 0.0
        %1315 = vmatprep.subr.mxu0 0.0
        %1316 = vmatpush2.xpose.msra.mxu0 0.0
        %1317 = vmatprep.subr.mxu0 0.0
        %1318 = vmatpush2.xpose.msra.mxu0 0.0
        %1319 = vmatprep.subr.mxu0 0.0
        %1320 = vmatpush2.xpose.msra.mxu0 0.0
        %1321 = vmatprep.subr.mxu0 0.0
        %1322 = vmatpush2.xpose.msra.mxu0 0.0
        %1323 = vmatprep.subr.mxu0 0.0
        %1324 = vmatpush2.xpose.msra.mxu0 0.0
        %1325 = vmatprep.subr.mxu0 0.0
        %1326 = vmatpush2.xpose.msra.mxu0 0.0
        %1327 = vmatprep.subr.mxu0 0.0
        %1328 = vmatpush2.xpose.msra.mxu0 0.0
        %1329 = vmatprep.subr.mxu0 0.0
        %1330 = vmatpush2.xpose.msra.mxu0 0.0
        %1331 = vmatprep.subr.mxu0 0.0
        %1332 = vmatpush2.xpose.msra.mxu0 0.0
        %1333 = vmatprep.subr.mxu0 0.0
        %1334 = vmatpush2.xpose.msra.mxu0 0.0
        %1335 = vmatprep.subr.mxu0 0.0
        %1336 = vmatpush2.xpose.msra.mxu0 0.0
        %1337 = vmatprep.subr.mxu0 0.0
        %1338 = vmatpush2.xpose.msra.mxu0 0.0
        %1339 = vmatprep.mubr.f32.mxu0 0.0
        %1340 = vmatmul.mubr.f32.gmra.mxu0 %v1271
        %v1341 = vpop.f32.mrf.mxu0
        %v1342 = vadd.f32 0.0, %v1341
        %v1343 = vpop.f32.mrf.mxu0
        %1344 = vdwg.mxu0
        %v1345 = vmul.f32 %v1342, 0.35355338
        %v1346 = vadd.f32 %v1345, %v698
        %v1347 = vsel %vm790, %v1346, -inf
        %1348 = vmax.xlane.f32.xlu0 %v1347
        %v1349 = vpop.xlane.xlu0 %1348
        %v1350 = vsub.f32 %v1346, %v1349
        %v1351 = vmul.f32 %v1350, 1.442695
        %v1352 = vpow.pop %v1351
        %v1353 = vsel %vm790, %v1352, 0.0
        %1354 = vadd.xlane.f32.xlu0 %v1353
        %v1355 = vpop.xlane.xlu0 %1354
        %v1356 = vrcp.pop %v1355
        %v1357 = vmul.f32 %v1352, %v1356
        %1358 = vrot.lane.b32.xlu0 %v780, 48
        %v1359 = vpop.permute.xlu0 %1358
        %v1362 = vsel %vm790, %v1357, 0
        %1364 = vmatprep.subr.mxu0 0.0
        %1365 = vmatpush1.msra.mxu0 0.0
        %1366 = vmatprep.subr.mxu0 0.0
        %1367 = vmatpush1.msra.mxu0 0.0
        %1368 = vmatprep.subr.mxu0 0.0
        %1369 = vmatpush1.msra.mxu0 0.0
        %1370 = vmatprep.subr.mxu0 0.0
        %1371 = vmatpush1.msra.mxu0 0.0
        %1372 = vmatprep.subr.mxu0 0.0
        %1373 = vmatpush1.msra.mxu0 0.0
        %1374 = vmatprep.subr.mxu0 0.0
        %1375 = vmatpush1.msra.mxu0 0.0
        %1376 = vmatprep.subr.mxu0 0.0
        %1377 = vmatpush1.msra.mxu0 0.0
        %1378 = vmatprep.subr.mxu0 0.0
        %1379 = vmatpush1.msra.mxu0 0.0
        %1380 = vmatprep.subr.mxu0 0.0
        %1381 = vmatpush1.msra.mxu0 0.0
        %1382 = vmatprep.subr.mxu0 0.0
        %1383 = vmatpush1.msra.mxu0 0.0
        %1384 = vmatprep.subr.mxu0 0.0
        %1385 = vmatpush1.msra.mxu0 0.0
        %1386 = vmatprep.subr.mxu0 0.0
        %1387 = vmatpush1.msra.mxu0 0.0
        %1388 = vmatprep.subr.mxu0 0.0
        %1389 = vmatpush1.msra.mxu0 0.0
        %1390 = vmatprep.subr.mxu0 0.0
        %1391 = vmatpush1.msra.mxu0 0.0
        %1392 = vmatprep.subr.mxu0 0.0
        %1393 = vmatpush1.msra.mxu0 0.0
        %1394 = vmatprep.subr.mxu0 0.0
        %1395 = vmatpush1.msra.mxu0 %v1359
        %1396 = vmatprep.subr.mxu0 0.0
        %1397 = vmatpush2.msra.mxu0 0.0
        %1398 = vmatprep.subr.mxu0 0.0
        %1399 = vmatpush2.msra.mxu0 0.0
        %1400 = vmatprep.subr.mxu0 0.0
        %1401 = vmatpush2.msra.mxu0 0.0
        %1402 = vmatprep.subr.mxu0 0.0
        %1403 = vmatpush2.msra.mxu0 0.0
        %1404 = vmatprep.subr.mxu0 0.0
        %1405 = vmatpush2.msra.mxu0 0.0
        %1406 = vmatprep.subr.mxu0 0.0
        %1407 = vmatpush2.msra.mxu0 0.0
        %1408 = vmatprep.subr.mxu0 0.0
        %1409 = vmatpush2.msra.mxu0 0.0
        %1410 = vmatprep.subr.mxu0 0.0
        %1411 = vmatpush2.msra.mxu0 0.0
        %1412 = vmatprep.subr.mxu0 0.0
        %1413 = vmatpush2.msra.mxu0 0.0
        %1414 = vmatprep.subr.mxu0 0.0
        %1415 = vmatpush2.msra.mxu0 0.0
        %1416 = vmatprep.subr.mxu0 0.0
        %1417 = vmatpush2.msra.mxu0 0.0
        %1418 = vmatprep.subr.mxu0 0.0
        %1419 = vmatpush2.msra.mxu0 0.0
        %1420 = vmatprep.subr.mxu0 0.0
        %1421 = vmatpush2.msra.mxu0 0.0
        %1422 = vmatprep.subr.mxu0 0.0
        %1423 = vmatpush2.msra.mxu0 0.0
        %1424 = vmatprep.subr.mxu0 0.0
        %1425 = vmatpush2.msra.mxu0 0.0
        %1426 = vmatprep.subr.mxu0 0.0
        %1427 = vmatpush2.msra.mxu0 0.0
        %1428 = vmatprep.mubr.f32.mxu0 0.0
        %1429 = vmatmul.mubr.f32.gmra.mxu0 %v1362
        %v1430 = vpop.f32.mrf.mxu0
        %v1431 = vadd.f32 0.0, %v1430
        %v1432 = vpop.f32.mrf.mxu0
        %1433 = vdwg.mxu0
        %v1435 = vsel %vm790, %v1431, 0
        %1437 = vmatprep.subr.mxu0 0.0
        %1438 = vmatpush1.msra.mxu0 0.0
        %1439 = vmatprep.subr.mxu0 0.0
        %1440 = vmatpush1.msra.mxu0 0.0
        %1441 = vmatprep.subr.mxu0 0.0
        %1442 = vmatpush1.msra.mxu0 0.0
        %1443 = vmatprep.subr.mxu0 0.0
        %1444 = vmatpush1.msra.mxu0 0.0
        %1445 = vmatprep.subr.mxu0 0.0
        %1446 = vmatpush1.msra.mxu0 0.0
        %1447 = vmatprep.subr.mxu0 0.0
        %1448 = vmatpush1.msra.mxu0 0.0
        %1449 = vmatprep.subr.mxu0 0.0
        %1450 = vmatpush1.msra.mxu0 0.0
        %1451 = vmatprep.subr.mxu0 0.0
        %1452 = vmatpush1.msra.mxu0 0.0
        %1453 = vmatprep.subr.mxu0 0.0
        %1454 = vmatpush1.msra.mxu0 0.0
        %1455 = vmatprep.subr.mxu0 0.0
        %1456 = vmatpush1.msra.mxu0 0.0
        %1457 = vmatprep.subr.mxu0 0.0
        %1458 = vmatpush1.msra.mxu0 0.0
        %1459 = vmatprep.subr.mxu0 0.0
        %1460 = vmatpush1.msra.mxu0 0.0
        %1461 = vmatprep.subr.mxu0 0.0
        %1462 = vmatpush1.msra.mxu0 0.0
        %1463 = vmatprep.subr.mxu0 0.0
        %1464 = vmatpush1.msra.mxu0 0.0
        %1465 = vmatprep.subr.mxu0 0.0
        %1466 = vmatpush1.msra.mxu0 0.0
        %1467 = vmatprep.subr.mxu0 0.0
        %1468 = vmatpush1.msra.mxu0 %v785
        %1469 = vmatprep.subr.mxu0 0.0
        %1470 = vmatpush2.msra.mxu0 0.0
        %1471 = vmatprep.subr.mxu0 0.0
        %1472 = vmatpush2.msra.mxu0 0.0
        %1473 = vmatprep.subr.mxu0 0.0
        %1474 = vmatpush2.msra.mxu0 0.0
        %1475 = vmatprep.subr.mxu0 0.0
        %1476 = vmatpush2.msra.mxu0 0.0
        %1477 = vmatprep.subr.mxu0 0.0
        %1478 = vmatpush2.msra.mxu0 0.0
        %1479 = vmatprep.subr.mxu0 0.0
        %1480 = vmatpush2.msra.mxu0 0.0
        %1481 = vmatprep.subr.mxu0 0.0
        %1482 = vmatpush2.msra.mxu0 0.0
        %1483 = vmatprep.subr.mxu0 0.0
        %1484 = vmatpush2.msra.mxu0 0.0
        %1485 = vmatprep.subr.mxu0 0.0
        %1486 = vmatpush2.msra.mxu0 0.0
        %1487 = vmatprep.subr.mxu0 0.0
        %1488 = vmatpush2.msra.mxu0 0.0
        %1489 = vmatprep.subr.mxu0 0.0
        %1490 = vmatpush2.msra.mxu0 0.0
        %1491 = vmatprep.subr.mxu0 0.0
        %1492 = vmatpush2.msra.mxu0 0.0
        %1493 = vmatprep.subr.mxu0 0.0
        %1494 = vmatpush2.msra.mxu0 0.0
        %1495 = vmatprep.subr.mxu0 0.0
        %1496 = vmatpush2.msra.mxu0 0.0
        %1497 = vmatprep.subr.mxu0 0.0
        %1498 = vmatpush2.msra.mxu0 0.0
        %1499 = vmatprep.subr.mxu0 0.0
        %1500 = vmatpush2.msra.mxu0 0.0
        %1501 = vmatprep.mubr.f32.mxu0 0.0
        %1502 = vmatmul.mubr.f32.gmra.mxu0 %v1435
        %v1503 = vpop.f32.mrf.mxu0
        %v1504 = vadd.f32 0.0, %v1503
        %v1505 = vpop.f32.mrf.mxu0
        %1506 = vdwg.mxu0
        %v1507 = vadd.f32 %v1264, %v1504
        %1508 = vrot.lane.b32.xlu0 %v780, 104
        %v1509 = vpop.permute.xlu0 %1508
        %1510 = vrot.lane.b32.xlu0 %v780, 72
        %v1511 = vpop.permute.xlu0 %1510
        %v1512 = vsel %vm790, %v1509, 0
        %v1514 = vsel %vm790, %v1511, 0
        %1516 = vmatprep.subr.mxu0 0.0
        %1517 = vmatpush1.xpose.msra.mxu0 0.0
        %1518 = vmatprep.subr.mxu0 0.0
        %1519 = vmatpush1.xpose.msra.mxu0 0.0
        %1520 = vmatprep.subr.mxu0 0.0
        %1521 = vmatpush1.xpose.msra.mxu0 0.0
        %1522 = vmatprep.subr.mxu0 0.0
        %1523 = vmatpush1.xpose.msra.mxu0 0.0
        %1524 = vmatprep.subr.mxu0 0.0
        %1525 = vmatpush1.xpose.msra.mxu0 0.0
        %1526 = vmatprep.subr.mxu0 0.0
        %1527 = vmatpush1.xpose.msra.mxu0 0.0
        %1528 = vmatprep.subr.mxu0 0.0
        %1529 = vmatpush1.xpose.msra.mxu0 0.0
        %1530 = vmatprep.subr.mxu0 0.0
        %1531 = vmatpush1.xpose.msra.mxu0 0.0
        %1532 = vmatprep.subr.mxu0 0.0
        %1533 = vmatpush1.xpose.msra.mxu0 0.0
        %1534 = vmatprep.subr.mxu0 0.0
        %1535 = vmatpush1.xpose.msra.mxu0 0.0
        %1536 = vmatprep.subr.mxu0 0.0
        %1537 = vmatpush1.xpose.msra.mxu0 0.0
        %1538 = vmatprep.subr.mxu0 0.0
        %1539 = vmatpush1.xpose.msra.mxu0 0.0
        %1540 = vmatprep.subr.mxu0 0.0
        %1541 = vmatpush1.xpose.msra.mxu0 0.0
        %1542 = vmatprep.subr.mxu0 0.0
        %1543 = vmatpush1.xpose.msra.mxu0 0.0
        %1544 = vmatprep.subr.mxu0 0.0
        %1545 = vmatpush1.xpose.msra.mxu0 0.0
        %1546 = vmatprep.subr.mxu0 0.0
        %1547 = vmatpush1.xpose.msra.mxu0 %v1514
        %1548 = vmatprep.subr.mxu0 0.0
        %1549 = vmatpush2.xpose.msra.mxu0 0.0
        %1550 = vmatprep.subr.mxu0 0.0
        %1551 = vmatpush2.xpose.msra.mxu0 0.0
        %1552 = vmatprep.subr.mxu0 0.0
        %1553 = vmatpush2.xpose.msra.mxu0 0.0
        %1554 = vmatprep.subr.mxu0 0.0
        %1555 = vmatpush2.xpose.msra.mxu0 0.0
        %1556 = vmatprep.subr.mxu0 0.0
        %1557 = vmatpush2.xpose.msra.mxu0 0.0
        %1558 = vmatprep.subr.mxu0 0.0
        %1559 = vmatpush2.xpose.msra.mxu0 0.0
        %1560 = vmatprep.subr.mxu0 0.0
        %1561 = vmatpush2.xpose.msra.mxu0 0.0
        %1562 = vmatprep.subr.mxu0 0.0
        %1563 = vmatpush2.xpose.msra.mxu0 0.0
        %1564 = vmatprep.subr.mxu0 0.0
        %1565 = vmatpush2.xpose.msra.mxu0 0.0
        %1566 = vmatprep.subr.mxu0 0.0
        %1567 = vmatpush2.xpose.msra.mxu0 0.0
        %1568 = vmatprep.subr.mxu0 0.0
        %1569 = vmatpush2.xpose.msra.mxu0 0.0
        %1570 = vmatprep.subr.mxu0 0.0
        %1571 = vmatpush2.xpose.msra.mxu0 0.0
        %1572 = vmatprep.subr.mxu0 0.0
        %1573 = vmatpush2.xpose.msra.mxu0 0.0
        %1574 = vmatprep.subr.mxu0 0.0
        %1575 = vmatpush2.xpose.msra.mxu0 0.0
        %1576 = vmatprep.subr.mxu0 0.0
        %1577 = vmatpush2.xpose.msra.mxu0 0.0
        %1578 = vmatprep.subr.mxu0 0.0
        %1579 = vmatpush2.xpose.msra.mxu0 0.0
        %1580 = vmatprep.mubr.f32.mxu0 0.0
        %1581 = vmatmul.mubr.f32.gmra.mxu0 %v1512
        %v1582 = vpop.f32.mrf.mxu0
        %v1583 = vadd.f32 0.0, %v1582
        %v1584 = vpop.f32.mrf.mxu0
        %1585 = vdwg.mxu0
        %v1586 = vmul.f32 %v1583, 0.35355338
        %v1587 = vadd.f32 %v1586, %v698
        %v1588 = vsel %vm790, %v1587, -inf
        %1589 = vmax.xlane.f32.xlu0 %v1588
        %v1590 = vpop.xlane.xlu0 %1589
        %v1591 = vsub.f32 %v1587, %v1590
        %v1592 = vmul.f32 %v1591, 1.442695
        %v1593 = vpow.pop %v1592
        %v1594 = vsel %vm790, %v1593, 0.0
        %1595 = vadd.xlane.f32.xlu0 %v1594
        %v1596 = vpop.xlane.xlu0 %1595
        %v1597 = vrcp.pop %v1596
        %v1598 = vmul.f32 %v1593, %v1597
        %1599 = vrot.lane.b32.xlu0 %v780, 40
        %v1600 = vpop.permute.xlu0 %1599
        %v1603 = vsel %vm790, %v1598, 0
        %1605 = vmatprep.subr.mxu0 0.0
        %1606 = vmatpush1.msra.mxu0 0.0
        %1607 = vmatprep.subr.mxu0 0.0
        %1608 = vmatpush1.msra.mxu0 0.0
        %1609 = vmatprep.subr.mxu0 0.0
        %1610 = vmatpush1.msra.mxu0 0.0
        %1611 = vmatprep.subr.mxu0 0.0
        %1612 = vmatpush1.msra.mxu0 0.0
        %1613 = vmatprep.subr.mxu0 0.0
        %1614 = vmatpush1.msra.mxu0 0.0
        %1615 = vmatprep.subr.mxu0 0.0
        %1616 = vmatpush1.msra.mxu0 0.0
        %1617 = vmatprep.subr.mxu0 0.0
        %1618 = vmatpush1.msra.mxu0 0.0
        %1619 = vmatprep.subr.mxu0 0.0
        %1620 = vmatpush1.msra.mxu0 0.0
        %1621 = vmatprep.subr.mxu0 0.0
        %1622 = vmatpush1.msra.mxu0 0.0
        %1623 = vmatprep.subr.mxu0 0.0
        %1624 = vmatpush1.msra.mxu0 0.0
        %1625 = vmatprep.subr.mxu0 0.0
        %1626 = vmatpush1.msra.mxu0 0.0
        %1627 = vmatprep.subr.mxu0 0.0
        %1628 = vmatpush1.msra.mxu0 0.0
        %1629 = vmatprep.subr.mxu0 0.0
        %1630 = vmatpush1.msra.mxu0 0.0
        %1631 = vmatprep.subr.mxu0 0.0
        %1632 = vmatpush1.msra.mxu0 0.0
        %1633 = vmatprep.subr.mxu0 0.0
        %1634 = vmatpush1.msra.mxu0 0.0
        %1635 = vmatprep.subr.mxu0 0.0
        %1636 = vmatpush1.msra.mxu0 %v1600
        %1637 = vmatprep.subr.mxu0 0.0
        %1638 = vmatpush2.msra.mxu0 0.0
        %1639 = vmatprep.subr.mxu0 0.0
        %1640 = vmatpush2.msra.mxu0 0.0
        %1641 = vmatprep.subr.mxu0 0.0
        %1642 = vmatpush2.msra.mxu0 0.0
        %1643 = vmatprep.subr.mxu0 0.0
        %1644 = vmatpush2.msra.mxu0 0.0
        %1645 = vmatprep.subr.mxu0 0.0
        %1646 = vmatpush2.msra.mxu0 0.0
        %1647 = vmatprep.subr.mxu0 0.0
        %1648 = vmatpush2.msra.mxu0 0.0
        %1649 = vmatprep.subr.mxu0 0.0
        %1650 = vmatpush2.msra.mxu0 0.0
        %1651 = vmatprep.subr.mxu0 0.0
        %1652 = vmatpush2.msra.mxu0 0.0
        %1653 = vmatprep.subr.mxu0 0.0
        %1654 = vmatpush2.msra.mxu0 0.0
        %1655 = vmatprep.subr.mxu0 0.0
        %1656 = vmatpush2.msra.mxu0 0.0
        %1657 = vmatprep.subr.mxu0 0.0
        %1658 = vmatpush2.msra.mxu0 0.0
        %1659 = vmatprep.subr.mxu0 0.0
        %1660 = vmatpush2.msra.mxu0 0.0
        %1661 = vmatprep.subr.mxu0 0.0
        %1662 = vmatpush2.msra.mxu0 0.0
        %1663 = vmatprep.subr.mxu0 0.0
        %1664 = vmatpush2.msra.mxu0 0.0
        %1665 = vmatprep.subr.mxu0 0.0
        %1666 = vmatpush2.msra.mxu0 0.0
        %1667 = vmatprep.subr.mxu0 0.0
        %1668 = vmatpush2.msra.mxu0 0.0
        %1669 = vmatprep.mubr.f32.mxu0 0.0
        %1670 = vmatmul.mubr.f32.gmra.mxu0 %v1603
        %v1671 = vpop.f32.mrf.mxu0
        %v1672 = vadd.f32 0.0, %v1671
        %v1673 = vpop.f32.mrf.mxu0
        %1674 = vdwg.mxu0
        %v1676 = vsel %vm790, %v1672, 0
        %1678 = vmatprep.subr.mxu0 0.0
        %1679 = vmatpush1.msra.mxu0 0.0
        %1680 = vmatprep.subr.mxu0 0.0
        %1681 = vmatpush1.msra.mxu0 0.0
        %1682 = vmatprep.subr.mxu0 0.0
        %1683 = vmatpush1.msra.mxu0 0.0
        %1684 = vmatprep.subr.mxu0 0.0
        %1685 = vmatpush1.msra.mxu0 0.0
        %1686 = vmatprep.subr.mxu0 0.0
        %1687 = vmatpush1.msra.mxu0 0.0
        %1688 = vmatprep.subr.mxu0 0.0
        %1689 = vmatpush1.msra.mxu0 0.0
        %1690 = vmatprep.subr.mxu0 0.0
        %1691 = vmatpush1.msra.mxu0 0.0
        %1692 = vmatprep.subr.mxu0 0.0
        %1693 = vmatpush1.msra.mxu0 0.0
        %1694 = vmatprep.subr.mxu0 0.0
        %1695 = vmatpush1.msra.mxu0 0.0
        %1696 = vmatprep.subr.mxu0 0.0
        %1697 = vmatpush1.msra.mxu0 0.0
        %1698 = vmatprep.subr.mxu0 0.0
        %1699 = vmatpush1.msra.mxu0 0.0
        %1700 = vmatprep.subr.mxu0 0.0
        %1701 = vmatpush1.msra.mxu0 0.0
        %1702 = vmatprep.subr.mxu0 0.0
        %1703 = vmatpush1.msra.mxu0 0.0
        %1704 = vmatprep.subr.mxu0 0.0
        %1705 = vmatpush1.msra.mxu0 0.0
        %1706 = vmatprep.subr.mxu0 0.0
        %1707 = vmatpush1.msra.mxu0 0.0
        %1708 = vmatprep.subr.mxu0 0.0
        %1709 = vmatpush1.msra.mxu0 %v786
        %1710 = vmatprep.subr.mxu0 0.0
        %1711 = vmatpush2.msra.mxu0 0.0
        %1712 = vmatprep.subr.mxu0 0.0
        %1713 = vmatpush2.msra.mxu0 0.0
        %1714 = vmatprep.subr.mxu0 0.0
        %1715 = vmatpush2.msra.mxu0 0.0
        %1716 = vmatprep.subr.mxu0 0.0
        %1717 = vmatpush2.msra.mxu0 0.0
        %1718 = vmatprep.subr.mxu0 0.0
        %1719 = vmatpush2.msra.mxu0 0.0
        %1720 = vmatprep.subr.mxu0 0.0
        %1721 = vmatpush2.msra.mxu0 0.0
        %1722 = vmatprep.subr.mxu0 0.0
        %1723 = vmatpush2.msra.mxu0 0.0
        %1724 = vmatprep.subr.mxu0 0.0
        %1725 = vmatpush2.msra.mxu0 0.0
        %1726 = vmatprep.subr.mxu0 0.0
        %1727 = vmatpush2.msra.mxu0 0.0
        %1728 = vmatprep.subr.mxu0 0.0
        %1729 = vmatpush2.msra.mxu0 0.0
        %1730 = vmatprep.subr.mxu0 0.0
        %1731 = vmatpush2.msra.mxu0 0.0
        %1732 = vmatprep.subr.mxu0 0.0
        %1733 = vmatpush2.msra.mxu0 0.0
        %1734 = vmatprep.subr.mxu0 0.0
        %1735 = vmatpush2.msra.mxu0 0.0
        %1736 = vmatprep.subr.mxu0 0.0
        %1737 = vmatpush2.msra.mxu0 0.0
        %1738 = vmatprep.subr.mxu0 0.0
        %1739 = vmatpush2.msra.mxu0 0.0
        %1740 = vmatprep.subr.mxu0 0.0
        %1741 = vmatpush2.msra.mxu0 0.0
        %1742 = vmatprep.mubr.f32.mxu0 0.0
        %1743 = vmatmul.mubr.f32.gmra.mxu0 %v1676
        %v1744 = vpop.f32.mrf.mxu0
        %v1745 = vadd.f32 0.0, %v1744
        %v1746 = vpop.f32.mrf.mxu0
        %1747 = vdwg.mxu0
        %v1748 = vadd.f32 %v1507, %v1745
        %v1749 = vld [vmem:[%s7] sm:$0x1]
        %v1751 = vlaneseq
        %v1752 = vshrl.u32 %v1751, 7
        %v1753 = vsub.s32 0, %v1752
        %v1754 = vrot.slane %v1749, %v1753
        %v1756 = vadd.f32 %v1748, %v1754
        %v1757 = vadd.f32 %v697, %v1756
        %v1758 = vld [vmem:[%s8] sm:$0x1]
        %v1759 = vld [vmem:[%s9] sm:$0x1]
        %v1760 = vsel %vm669, %v1757, 0.0
        %1761 = vadd.xlane.f32.xlu0 %v1760
        %v1762 = vpop.xlane.xlu0 %1761
        %v1763 = vmul.f32 %v1762, %v673
        %v1764 = vsub.f32 %v1757, %v1763
        %v1765 = vmul.f32 %v1764, %v1764
        %v1766 = vsel %vm669, %v1765, 0.0
        %1767 = vadd.xlane.f32.xlu0 %v1766
        %v1768 = vpop.xlane.xlu0 %1767
        %v1769 = vmul.f32 %v1768, %v673
        %v1770 = vadd.f32 %v1769, 1e-12
        %v1771 = vrsqrt.pop %v1770
        %v1772 = vmul.f32 %v1764, %v1771
        %v1774 = vlaneseq
        %v1775 = vshrl.u32 %v1774, 7
        %v1776 = vsub.s32 0, %v1775
        %v1777 = vrot.slane %v1758, %v1776
        %v1779 = vmul.f32 %v1772, %v1777
        %v1781 = vlaneseq
        %v1782 = vshrl.u32 %v1781, 7
        %v1783 = vsub.s32 0, %v1782
        %v1784 = vrot.slane %v1759, %v1783
        %v1786 = vadd.f32 %v1779, %v1784
        %v1787 = vld [vmem:[%s10] sm:$0xff]
        %v1788 = vld [vmem:[%s10 + $0x8] sm:$0xff]
        %v1789 = vld [vmem:[%s10 + $0x10] sm:$0xff]
        %v1790 = vld [vmem:[%s10 + $0x18] sm:$0xff]
        %v1791 = vld [vmem:[%s11] sm:$0x1]
        %v1793 = vlaneseq
        %v1794 = vshrl.u32 %v1793, 7
        %v1795 = vsub.s32 0, %v1794
        %v1796 = vrot.slane %v1791, %v1795
        %v1799 = vsel %vm669, %v1786, 0
        %1801 = vmatprep.subr.mxu0 0.0
        %1802 = vmatpush1.msra.mxu0 0.0
        %1803 = vmatprep.subr.mxu0 0.0
        %1804 = vmatpush1.msra.mxu0 0.0
        %1805 = vmatprep.subr.mxu0 0.0
        %1806 = vmatpush1.msra.mxu0 0.0
        %1807 = vmatprep.subr.mxu0 0.0
        %1808 = vmatpush1.msra.mxu0 0.0
        %1809 = vmatprep.subr.mxu0 0.0
        %1810 = vmatpush1.msra.mxu0 0.0
        %1811 = vmatprep.subr.mxu0 0.0
        %1812 = vmatpush1.msra.mxu0 0.0
        %1813 = vmatprep.subr.mxu0 0.0
        %1814 = vmatpush1.msra.mxu0 0.0
        %1815 = vmatprep.subr.mxu0 0.0
        %1816 = vmatpush1.msra.mxu0 0.0
        %1817 = vmatprep.subr.mxu0 0.0
        %1818 = vmatpush1.msra.mxu0 0.0
        %1819 = vmatprep.subr.mxu0 0.0
        %1820 = vmatpush1.msra.mxu0 0.0
        %1821 = vmatprep.subr.mxu0 0.0
        %1822 = vmatpush1.msra.mxu0 0.0
        %1823 = vmatprep.subr.mxu0 0.0
        %1824 = vmatpush1.msra.mxu0 0.0
        %1825 = vmatprep.subr.mxu0 0.0
        %1826 = vmatpush1.msra.mxu0 %v1790
        %1827 = vmatprep.subr.mxu0 0.0
        %1828 = vmatpush1.msra.mxu0 %v1789
        %1829 = vmatprep.subr.mxu0 0.0
        %1830 = vmatpush1.msra.mxu0 %v1788
        %1831 = vmatprep.subr.mxu0 0.0
        %1832 = vmatpush1.msra.mxu0 %v1787
        %1833 = vmatprep.subr.mxu0 0.0
        %1834 = vmatpush2.msra.mxu0 0.0
        %1835 = vmatprep.subr.mxu0 0.0
        %1836 = vmatpush2.msra.mxu0 0.0
        %1837 = vmatprep.subr.mxu0 0.0
        %1838 = vmatpush2.msra.mxu0 0.0
        %1839 = vmatprep.subr.mxu0 0.0
        %1840 = vmatpush2.msra.mxu0 0.0
        %1841 = vmatprep.subr.mxu0 0.0
        %1842 = vmatpush2.msra.mxu0 0.0
        %1843 = vmatprep.subr.mxu0 0.0
        %1844 = vmatpush2.msra.mxu0 0.0
        %1845 = vmatprep.subr.mxu0 0.0
        %1846 = vmatpush2.msra.mxu0 0.0
        %1847 = vmatprep.subr.mxu0 0.0
        %1848 = vmatpush2.msra.mxu0 0.0
        %1849 = vmatprep.subr.mxu0 0.0
        %1850 = vmatpush2.msra.mxu0 0.0
        %1851 = vmatprep.subr.mxu0 0.0
        %1852 = vmatpush2.msra.mxu0 0.0
        %1853 = vmatprep.subr.mxu0 0.0
        %1854 = vmatpush2.msra.mxu0 0.0
        %1855 = vmatprep.subr.mxu0 0.0
        %1856 = vmatpush2.msra.mxu0 0.0
        %1857 = vmatprep.subr.mxu0 0.0
        %1858 = vmatpush2.msra.mxu0 0.0
        %1859 = vmatprep.subr.mxu0 0.0
        %1860 = vmatpush2.msra.mxu0 0.0
        %1861 = vmatprep.subr.mxu0 0.0
        %1862 = vmatpush2.msra.mxu0 0.0
        %1863 = vmatprep.subr.mxu0 0.0
        %1864 = vmatpush2.msra.mxu0 0.0
        %1865 = vmatprep.mubr.f32.mxu0 0.0
        %1866 = vmatmul.mubr.f32.gmra.mxu0 %v1799
        %v1867 = vpop.f32.mrf.mxu0
        %v1868 = vadd.f32 %v1796, %v1867
        %v1869 = vpop.f32.mrf.mxu0
        %1870 = vdwg.mxu0
        %v1871 = vmul.f32 %v1868, %v1868
        %v1872 = vmul.f32 %v1868, %v1871
        %v1873 = vmul.f32 %v1872, 0.044715
        %v1874 = vadd.f32 %v1868, %v1873
        %v1875 = vmul.f32 %v1874, 0.7978846
        %v1876 = vtanh.pop %v1875
        %v1877 = vadd.f32 %v1876, 1.0
        %v1878 = vmul.f32 %v1877, 0.5
        %v1879 = vmul.f32 %v1868, %v1878
        %v1880 = vld [vmem:[%s12] sm:$0xff]
        %v1881 = vld [vmem:[%s12 + $0x8] sm:$0xff]
        %v1882 = vld [vmem:[%s12 + $0x10] sm:$0xff]
        %v1883 = vld [vmem:[%s12 + $0x18] sm:$0xff]
        %v1884 = vld [vmem:[%s12 + $0x20] sm:$0xff]
        %v1885 = vld [vmem:[%s12 + $0x28] sm:$0xff]
        %v1886 = vld [vmem:[%s12 + $0x30] sm:$0xff]
        %v1887 = vld [vmem:[%s12 + $0x38] sm:$0xff]
        %v1888 = vld [vmem:[%s13] sm:$0x1]
        %v1890 = vlaneseq
        %v1891 = vshrl.u32 %v1890, 7
        %v1892 = vsub.s32 0, %v1891
        %v1893 = vrot.slane %v1888, %v1892
        %vm1895 = vcmask 523264
        %v1897 = vsel %vm1895, %v1879, 0
        %1899 = vmatprep.subr.mxu0 0.0
        %1900 = vmatpush1.msra.mxu0 0.0
        %1901 = vmatprep.subr.mxu0 0.0
        %1902 = vmatpush1.msra.mxu0 0.0
        %1903 = vmatprep.subr.mxu0 0.0
        %1904 = vmatpush1.msra.mxu0 0.0
        %1905 = vmatprep.subr.mxu0 0.0
        %1906 = vmatpush1.msra.mxu0 0.0
        %1907 = vmatprep.subr.mxu0 0.0
        %1908 = vmatpush1.msra.mxu0 0.0
        %1909 = vmatprep.subr.mxu0 0.0
        %1910 = vmatpush1.msra.mxu0 0.0
        %1911 = vmatprep.subr.mxu0 0.0
        %1912 = vmatpush1.msra.mxu0 0.0
        %1913 = vmatprep.subr.mxu0 0.0
        %1914 = vmatpush1.msra.mxu0 0.0
        %1915 = vmatprep.subr.mxu0 0.0
        %1916 = vmatpush1.msra.mxu0 %v1887
        %1917 = vmatprep.subr.mxu0 0.0
        %1918 = vmatpush1.msra.mxu0 %v1886
        %1919 = vmatprep.subr.mxu0 0.0
        %1920 = vmatpush1.msra.mxu0 %v1885
        %1921 = vmatprep.subr.mxu0 0.0
        %1922 = vmatpush1.msra.mxu0 %v1884
        %1923 = vmatprep.subr.mxu0 0.0
        %1924 = vmatpush1.msra.mxu0 %v1883
        %1925 = vmatprep.subr.mxu0 0.0
        %1926 = vmatpush1.msra.mxu0 %v1882
        %1927 = vmatprep.subr.mxu0 0.0
        %1928 = vmatpush1.msra.mxu0 %v1881
        %1929 = vmatprep.subr.mxu0 0.0
        %1930 = vmatpush1.msra.mxu0 %v1880
        %1931 = vmatprep.subr.mxu0 0.0
        %1932 = vmatpush2.msra.mxu0 0.0
        %1933 = vmatprep.subr.mxu0 0.0
        %1934 = vmatpush2.msra.mxu0 0.0
        %1935 = vmatprep.subr.mxu0 0.0
        %1936 = vmatpush2.msra.mxu0 0.0
        %1937 = vmatprep.subr.mxu0 0.0
        %1938 = vmatpush2.msra.mxu0 0.0
        %1939 = vmatprep.subr.mxu0 0.0
        %1940 = vmatpush2.msra.mxu0 0.0
        %1941 = vmatprep.subr.mxu0 0.0
        %1942 = vmatpush2.msra.mxu0 0.0
        %1943 = vmatprep.subr.mxu0 0.0
        %1944 = vmatpush2.msra.mxu0 0.0
        %1945 = vmatprep.subr.mxu0 0.0
        %1946 = vmatpush2.msra.mxu0 0.0
        %1947 = vmatprep.subr.mxu0 0.0
        %1948 = vmatpush2.msra.mxu0 0.0
        %1949 = vmatprep.subr.mxu0 0.0
        %1950 = vmatpush2.msra.mxu0 0.0
        %1951 = vmatprep.subr.mxu0 0.0
        %1952 = vmatpush2.msra.mxu0 0.0
        %1953 = vmatprep.subr.mxu0 0.0
        %1954 = vmatpush2.msra.mxu0 0.0
        %1955 = vmatprep.subr.mxu0 0.0
        %1956 = vmatpush2.msra.mxu0 0.0
        %1957 = vmatprep.subr.mxu0 0.0
        %1958 = vmatpush2.msra.mxu0 0.0
        %1959 = vmatprep.subr.mxu0 0.0
        %1960 = vmatpush2.msra.mxu0 0.0
        %1961 = vmatprep.subr.mxu0 0.0
        %1962 = vmatpush2.msra.mxu0 0.0
        %1963 = vmatprep.mubr.f32.mxu0 0.0
        %1964 = vmatmul.mubr.f32.gmra.mxu0 %v1897
        %v1965 = vpop.f32.mrf.mxu0
        %v1966 = vadd.f32 %v1893, %v1965
        %v1967 = vpop.f32.mrf.mxu0
        %1968 = vdwg.mxu0
        %v1969 = vadd.f32 %v1786, %v1966
        %v1970 = vld [vmem:[%s14] sm:$0x1]
        %v1971 = vld [vmem:[%s15] sm:$0x1]
        %v1972 = vsel %vm669, %v1969, 0.0
        %1973 = vadd.xlane.f32.xlu0 %v1972
        %v1974 = vpop.xlane.xlu0 %1973
        %v1975 = vmul.f32 %v1974, %v673
        %v1976 = vsub.f32 %v1969, %v1975
        %v1977 = vmul.f32 %v1976, %v1976
        %v1978 = vsel %vm669, %v1977, 0.0
        %1979 = vadd.xlane.f32.xlu0 %v1978
        %v1980 = vpop.xlane.xlu0 %1979
        %v1981 = vmul.f32 %v1980, %v673
        %v1982 = vadd.f32 %v1981, 1e-12
        %v1983 = vrsqrt.pop %v1982
        %v1984 = vmul.f32 %v1976, %v1983
        %v1986 = vlaneseq
        %v1987 = vshrl.u32 %v1986, 7
        %v1988 = vsub.s32 0, %v1987
        %v1989 = vrot.slane %v1970, %v1988
        %v1991 = vmul.f32 %v1984, %v1989
        %v1993 = vlaneseq
        %v1994 = vshrl.u32 %v1993, 7
        %v1995 = vsub.s32 0, %v1994
        %v1996 = vrot.slane %v1971, %v1995
        %v1998 = vadd.f32 %v1991, %v1996
        %s1999 = scalar_lea.vmem %s4, 32
        %v2000 = vld [vmem:[%s1999] sm:$0xff]
        %v2001 = vld [vmem:[%s1999 + $0x8] sm:$0xff]
        %v2002 = vld [vmem:[%s1999 + $0x10] sm:$0xff]
        %v2003 = vld [vmem:[%s1999 + $0x18] sm:$0xff]
        %s2004 = scalar_lea.vmem %s5, 1
        %v2005 = vld [vmem:[%s2004] sm:$0x1]
        %v2007 = vlaneseq
        %v2008 = vshrl.u32 %v2007, 7
        %v2009 = vsub.s32 0, %v2008
        %v2010 = vrot.slane %v2005, %v2009
        %v2013 = vsel %vm669, %v1998, 0
        %2015 = vmatprep.subr.mxu0 0.0
        %2016 = vmatpush1.msra.mxu0 0.0
        %2017 = vmatprep.subr.mxu0 0.0
        %2018 = vmatpush1.msra.mxu0 0.0
        %2019 = vmatprep.subr.mxu0 0.0
        %2020 = vmatpush1.msra.mxu0 0.0
        %2021 = vmatprep.subr.mxu0 0.0
        %2022 = vmatpush1.msra.mxu0 0.0
        %2023 = vmatprep.subr.mxu0 0.0
        %2024 = vmatpush1.msra.mxu0 0.0
        %2025 = vmatprep.subr.mxu0 0.0
        %2026 = vmatpush1.msra.mxu0 0.0
        %2027 = vmatprep.subr.mxu0 0.0
        %2028 = vmatpush1.msra.mxu0 0.0
        %2029 = vmatprep.subr.mxu0 0.0
        %2030 = vmatpush1.msra.mxu0 0.0
        %2031 = vmatprep.subr.mxu0 0.0
        %2032 = vmatpush1.msra.mxu0 0.0
        %2033 = vmatprep.subr.mxu0 0.0
        %2034 = vmatpush1.msra.mxu0 0.0
        %2035 = vmatprep.subr.mxu0 0.0
        %2036 = vmatpush1.msra.mxu0 0.0
        %2037 = vmatprep.subr.mxu0 0.0
        %2038 = vmatpush1.msra.mxu0 0.0
        %2039 = vmatprep.subr.mxu0 0.0
        %2040 = vmatpush1.msra.mxu0 %v2003
        %2041 = vmatprep.subr.mxu0 0.0
        %2042 = vmatpush1.msra.mxu0 %v2002
        %2043 = vmatprep.subr.mxu0 0.0
        %2044 = vmatpush1.msra.mxu0 %v2001
        %2045 = vmatprep.subr.mxu0 0.0
        %2046 = vmatpush1.msra.mxu0 %v2000
        %2047 = vmatprep.subr.mxu0 0.0
        %2048 = vmatpush2.msra.mxu0 0.0
        %2049 = vmatprep.subr.mxu0 0.0
        %2050 = vmatpush2.msra.mxu0 0.0
        %2051 = vmatprep.subr.mxu0 0.0
        %2052 = vmatpush2.msra.mxu0 0.0
        %2053 = vmatprep.subr.mxu0 0.0
        %2054 = vmatpush2.msra.mxu0 0.0
        %2055 = vmatprep.subr.mxu0 0.0
        %2056 = vmatpush2.msra.mxu0 0.0
        %2057 = vmatprep.subr.mxu0 0.0
        %2058 = vmatpush2.msra.mxu0 0.0
        %2059 = vmatprep.subr.mxu0 0.0
        %2060 = vmatpush2.msra.mxu0 0.0
        %2061 = vmatprep.subr.mxu0 0.0
        %2062 = vmatpush2.msra.mxu0 0.0
        %2063 = vmatprep.subr.mxu0 0.0
        %2064 = vmatpush2.msra.mxu0 0.0
        %2065 = vmatprep.subr.mxu0 0.0
        %2066 = vmatpush2.msra.mxu0 0.0
        %2067 = vmatprep.subr.mxu0 0.0
        %2068 = vmatpush2.msra.mxu0 0.0
        %2069 = vmatprep.subr.mxu0 0.0
        %2070 = vmatpush2.msra.mxu0 0.0
        %2071 = vmatprep.subr.mxu0 0.0
        %2072 = vmatpush2.msra.mxu0 0.0
        %2073 = vmatprep.subr.mxu0 0.0
        %2074 = vmatpush2.msra.mxu0 0.0
        %2075 = vmatprep.subr.mxu0 0.0
        %2076 = vmatpush2.msra.mxu0 0.0
        %2077 = vmatprep.subr.mxu0 0.0
        %2078 = vmatpush2.msra.mxu0 0.0
        %2079 = vmatprep.mubr.f32.mxu0 0.0
        %2080 = vmatmul.mubr.f32.gmra.mxu0 %v2013
        %v2081 = vpop.f32.mrf.mxu0
        %v2082 = vadd.f32 %v2010, %v2081
        %v2083 = vpop.f32.mrf.mxu0
        %2084 = vdwg.mxu0
        %s2085 = scalar_lea.vmem %s6, 32
        %v2086 = vld [vmem:[%s2085] sm:$0xff]
        %v2087 = vld [vmem:[%s2085 + $0x8] sm:$0xff]
        %v2088 = vld [vmem:[%s2085 + $0x10] sm:$0xff]
        %v2089 = vld [vmem:[%s2085 + $0x18] sm:$0xff]
        %2091 = vrot.lane.b32.xlu0 %v2082, 96
        %v2092 = vpop.permute.xlu0 %2091
        %v2093 = vsel %vm790, %v2082, 0
        %v2095 = vsel %vm790, %v2092, 0
        %2097 = vmatprep.subr.mxu0 0.0
        %2098 = vmatpush1.xpose.msra.mxu0 0.0
        %2099 = vmatprep.subr.mxu0 0.0
        %2100 = vmatpush1.xpose.msra.mxu0 0.0
        %2101 = vmatprep.subr.mxu0 0.0
        %2102 = vmatpush1.xpose.msra.mxu0 0.0
        %2103 = vmatprep.subr.mxu0 0.0
        %2104 = vmatpush1.xpose.msra.mxu0 0.0
        %2105 = vmatprep.subr.mxu0 0.0
        %2106 = vmatpush1.xpose.msra.mxu0 0.0
        %2107 = vmatprep.subr.mxu0 0.0
        %2108 = vmatpush1.xpose.msra.mxu0 0.0
        %2109 = vmatprep.subr.mxu0 0.0
        %2110 = vmatpush1.xpose.msra.mxu0 0.0
        %2111 = vmatprep.subr.mxu0 0.0
        %2112 = vmatpush1.xpose.msra.mxu0 0.0
        %2113 = vmatprep.subr.mxu0 0.0
        %2114 = vmatpush1.xpose.msra.mxu0 0.0
        %2115 = vmatprep.subr.mxu0 0.0
        %2116 = vmatpush1.xpose.msra.mxu0 0.0
        %2117 = vmatprep.subr.mxu0 0.0
        %2118 = vmatpush1.xpose.msra.mxu0 0.0
        %2119 = vmatprep.subr.mxu0 0.0
        %2120 = vmatpush1.xpose.msra.mxu0 0.0
        %2121 = vmatprep.subr.mxu0 0.0
        %2122 = vmatpush1.xpose.msra.mxu0 0.0
        %2123 = vmatprep.subr.mxu0 0.0
        %2124 = vmatpush1.xpose.msra.mxu0 0.0
        %2125 = vmatprep.subr.mxu0 0.0
        %2126 = vmatpush1.xpose.msra.mxu0 0.0
        %2127 = vmatprep.subr.mxu0 0.0
        %2128 = vmatpush1.xpose.msra.mxu0 %v2095
        %2129 = vmatprep.subr.mxu0 0.0
        %2130 = vmatpush2.xpose.msra.mxu0 0.0
        %2131 = vmatprep.subr.mxu0 0.0
        %2132 = vmatpush2.xpose.msra.mxu0 0.0
        %2133 = vmatprep.subr.mxu0 0.0
        %2134 = vmatpush2.xpose.msra.mxu0 0.0
        %2135 = vmatprep.subr.mxu0 0.0
        %2136 = vmatpush2.xpose.msra.mxu0 0.0
        %2137 = vmatprep.subr.mxu0 0.0
        %2138 = vmatpush2.xpose.msra.mxu0 0.0
        %2139 = vmatprep.subr.mxu0 0.0
        %2140 = vmatpush2.xpose.msra.mxu0 0.0
        %2141 = vmatprep.subr.mxu0 0.0
        %2142 = vmatpush2.xpose.msra.mxu0 0.0
        %2143 = vmatprep.subr.mxu0 0.0
        %2144 = vmatpush2.xpose.msra.mxu0 0.0
        %2145 = vmatprep.subr.mxu0 0.0
        %2146 = vmatpush2.xpose.msra.mxu0 0.0
        %2147 = vmatprep.subr.mxu0 0.0
        %2148 = vmatpush2.xpose.msra.mxu0 0.0
        %2149 = vmatprep.subr.mxu0 0.0
        %2150 = vmatpush2.xpose.msra.mxu0 0.0
        %2151 = vmatprep.subr.mxu0 0.0
        %2152 = vmatpush2.xpose.msra.mxu0 0.0
        %2153 = vmatprep.subr.mxu0 0.0
        %2154 = vmatpush2.xpose.msra.mxu0 0.0
        %2155 = vmatprep.subr.mxu0 0.0
        %2156 = vmatpush2.xpose.msra.mxu0 0.0
        %2157 = vmatprep.subr.mxu0 0.0
        %2158 = vmatpush2.xpose.msra.mxu0 0.0
        %2159 = vmatprep.subr.mxu0 0.0
        %2160 = vmatpush2.xpose.msra.mxu0 0.0
        %2161 = vmatprep.mubr.f32.mxu0 0.0
        %2162 = vmatmul.mubr.f32.gmra.mxu0 %v2093
        %v2163 = vpop.f32.mrf.mxu0
        %v2164 = vadd.f32 0.0, %v2163
        %v2165 = vpop.f32.mrf.mxu0
        %2166 = vdwg.mxu0
        %v2167 = vmul.f32 %v2164, 0.35355338
        %v2168 = vadd.f32 %v2167, %v698
        %v2169 = vsel %vm790, %v2168, -inf
        %2170 = vmax.xlane.f32.xlu0 %v2169
        %v2171 = vpop.xlane.xlu0 %2170
        %v2172 = vsub.f32 %v2168, %v2171
        %v2173 = vmul.f32 %v2172, 1.442695
        %v2174 = vpow.pop %v2173
        %v2175 = vsel %vm790, %v2174, 0.0
        %2176 = vadd.xlane.f32.xlu0 %v2175
        %v2177 = vpop.xlane.xlu0 %2176
        %v2178 = vrcp.pop %v2177
        %v2179 = vmul.f32 %v2174, %v2178
        %2180 = vrot.lane.b32.xlu0 %v2082, 64
        %v2181 = vpop.permute.xlu0 %2180
        %v2184 = vsel %vm790, %v2179, 0
        %2186 = vmatprep.subr.mxu0 0.0
        %2187 = vmatpush1.msra.mxu0 0.0
        %2188 = vmatprep.subr.mxu0 0.0
        %2189 = vmatpush1.msra.mxu0 0.0
        %2190 = vmatprep.subr.mxu0 0.0
        %2191 = vmatpush1.msra.mxu0 0.0
        %2192 = vmatprep.subr.mxu0 0.0
        %2193 = vmatpush1.msra.mxu0 0.0
        %2194 = vmatprep.subr.mxu0 0.0
        %2195 = vmatpush1.msra.mxu0 0.0
        %2196 = vmatprep.subr.mxu0 0.0
        %2197 = vmatpush1.msra.mxu0 0.0
        %2198 = vmatprep.subr.mxu0 0.0
        %2199 = vmatpush1.msra.mxu0 0.0
        %2200 = vmatprep.subr.mxu0 0.0
        %2201 = vmatpush1.msra.mxu0 0.0
        %2202 = vmatprep.subr.mxu0 0.0
        %2203 = vmatpush1.msra.mxu0 0.0
        %2204 = vmatprep.subr.mxu0 0.0
        %2205 = vmatpush1.msra.mxu0 0.0
        %2206 = vmatprep.subr.mxu0 0.0
        %2207 = vmatpush1.msra.mxu0 0.0
        %2208 = vmatprep.subr.mxu0 0.0
        %2209 = vmatpush1.msra.mxu0 0.0
        %2210 = vmatprep.subr.mxu0 0.0
        %2211 = vmatpush1.msra.mxu0 0.0
        %2212 = vmatprep.subr.mxu0 0.0
        %2213 = vmatpush1.msra.mxu0 0.0
        %2214 = vmatprep.subr.mxu0 0.0
        %2215 = vmatpush1.msra.mxu0 0.0
        %2216 = vmatprep.subr.mxu0 0.0
        %2217 = vmatpush1.msra.mxu0 %v2181
        %2218 = vmatprep.subr.mxu0 0.0
        %2219 = vmatpush2.msra.mxu0 0.0
        %2220 = vmatprep.subr.mxu0 0.0
        %2221 = vmatpush2.msra.mxu0 0.0
        %2222 = vmatprep.subr.mxu0 0.0
        %2223 = vmatpush2.msra.mxu0 0.0
        %2224 = vmatprep.subr.mxu0 0.0
        %2225 = vmatpush2.msra.mxu0 0.0
        %2226 = vmatprep.subr.mxu0 0.0
        %2227 = vmatpush2.msra.mxu0 0.0
        %2228 = vmatprep.subr.mxu0 0.0
        %2229 = vmatpush2.msra.mxu0 0.0
        %2230 = vmatprep.subr.mxu0 0.0
        %2231 = vmatpush2.msra.mxu0 0.0
        %2232 = vmatprep.subr.mxu0 0.0
        %2233 = vmatpush2.msra.mxu0 0.0
        %2234 = vmatprep.subr.mxu0 0.0
        %2235 = vmatpush2.msra.mxu0 0.0
        %2236 = vmatprep.subr.mxu0 0.0
        %2237 = vmatpush2.msra.mxu0 0.0
        %2238 = vmatprep.subr.mxu0 0.0
        %2239 = vmatpush2.msra.mxu0 0.0
        %2240 = vmatprep.subr.mxu0 0.0
        %2241 = vmatpush2.msra.mxu0 0.0
        %2242 = vmatprep.subr.mxu0 0.0
        %2243 = vmatpush2.msra.mxu0 0.0
        %2244 = vmatprep.subr.mxu0 0.0
        %2245 = vmatpush2.msra.mxu0 0.0
        %2246 = vmatprep.subr.mxu0 0.0
        %2247 = vmatpush2.msra.mxu0 0.0
        %2248 = vmatprep.subr.mxu0 0.0
        %2249 = vmatpush2.msra.mxu0 0.0
        %2250 = vmatprep.mubr.f32.mxu0 0.0
        %2251 = vmatmul.mubr.f32.gmra.mxu0 %v2184
        %v2252 = vpop.f32.mrf.mxu0
        %v2253 = vadd.f32 0.0, %v2252
        %v2254 = vpop.f32.mrf.mxu0
        %2255 = vdwg.mxu0
        %2256 = vrot.lane.b32.xlu0 %v2082, 120
        %v2257 = vpop.permute.xlu0 %2256
        %2258 = vrot.lane.b32.xlu0 %v2082, 88
        %v2259 = vpop.permute.xlu0 %2258
        %v2260 = vsel %vm790, %v2257, 0
        %v2262 = vsel %vm790, %v2259, 0
        %2264 = vmatprep.subr.mxu0 0.0
        %2265 = vmatpush1.xpose.msra.mxu0 0.0
        %2266 = vmatprep.subr.mxu0 0.0
        %2267 = vmatpush1.xpose.msra.mxu0 0.0
        %2268 = vmatprep.subr.mxu0 0.0
        %2269 = vmatpush1.xpose.msra.mxu0 0.0
        %2270 = vmatprep.subr.mxu0 0.0
        %2271 = vmatpush1.xpose.msra.mxu0 0.0
        %2272 = vmatprep.subr.mxu0 0.0
        %2273 = vmatpush1.xpose.msra.mxu0 0.0
        %2274 = vmatprep.subr.mxu0 0.0
        %2275 = vmatpush1.xpose.msra.mxu0 0.0
        %2276 = vmatprep.subr.mxu0 0.0
        %2277 = vmatpush1.xpose.msra.mxu0 0.0
        %2278 = vmatprep.subr.mxu0 0.0
        %2279 = vmatpush1.xpose.msra.mxu0 0.0
        %2280 = vmatprep.subr.mxu0 0.0
        %2281 = vmatpush1.xpose.msra.mxu0 0.0
        %2282 = vmatprep.subr.mxu0 0.0
        %2283 = vmatpush1.xpose.msra.mxu0 0.0
        %2284 = vmatprep.subr.mxu0 0.0
        %2285 = vmatpush1.xpose.msra.mxu0 0.0
        %2286 = vmatprep.subr.mxu0 0.0
        %2287 = vmatpush1.xpose.msra.mxu0 0.0
        %2288 = vmatprep.subr.mxu0 0.0
        %2289 = vmatpush1.xpose.msra.mxu0 0.0
        %2290 = vmatprep.subr.mxu0 0.0
        %2291 = vmatpush1.xpose.msra.mxu0 0.0
        %2292 = vmatprep.subr.mxu0 0.0
        %2293 = vmatpush1.xpose.msra.mxu0 0.0
        %2294 = vmatprep.subr.mxu0 0.0
        %2295 = vmatpush1.xpose.msra.mxu0 %v2262
        %2296 = vmatprep.subr.mxu0 0.0
        %2297 = vmatpush2.xpose.msra.mxu0 0.0
        %2298 = vmatprep.subr.mxu0 0.0
        %2299 = vmatpush2.xpose.msra.mxu0 0.0
        %2300 = vmatprep.subr.mxu0 0.0
        %2301 = vmatpush2.xpose.msra.mxu0 0.0
        %2302 = vmatprep.subr.mxu0 0.0
        %2303 = vmatpush2.xpose.msra.mxu0 0.0
        %2304 = vmatprep.subr.mxu0 0.0
        %2305 = vmatpush2.xpose.msra.mxu0 0.0
        %2306 = vmatprep.subr.mxu0 0.0
        %2307 = vmatpush2.xpose.msra.mxu0 0.0
        %2308 = vmatprep.subr.mxu0 0.0
        %2309 = vmatpush2.xpose.msra.mxu0 0.0
        %2310 = vmatprep.subr.mxu0 0.0
        %2311 = vmatpush2.xpose.msra.mxu0 0.0
        %2312 = vmatprep.subr.mxu0 0.0
        %2313 = vmatpush2.xpose.msra.mxu0 0.0
        %2314 = vmatprep.subr.mxu0 0.0
        %2315 = vmatpush2.xpose.msra.mxu0 0.0
        %2316 = vmatprep.subr.mxu0 0.0
        %2317 = vmatpush2.xpose.msra.mxu0 0.0
        %2318 = vmatprep.subr.mxu0 0.0
        %2319 = vmatpush2.xpose.msra.mxu0 0.0
        %2320 = vmatprep.subr.mxu0 0.0
        %2321 = vmatpush2.xpose.msra.mxu0 0.0
        %2322 = vmatprep.subr.mxu0 0.0
        %2323 = vmatpush2.xpose.msra.mxu0 0.0
        %2324 = vmatprep.subr.mxu0 0.0
        %2325 = vmatpush2.xpose.msra.mxu0 0.0
        %2326 = vmatprep.subr.mxu0 0.0
        %2327 = vmatpush2.xpose.msra.mxu0 0.0
        %2328 = vmatprep.mubr.f32.mxu0 0.0
        %2329 = vmatmul.mubr.f32.gmra.mxu0 %v2260
        %v2330 = vpop.f32.mrf.mxu0
        %v2331 = vadd.f32 0.0, %v2330
        %v2332 = vpop.f32.mrf.mxu0
        %2333 = vdwg.mxu0
        %v2334 = vmul.f32 %v2331, 0.35355338
        %v2335 = vadd.f32 %v2334, %v698
        %v2336 = vsel %vm790, %v2335, -inf
        %2337 = vmax.xlane.f32.xlu0 %v2336
        %v2338 = vpop.xlane.xlu0 %2337
        %v2339 = vsub.f32 %v2335, %v2338
        %v2340 = vmul.f32 %v2339, 1.442695
        %v2341 = vpow.pop %v2340
        %v2342 = vsel %vm790, %v2341, 0.0
        %2343 = vadd.xlane.f32.xlu0 %v2342
        %v2344 = vpop.xlane.xlu0 %2343
        %v2345 = vrcp.pop %v2344
        %v2346 = vmul.f32 %v2341, %v2345
        %2347 = vrot.lane.b32.xlu0 %v2082, 56
        %v2348 = vpop.permute.xlu0 %2347
        %v2351 = vsel %vm790, %v2346, 0
        %2353 = vmatprep.subr.mxu0 0.0
        %2354 = vmatpush1.msra.mxu0 0.0
        %2355 = vmatprep.subr.mxu0 0.0
        %2356 = vmatpush1.msra.mxu0 0.0
        %2357 = vmatprep.subr.mxu0 0.0
        %2358 = vmatpush1.msra.mxu0 0.0
        %2359 = vmatprep.subr.mxu0 0.0
        %2360 = vmatpush1.msra.mxu0 0.0
        %2361 = vmatprep.subr.mxu0 0.0
        %2362 = vmatpush1.msra.mxu0 0.0
        %2363 = vmatprep.subr.mxu0 0.0
        %2364 = vmatpush1.msra.mxu0 0.0
        %2365 = vmatprep.subr.mxu0 0.0
        %2366 = vmatpush1.msra.mxu0 0.0
        %2367 = vmatprep.subr.mxu0 0.0
        %2368 = vmatpush1.msra.mxu0 0.0
        %2369 = vmatprep.subr.mxu0 0.0
        %2370 = vmatpush1.msra.mxu0 0.0
        %2371 = vmatprep.subr.mxu0 0.0
        %2372 = vmatpush1.msra.mxu0 0.0
        %2373 = vmatprep.subr.mxu0 0.0
        %2374 = vmatpush1.msra.mxu0 0.0
        %2375 = vmatprep.subr.mxu0 0.0
        %2376 = vmatpush1.msra.mxu0 0.0
        %2377 = vmatprep.subr.mxu0 0.0
        %2378 = vmatpush1.msra.mxu0 0.0
        %2379 = vmatprep.subr.mxu0 0.0
        %2380 = vmatpush1.msra.mxu0 0.0
        %2381 = vmatprep.subr.mxu0 0.0
        %2382 = vmatpush1.msra.mxu0 0.0
        %2383 = vmatprep.subr.mxu0 0.0
        %2384 = vmatpush1.msra.mxu0 %v2348
        %2385 = vmatprep.subr.mxu0 0.0
        %2386 = vmatpush2.msra.mxu0 0.0
        %2387 = vmatprep.subr.mxu0 0.0
        %2388 = vmatpush2.msra.mxu0 0.0
        %2389 = vmatprep.subr.mxu0 0.0
        %2390 = vmatpush2.msra.mxu0 0.0
        %2391 = vmatprep.subr.mxu0 0.0
        %2392 = vmatpush2.msra.mxu0 0.0
        %2393 = vmatprep.subr.mxu0 0.0
        %2394 = vmatpush2.msra.mxu0 0.0
        %2395 = vmatprep.subr.mxu0 0.0
        %2396 = vmatpush2.msra.mxu0 0.0
        %2397 = vmatprep.subr.mxu0 0.0
        %2398 = vmatpush2.msra.mxu0 0.0
        %2399 = vmatprep.subr.mxu0 0.0
        %2400 = vmatpush2.msra.mxu0 0.0
        %2401 = vmatprep.subr.mxu0 0.0
        %2402 = vmatpush2.msra.mxu0 0.0
        %2403 = vmatprep.subr.mxu0 0.0
        %2404 = vmatpush2.msra.mxu0 0.0
        %2405 = vmatprep.subr.mxu0 0.0
        %2406 = vmatpush2.msra.mxu0 0.0
        %2407 = vmatprep.subr.mxu0 0.0
        %2408 = vmatpush2.msra.mxu0 0.0
        %2409 = vmatprep.subr.mxu0 0.0
        %2410 = vmatpush2.msra.mxu0 0.0
        %2411 = vmatprep.subr.mxu0 0.0
        %2412 = vmatpush2.msra.mxu0 0.0
        %2413 = vmatprep.subr.mxu0 0.0
        %2414 = vmatpush2.msra.mxu0 0.0
        %2415 = vmatprep.subr.mxu0 0.0
        %2416 = vmatpush2.msra.mxu0 0.0
        %2417 = vmatprep.mubr.f32.mxu0 0.0
        %2418 = vmatmul.mubr.f32.gmra.mxu0 %v2351
        %v2419 = vpop.f32.mrf.mxu0
        %v2420 = vadd.f32 0.0, %v2419
        %v2421 = vpop.f32.mrf.mxu0
        %2422 = vdwg.mxu0
        %v2424 = vsel %vm790, %v2420, 0
        %2426 = vmatprep.subr.mxu0 0.0
        %2427 = vmatpush1.msra.mxu0 0.0
        %2428 = vmatprep.subr.mxu0 0.0
        %2429 = vmatpush1.msra.mxu0 0.0
        %2430 = vmatprep.subr.mxu0 0.0
        %2431 = vmatpush1.msra.mxu0 0.0
        %2432 = vmatprep.subr.mxu0 0.0
        %2433 = vmatpush1.msra.mxu0 0.0
        %2434 = vmatprep.subr.mxu0 0.0
        %2435 = vmatpush1.msra.mxu0 0.0
        %2436 = vmatprep.subr.mxu0 0.0
        %2437 = vmatpush1.msra.mxu0 0.0
        %2438 = vmatprep.subr.mxu0 0.0
        %2439 = vmatpush1.msra.mxu0 0.0
        %2440 = vmatprep.subr.mxu0 0.0
        %2441 = vmatpush1.msra.mxu0 0.0
        %2442 = vmatprep.subr.mxu0 0.0
        %2443 = vmatpush1.msra.mxu0 0.0
        %2444 = vmatprep.subr.mxu0 0.0
        %2445 = vmatpush1.msra.mxu0 0.0
        %2446 = vmatprep.subr.mxu0 0.0
        %2447 = vmatpush1.msra.mxu0 0.0
        %2448 = vmatprep.subr.mxu0 0.0
        %2449 = vmatpush1.msra.mxu0 0.0
        %2450 = vmatprep.subr.mxu0 0.0
        %2451 = vmatpush1.msra.mxu0 0.0
        %2452 = vmatprep.subr.mxu0 0.0
        %2453 = vmatpush1.msra.mxu0 0.0
        %2454 = vmatprep.subr.mxu0 0.0
        %2455 = vmatpush1.msra.mxu0 0.0
        %2456 = vmatprep.subr.mxu0 0.0
        %2457 = vmatpush1.msra.mxu0 %v2087
        %2458 = vmatprep.subr.mxu0 0.0
        %2459 = vmatpush2.msra.mxu0 0.0
        %2460 = vmatprep.subr.mxu0 0.0
        %2461 = vmatpush2.msra.mxu0 0.0
        %2462 = vmatprep.subr.mxu0 0.0
        %2463 = vmatpush2.msra.mxu0 0.0
        %2464 = vmatprep.subr.mxu0 0.0
        %2465 = vmatpush2.msra.mxu0 0.0
        %2466 = vmatprep.subr.mxu0 0.0
        %2467 = vmatpush2.msra.mxu0 0.0
        %2468 = vmatprep.subr.mxu0 0.0
        %2469 = vmatpush2.msra.mxu0 0.0
        %2470 = vmatprep.subr.mxu0 0.0
        %2471 = vmatpush2.msra.mxu0 0.0
        %2472 = vmatprep.subr.mxu0 0.0
        %2473 = vmatpush2.msra.mxu0 0.0
        %2474 = vmatprep.subr.mxu0 0.0
        %2475 = vmatpush2.msra.mxu0 0.0
        %2476 = vmatprep.subr.mxu0 0.0
        %2477 = vmatpush2.msra.mxu0 0.0
        %2478 = vmatprep.subr.mxu0 0.0
        %2479 = vmatpush2.msra.mxu0 0.0
        %2480 = vmatprep.subr.mxu0 0.0
        %2481 = vmatpush2.msra.mxu0 0.0
        %2482 = vmatprep.subr.mxu0 0.0
        %2483 = vmatpush2.msra.mxu0 0.0
        %2484 = vmatprep.subr.mxu0 0.0
        %2485 = vmatpush2.msra.mxu0 0.0
        %2486 = vmatprep.subr.mxu0 0.0
        %2487 = vmatpush2.msra.mxu0 0.0
        %2488 = vmatprep.subr.mxu0 0.0
        %2489 = vmatpush2.msra.mxu0 0.0
        %2490 = vmatprep.mubr.f32.mxu0 0.0
        %2491 = vmatmul.mubr.f32.gmra.mxu0 %v2424
        %v2492 = vpop.f32.mrf.mxu0
        %v2493 = vadd.f32 0.0, %v2492
        %v2494 = vpop.f32.mrf.mxu0
        %2495 = vdwg.mxu0
        %v2497 = vsel %vm790, %v2253, 0
        %2499 = vmatprep.subr.mxu0 0.0
        %2500 = vmatpush1.msra.mxu0 0.0
        %2501 = vmatprep.subr.mxu0 0.0
        %2502 = vmatpush1.msra.mxu0 0.0
        %2503 = vmatprep.subr.mxu0 0.0
        %2504 = vmatpush1.msra.mxu0 0.0
        %2505 = vmatprep.subr.mxu0 0.0
        %2506 = vmatpush1.msra.mxu0 0.0
        %2507 = vmatprep.subr.mxu0 0.0
        %2508 = vmatpush1.msra.mxu0 0.0
        %2509 = vmatprep.subr.mxu0 0.0
        %2510 = vmatpush1.msra.mxu0 0.0
        %2511 = vmatprep.subr.mxu0 0.0
        %2512 = vmatpush1.msra.mxu0 0.0
        %2513 = vmatprep.subr.mxu0 0.0
        %2514 = vmatpush1.msra.mxu0 0.0
        %2515 = vmatprep.subr.mxu0 0.0
        %2516 = vmatpush1.msra.mxu0 0.0
        %2517 = vmatprep.subr.mxu0 0.0
        %2518 = vmatpush1.msra.mxu0 0.0
        %2519 = vmatprep.subr.mxu0 0.0
        %2520 = vmatpush1.msra.mxu0 0.0
        %2521 = vmatprep.subr.mxu0 0.0
        %2522 = vmatpush1.msra.mxu0 0.0
        %2523 = vmatprep.subr.mxu0 0.0
        %2524 = vmatpush1.msra.mxu0 0.0
        %2525 = vmatprep.subr.mxu0 0.0
        %2526 = vmatpush1.msra.mxu0 0.0
        %2527 = vmatprep.subr.mxu0 0.0
        %2528 = vmatpush1.msra.mxu0 0.0
        %2529 = vmatprep.subr.mxu0 0.0
        %2530 = vmatpush1.msra.mxu0 %v2086
        %2531 = vmatprep.subr.mxu0 0.0
        %2532 = vmatpush2.msra.mxu0 0.0
        %2533 = vmatprep.subr.mxu0 0.0
        %2534 = vmatpush2.msra.mxu0 0.0
        %2535 = vmatprep.subr.mxu0 0.0
        %2536 = vmatpush2.msra.mxu0 0.0
        %2537 = vmatprep.subr.mxu0 0.0
        %2538 = vmatpush2.msra.mxu0 0.0
        %2539 = vmatprep.subr.mxu0 0.0
        %2540 = vmatpush2.msra.mxu0 0.0
        %2541 = vmatprep.subr.mxu0 0.0
        %2542 = vmatpush2.msra.mxu0 0.0
        %2543 = vmatprep.subr.mxu0 0.0
        %2544 = vmatpush2.msra.mxu0 0.0
        %2545 = vmatprep.subr.mxu0 0.0
        %2546 = vmatpush2.msra.mxu0 0.0
        %2547 = vmatprep.subr.mxu0 0.0
        %2548 = vmatpush2.msra.mxu0 0.0
        %2549 = vmatprep.subr.mxu0 0.0
        %2550 = vmatpush2.msra.mxu0 0.0
        %2551 = vmatprep.subr.mxu0 0.0
        %2552 = vmatpush2.msra.mxu0 0.0
        %2553 = vmatprep.subr.mxu0 0.0
        %2554 = vmatpush2.msra.mxu0 0.0
        %2555 = vmatprep.subr.mxu0 0.0
        %2556 = vmatpush2.msra.mxu0 0.0
        %2557 = vmatprep.subr.mxu0 0.0
        %2558 = vmatpush2.msra.mxu0 0.0
        %2559 = vmatprep.subr.mxu0 0.0
        %2560 = vmatpush2.msra.mxu0 0.0
        %2561 = vmatprep.subr.mxu0 0.0
        %2562 = vmatpush2.msra.mxu0 0.0
        %2563 = vmatprep.mubr.f32.mxu0 0.0
        %2564 = vmatmul.mubr.f32.gmra.mxu0 %v2497
        %v2565 = vpop.f32.mrf.mxu0
        %v2566 = vadd.f32 %v2493, %v2565
        %v2567 = vpop.f32.mrf.mxu0
        %2568 = vdwg.mxu0
        %2569 = vrot.lane.b32.xlu0 %v2082, 112
        %v2570 = vpop.permute.xlu0 %2569
        %2571 = vrot.lane.b32.xlu0 %v2082, 80
        %v2572 = vpop.permute.xlu0 %2571
        %v2573 = vsel %vm790, %v2570, 0
        %v2575 = vsel %vm790, %v2572, 0
        %2577 = vmatprep.subr.mxu0 0.0
        %2578 = vmatpush1.xpose.msra.mxu0 0.0
        %2579 = vmatprep.subr.mxu0 0.0
        %2580 = vmatpush1.xpose.msra.mxu0 0.0
        %2581 = vmatprep.subr.mxu0 0.0
        %2582 = vmatpush1.xpose.msra.mxu0 0.0
        %2583 = vmatprep.subr.mxu0 0.0
        %2584 = vmatpush1.xpose.msra.mxu0 0.0
        %2585 = vmatprep.subr.mxu0 0.0
        %2586 = vmatpush1.xpose.msra.mxu0 0.0
        %2587 = vmatprep.subr.mxu0 0.0
        %2588 = vmatpush1.xpose.msra.mxu0 0.0
        %2589 = vmatprep.subr.mxu0 0.0
        %2590 = vmatpush1.xpose.msra.mxu0 0.0
        %2591 = vmatprep.subr.mxu0 0.0
        %2592 = vmatpush1.xpose.msra.mxu0 0.0
        %2593 = vmatprep.subr.mxu0 0.0
        %2594 = vmatpush1.xpose.msra.mxu0 0.0
        %2595 = vmatprep.subr.mxu0 0.0
        %2596 = vmatpush1.xpose.msra.mxu0 0.0
        %2597 = vmatprep.subr.mxu0 0.0
        %2598 = vmatpush1.xpose.msra.mxu0 0.0
        %2599 = vmatprep.subr.mxu0 0.0
        %2600 = vmatpush1.xpose.msra.mxu0 0.0
        %2601 = vmatprep.subr.mxu0 0.0
        %2602 = vmatpush1.xpose.msra.mxu0 0.0
        %2603 = vmatprep.subr.mxu0 0.0
        %2604 = vmatpush1.xpose.msra.mxu0 0.0
        %2605 = vmatprep.subr.mxu0 0.0
        %2606 = vmatpush1.xpose.msra.mxu0 0.0
        %2607 = vmatprep.subr.mxu0 0.0
        %2608 = vmatpush1.xpose.msra.mxu0 %v2575
        %2609 = vmatprep.subr.mxu0 0.0
        %2610 = vmatpush2.xpose.msra.mxu0 0.0
        %2611 = vmatprep.subr.mxu0 0.0
        %2612 = vmatpush2.xpose.msra.mxu0 0.0
        %2613 = vmatprep.subr.mxu0 0.0
        %2614 = vmatpush2.xpose.msra.mxu0 0.0
        %2615 = vmatprep.subr.mxu0 0.0
        %2616 = vmatpush2.xpose.msra.mxu0 0.0
        %2617 = vmatprep.subr.mxu0 0.0
        %2618 = vmatpush2.xpose.msra.mxu0 0.0
        %2619 = vmatprep.subr.mxu0 0.0
        %2620 = vmatpush2.xpose.msra.mxu0 0.0
        %2621 = vmatprep.subr.mxu0 0.0
        %2622 = vmatpush2.xpose.msra.mxu0 0.0
        %2623 = vmatprep.subr.mxu0 0.0
        %2624 = vmatpush2.xpose.msra.mxu0 0.0
        %2625 = vmatprep.subr.mxu0 0.0
        %2626 = vmatpush2.xpose.msra.mxu0 0.0
        %2627 = vmatprep.subr.mxu0 0.0
        %2628 = vmatpush2.xpose.msra.mxu0 0.0
        %2629 = vmatprep.subr.mxu0 0.0
        %2630 = vmatpush2.xpose.msra.mxu0 0.0
        %2631 = vmatprep.subr.mxu0 0.0
        %2632 = vmatpush2.xpose.msra.mxu0 0.0
        %2633 = vmatprep.subr.mxu0 0.0
        %2634 = vmatpush2.xpose.msra.mxu0 0.0
        %2635 = vmatprep.subr.mxu0 0.0
        %2636 = vmatpush2.xpose.msra.mxu0 0.0
        %2637 = vmatprep.subr.mxu0 0.0
        %2638 = vmatpush2.xpose.msra.mxu0 0.0
        %2639 = vmatprep.subr.mxu0 0.0
        %2640 = vmatpush2.xpose.msra.mxu0 0.0
        %2641 = vmatprep.mubr.f32.mxu0 0.0
        %2642 = vmatmul.mubr.f32.gmra.mxu0 %v2573
        %v2643 = vpop.f32.mrf.mxu0
        %v2644 = vadd.f32 0.0, %v2643
        %v2645 = vpop.f32.mrf.mxu0
        %2646 = vdwg.mxu0
        %v2647 = vmul.f32 %v2644, 0.35355338
        %v2648 = vadd.f32 %v2647, %v698
        %v2649 = vsel %vm790, %v2648, -inf
        %2650 = vmax.xlane.f32.xlu0 %v2649
        %v2651 = vpop.xlane.xlu0 %2650
        %v2652 = vsub.f32 %v2648, %v2651
        %v2653 = vmul.f32 %v2652, 1.442695
        %v2654 = vpow.pop %v2653
        %v2655 = vsel %vm790, %v2654, 0.0
        %2656 = vadd.xlane.f32.xlu0 %v2655
        %v2657 = vpop.xlane.xlu0 %2656
        %v2658 = vrcp.pop %v2657
        %v2659 = vmul.f32 %v2654, %v2658
        %2660 = vrot.lane.b32.xlu0 %v2082, 48
        %v2661 = vpop.permute.xlu0 %2660
        %v2664 = vsel %vm790, %v2659, 0
        %2666 = vmatprep.subr.mxu0 0.0
        %2667 = vmatpush1.msra.mxu0 0.0
        %2668 = vmatprep.subr.mxu0 0.0
        %2669 = vmatpush1.msra.mxu0 0.0
        %2670 = vmatprep.subr.mxu0 0.0
        %2671 = vmatpush1.msra.mxu0 0.0
        %2672 = vmatprep.subr.mxu0 0.0
        %2673 = vmatpush1.msra.mxu0 0.0
        %2674 = vmatprep.subr.mxu0 0.0
        %2675 = vmatpush1.msra.mxu0 0.0
        %2676 = vmatprep.subr.mxu0 0.0
        %2677 = vmatpush1.msra.mxu0 0.0
        %2678 = vmatprep.subr.mxu0 0.0
        %2679 = vmatpush1.msra.mxu0 0.0
        %2680 = vmatprep.subr.mxu0 0.0
        %2681 = vmatpush1.msra.mxu0 0.0
        %2682 = vmatprep.subr.mxu0 0.0
        %2683 = vmatpush1.msra.mxu0 0.0
        %2684 = vmatprep.subr.mxu0 0.0
        %2685 = vmatpush1.msra.mxu0 0.0
        %2686 = vmatprep.subr.mxu0 0.0
        %2687 = vmatpush1.msra.mxu0 0.0
        %2688 = vmatprep.subr.mxu0 0.0
        %2689 = vmatpush1.msra.mxu0 0.0
        %2690 = vmatprep.subr.mxu0 0.0
        %2691 = vmatpush1.msra.mxu0 0.0
        %2692 = vmatprep.subr.mxu0 0.0
        %2693 = vmatpush1.msra.mxu0 0.0
        %2694 = vmatprep.subr.mxu0 0.0
        %2695 = vmatpush1.msra.mxu0 0.0
        %2696 = vmatprep.subr.mxu0 0.0
        %2697 = vmatpush1.msra.mxu0 %v2661
        %2698 = vmatprep.subr.mxu0 0.0
        %2699 = vmatpush2.msra.mxu0 0.0
        %2700 = vmatprep.subr.mxu0 0.0
        %2701 = vmatpush2.msra.mxu0 0.0
        %2702 = vmatprep.subr.mxu0 0.0
        %2703 = vmatpush2.msra.mxu0 0.0
        %2704 = vmatprep.subr.mxu0 0.0
        %2705 = vmatpush2.msra.mxu0 0.0
        %2706 = vmatprep.subr.mxu0 0.0
        %2707 = vmatpush2.msra.mxu0 0.0
        %2708 = vmatprep.subr.mxu0 0.0
        %2709 = vmatpush2.msra.mxu0 0.0
        %2710 = vmatprep.subr.mxu0 0.0
        %2711 = vmatpush2.msra.mxu0 0.0
        %2712 = vmatprep.subr.mxu0 0.0
        %2713 = vmatpush2.msra.mxu0 0.0
        %2714 = vmatprep.subr.mxu0 0.0
        %2715 = vmatpush2.msra.mxu0 0.0
        %2716 = vmatprep.subr.mxu0 0.0
        %2717 = vmatpush2.msra.mxu0 0.0
        %2718 = vmatprep.subr.mxu0 0.0
        %2719 = vmatpush2.msra.mxu0 0.0
        %2720 = vmatprep.subr.mxu0 0.0
        %2721 = vmatpush2.msra.mxu0 0.0
        %2722 = vmatprep.subr.mxu0 0.0
        %2723 = vmatpush2.msra.mxu0 0.0
        %2724 = vmatprep.subr.mxu0 0.0
        %2725 = vmatpush2.msra.mxu0 0.0
        %2726 = vmatprep.subr.mxu0 0.0
        %2727 = vmatpush2.msra.mxu0 0.0
        %2728 = vmatprep.subr.mxu0 0.0
        %2729 = vmatpush2.msra.mxu0 0.0
        %2730 = vmatprep.mubr.f32.mxu0 0.0
        %2731 = vmatmul.mubr.f32.gmra.mxu0 %v2664
        %v2732 = vpop.f32.mrf.mxu0
        %v2733 = vadd.f32 0.0, %v2732
        %v2734 = vpop.f32.mrf.mxu0
        %2735 = vdwg.mxu0
        %v2737 = vsel %vm790, %v2733, 0
        %2739 = vmatprep.subr.mxu0 0.0
        %2740 = vmatpush1.msra.mxu0 0.0
        %2741 = vmatprep.subr.mxu0 0.0
        %2742 = vmatpush1.msra.mxu0 0.0
        %2743 = vmatprep.subr.mxu0 0.0
        %2744 = vmatpush1.msra.mxu0 0.0
        %2745 = vmatprep.subr.mxu0 0.0
        %2746 = vmatpush1.msra.mxu0 0.0
        %2747 = vmatprep.subr.mxu0 0.0
        %2748 = vmatpush1.msra.mxu0 0.0
        %2749 = vmatprep.subr.mxu0 0.0
        %2750 = vmatpush1.msra.mxu0 0.0
        %2751 = vmatprep.subr.mxu0 0.0
        %2752 = vmatpush1.msra.mxu0 0.0
        %2753 = vmatprep.subr.mxu0 0.0
        %2754 = vmatpush1.msra.mxu0 0.0
        %2755 = vmatprep.subr.mxu0 0.0
        %2756 = vmatpush1.msra.mxu0 0.0
        %2757 = vmatprep.subr.mxu0 0.0
        %2758 = vmatpush1.msra.mxu0 0.0
        %2759 = vmatprep.subr.mxu0 0.0
        %2760 = vmatpush1.msra.mxu0 0.0
        %2761 = vmatprep.subr.mxu0 0.0
        %2762 = vmatpush1.msra.mxu0 0.0
        %2763 = vmatprep.subr.mxu0 0.0
        %2764 = vmatpush1.msra.mxu0 0.0
        %2765 = vmatprep.subr.mxu0 0.0
        %2766 = vmatpush1.msra.mxu0 0.0
        %2767 = vmatprep.subr.mxu0 0.0
        %2768 = vmatpush1.msra.mxu0 0.0
        %2769 = vmatprep.subr.mxu0 0.0
        %2770 = vmatpush1.msra.mxu0 %v2088
        %2771 = vmatprep.subr.mxu0 0.0
        %2772 = vmatpush2.msra.mxu0 0.0
        %2773 = vmatprep.subr.mxu0 0.0
        %2774 = vmatpush2.msra.mxu0 0.0
        %2775 = vmatprep.subr.mxu0 0.0
        %2776 = vmatpush2.msra.mxu0 0.0
        %2777 = vmatprep.subr.mxu0 0.0
        %2778 = vmatpush2.msra.mxu0 0.0
        %2779 = vmatprep.subr.mxu0 0.0
        %2780 = vmatpush2.msra.mxu0 0.0
        %2781 = vmatprep.subr.mxu0 0.0
        %2782 = vmatpush2.msra.mxu0 0.0
        %2783 = vmatprep.subr.mxu0 0.0
        %2784 = vmatpush2.msra.mxu0 0.0
        %2785 = vmatprep.subr.mxu0 0.0
        %2786 = vmatpush2.msra.mxu0 0.0
        %2787 = vmatprep.subr.mxu0 0.0
        %2788 = vmatpush2.msra.mxu0 0.0
        %2789 = vmatprep.subr.mxu0 0.0
        %2790 = vmatpush2.msra.mxu0 0.0
        %2791 = vmatprep.subr.mxu0 0.0
        %2792 = vmatpush2.msra.mxu0 0.0
        %2793 = vmatprep.subr.mxu0 0.0
        %2794 = vmatpush2.msra.mxu0 0.0
        %2795 = vmatprep.subr.mxu0 0.0
        %2796 = vmatpush2.msra.mxu0 0.0
        %2797 = vmatprep.subr.mxu0 0.0
        %2798 = vmatpush2.msra.mxu0 0.0
        %2799 = vmatprep.subr.mxu0 0.0
        %2800 = vmatpush2.msra.mxu0 0.0
        %2801 = vmatprep.subr.mxu0 0.0
        %2802 = vmatpush2.msra.mxu0 0.0
        %2803 = vmatprep.mubr.f32.mxu0 0.0
        %2804 = vmatmul.mubr.f32.gmra.mxu0 %v2737
        %v2805 = vpop.f32.mrf.mxu0
        %v2806 = vadd.f32 0.0, %v2805
        %v2807 = vpop.f32.mrf.mxu0
        %2808 = vdwg.mxu0
        %v2809 = vadd.f32 %v2566, %v2806
        %2810 = vrot.lane.b32.xlu0 %v2082, 104
        %v2811 = vpop.permute.xlu0 %2810
        %2812 = vrot.lane.b32.xlu0 %v2082, 72
        %v2813 = vpop.permute.xlu0 %2812
        %v2814 = vsel %vm790, %v2811, 0
        %v2816 = vsel %vm790, %v2813, 0
        %2818 = vmatprep.subr.mxu0 0.0
        %2819 = vmatpush1.xpose.msra.mxu0 0.0
        %2820 = vmatprep.subr.mxu0 0.0
        %2821 = vmatpush1.xpose.msra.mxu0 0.0
        %2822 = vmatprep.subr.mxu0 0.0
        %2823 = vmatpush1.xpose.msra.mxu0 0.0
        %2824 = vmatprep.subr.mxu0 0.0
        %2825 = vmatpush1.xpose.msra.mxu0 0.0
        %2826 = vmatprep.subr.mxu0 0.0
        %2827 = vmatpush1.xpose.msra.mxu0 0.0
        %2828 = vmatprep.subr.mxu0 0.0
        %2829 = vmatpush1.xpose.msra.mxu0 0.0
        %2830 = vmatprep.subr.mxu0 0.0
        %2831 = vmatpush1.xpose.msra.mxu0 0.0
        %2832 = vmatprep.subr.mxu0 0.0
        %2833 = vmatpush1.xpose.msra.mxu0 0.0
        %2834 = vmatprep.subr.mxu0 0.0
        %2835 = vmatpush1.xpose.msra.mxu0 0.0
        %2836 = vmatprep.subr.mxu0 0.0
        %2837 = vmatpush1.xpose.msra.mxu0 0.0
        %2838 = vmatprep.subr.mxu0 0.0
        %2839 = vmatpush1.xpose.msra.mxu0 0.0
        %2840 = vmatprep.subr.mxu0 0.0
        %2841 = vmatpush1.xpose.msra.mxu0 0.0
        %2842 = vmatprep.subr.mxu0 0.0
        %2843 = vmatpush1.xpose.msra.mxu0 0.0
        %2844 = vmatprep.subr.mxu0 0.0
        %2845 = vmatpush1.xpose.msra.mxu0 0.0
        %2846 = vmatprep.subr.mxu0 0.0
        %2847 = vmatpush1.xpose.msra.mxu0 0.0
        %2848 = vmatprep.subr.mxu0 0.0
        %2849 = vmatpush1.xpose.msra.mxu0 %v2816
        %2850 = vmatprep.subr.mxu0 0.0
        %2851 = vmatpush2.xpose.msra.mxu0 0.0
        %2852 = vmatprep.subr.mxu0 0.0
        %2853 = vmatpush2.xpose.msra.mxu0 0.0
        %2854 = vmatprep.subr.mxu0 0.0
        %2855 = vmatpush2.xpose.msra.mxu0 0.0
        %2856 = vmatprep.subr.mxu0 0.0
        %2857 = vmatpush2.xpose.msra.mxu0 0.0
        %2858 = vmatprep.subr.mxu0 0.0
        %2859 = vmatpush2.xpose.msra.mxu0 0.0
        %2860 = vmatprep.subr.mxu0 0.0
        %2861 = vmatpush2.xpose.msra.mxu0 0.0
        %2862 = vmatprep.subr.mxu0 0.0
        %2863 = vmatpush2.xpose.msra.mxu0 0.0
        %2864 = vmatprep.subr.mxu0 0.0
        %2865 = vmatpush2.xpose.msra.mxu0 0.0
        %2866 = vmatprep.subr.mxu0 0.0
        %2867 = vmatpush2.xpose.msra.mxu0 0.0
        %2868 = vmatprep.subr.mxu0 0.0
        %2869 = vmatpush2.xpose.msra.mxu0 0.0
        %2870 = vmatprep.subr.mxu0 0.0
        %2871 = vmatpush2.xpose.msra.mxu0 0.0
        %2872 = vmatprep.subr.mxu0 0.0
        %2873 = vmatpush2.xpose.msra.mxu0 0.0
        %2874 = vmatprep.subr.mxu0 0.0
        %2875 = vmatpush2.xpose.msra.mxu0 0.0
        %2876 = vmatprep.subr.mxu0 0.0
        %2877 = vmatpush2.xpose.msra.mxu0 0.0
        %2878 = vmatprep.subr.mxu0 0.0
        %2879 = vmatpush2.xpose.msra.mxu0 0.0
        %2880 = vmatprep.subr.mxu0 0.0
        %2881 = vmatpush2.xpose.msra.mxu0 0.0
        %2882 = vmatprep.mubr.f32.mxu0 0.0
        %2883 = vmatmul.mubr.f32.gmra.mxu0 %v2814
        %v2884 = vpop.f32.mrf.mxu0
        %v2885 = vadd.f32 0.0, %v2884
        %v2886 = vpop.f32.mrf.mxu0
        %2887 = vdwg.mxu0
        %v2888 = vmul.f32 %v2885, 0.35355338
        %v2889 = vadd.f32 %v2888, %v698
        %v2890 = vsel %vm790, %v2889, -inf
        %2891 = vmax.xlane.f32.xlu0 %v2890
        %v2892 = vpop.xlane.xlu0 %2891
        %v2893 = vsub.f32 %v2889, %v2892
        %v2894 = vmul.f32 %v2893, 1.442695
        %v2895 = vpow.pop %v2894
        %v2896 = vsel %vm790, %v2895, 0.0
        %2897 = vadd.xlane.f32.xlu0 %v2896
        %v2898 = vpop.xlane.xlu0 %2897
        %v2899 = vrcp.pop %v2898
        %v2900 = vmul.f32 %v2895, %v2899
        %2901 = vrot.lane.b32.xlu0 %v2082, 40
        %v2902 = vpop.permute.xlu0 %2901
        %v2905 = vsel %vm790, %v2900, 0
        %2907 = vmatprep.subr.mxu0 0.0
        %2908 = vmatpush1.msra.mxu0 0.0
        %2909 = vmatprep.subr.mxu0 0.0
        %2910 = vmatpush1.msra.mxu0 0.0
        %2911 = vmatprep.subr.mxu0 0.0
        %2912 = vmatpush1.msra.mxu0 0.0
        %2913 = vmatprep.subr.mxu0 0.0
        %2914 = vmatpush1.msra.mxu0 0.0
        %2915 = vmatprep.subr.mxu0 0.0
        %2916 = vmatpush1.msra.mxu0 0.0
        %2917 = vmatprep.subr.mxu0 0.0
        %2918 = vmatpush1.msra.mxu0 0.0
        %2919 = vmatprep.subr.mxu0 0.0
        %2920 = vmatpush1.msra.mxu0 0.0
        %2921 = vmatprep.subr.mxu0 0.0
        %2922 = vmatpush1.msra.mxu0 0.0
        %2923 = vmatprep.subr.mxu0 0.0
        %2924 = vmatpush1.msra.mxu0 0.0
        %2925 = vmatprep.subr.mxu0 0.0
        %2926 = vmatpush1.msra.mxu0 0.0
        %2927 = vmatprep.subr.mxu0 0.0
        %2928 = vmatpush1.msra.mxu0 0.0
        %2929 = vmatprep.subr.mxu0 0.0
        %2930 = vmatpush1.msra.mxu0 0.0
        %2931 = vmatprep.subr.mxu0 0.0
        %2932 = vmatpush1.msra.mxu0 0.0
        %2933 = vmatprep.subr.mxu0 0.0
        %2934 = vmatpush1.msra.mxu0 0.0
        %2935 = vmatprep.subr.mxu0 0.0
        %2936 = vmatpush1.msra.mxu0 0.0
        %2937 = vmatprep.subr.mxu0 0.0
        %2938 = vmatpush1.msra.mxu0 %v2902
        %2939 = vmatprep.subr.mxu0 0.0
        %2940 = vmatpush2.msra.mxu0 0.0
        %2941 = vmatprep.subr.mxu0 0.0
        %2942 = vmatpush2.msra.mxu0 0.0
        %2943 = vmatprep.subr.mxu0 0.0
        %2944 = vmatpush2.msra.mxu0 0.0
        %2945 = vmatprep.subr.mxu0 0.0
        %2946 = vmatpush2.msra.mxu0 0.0
        %2947 = vmatprep.subr.mxu0 0.0
        %2948 = vmatpush2.msra.mxu0 0.0
        %2949 = vmatprep.subr.mxu0 0.0
        %2950 = vmatpush2.msra.mxu0 0.0
        %2951 = vmatprep.subr.mxu0 0.0
        %2952 = vmatpush2.msra.mxu0 0.0
        %2953 = vmatprep.subr.mxu0 0.0
        %2954 = vmatpush2.msra.mxu0 0.0
        %2955 = vmatprep.subr.mxu0 0.0
        %2956 = vmatpush2.msra.mxu0 0.0
        %2957 = vmatprep.subr.mxu0 0.0
        %2958 = vmatpush2.msra.mxu0 0.0
        %2959 = vmatprep.subr.mxu0 0.0
        %2960 = vmatpush2.msra.mxu0 0.0
        %2961 = vmatprep.subr.mxu0 0.0
        %2962 = vmatpush2.msra.mxu0 0.0
        %2963 = vmatprep.subr.mxu0 0.0
        %2964 = vmatpush2.msra.mxu0 0.0
        %2965 = vmatprep.subr.mxu0 0.0
        %2966 = vmatpush2.msra.mxu0 0.0
        %2967 = vmatprep.subr.mxu0 0.0
        %2968 = vmatpush2.msra.mxu0 0.0
        %2969 = vmatprep.subr.mxu0 0.0
        %2970 = vmatpush2.msra.mxu0 0.0
        %2971 = vmatprep.mubr.f32.mxu0 0.0
        %2972 = vmatmul.mubr.f32.gmra.mxu0 %v2905
        %v2973 = vpop.f32.mrf.mxu0
        %v2974 = vadd.f32 0.0, %v2973
        %v2975 = vpop.f32.mrf.mxu0
        %2976 = vdwg.mxu0
        %v2978 = vsel %vm790, %v2974, 0
        %2980 = vmatprep.subr.mxu0 0.0
        %2981 = vmatpush1.msra.mxu0 0.0
        %2982 = vmatprep.subr.mxu0 0.0
        %2983 = vmatpush1.msra.mxu0 0.0
        %2984 = vmatprep.subr.mxu0 0.0
        %2985 = vmatpush1.msra.mxu0 0.0
        %2986 = vmatprep.subr.mxu0 0.0
        %2987 = vmatpush1.msra.mxu0 0.0
        %2988 = vmatprep.subr.mxu0 0.0
        %2989 = vmatpush1.msra.mxu0 0.0
        %2990 = vmatprep.subr.mxu0 0.0
        %2991 = vmatpush1.msra.mxu0 0.0
        %2992 = vmatprep.subr.mxu0 0.0
        %2993 = vmatpush1.msra.mxu0 0.0
        %2994 = vmatprep.subr.mxu0 0.0
        %2995 = vmatpush1.msra.mxu0 0.0
        %2996 = vmatprep.subr.mxu0 0.0
        %2997 = vmatpush1.msra.mxu0 0.0
        %2998 = vmatprep.subr.mxu0 0.0
        %2999 = vmatpush1.msra.mxu0 0.0
        %3000 = vmatprep.subr.mxu0 0.0
        %3001 = vmatpush1.msra.mxu0 0.0
        %3002 = vmatprep.subr.mxu0 0.0
        %3003 = vmatpush1.msra.mxu0 0.0
        %3004 = vmatprep.subr.mxu0 0.0
        %3005 = vmatpush1.msra.mxu0 0.0
        %3006 = vmatprep.subr.mxu0 0.0
        %3007 = vmatpush1.msra.mxu0 0.0
        %3008 = vmatprep.subr.mxu0 0.0
        %3009 = vmatpush1.msra.mxu0 0.0
        %3010 = vmatprep.subr.mxu0 0.0
        %3011 = vmatpush1.msra.mxu0 %v2089
        %3012 = vmatprep.subr.mxu0 0.0
        %3013 = vmatpush2.msra.mxu0 0.0
        %3014 = vmatprep.subr.mxu0 0.0
        %3015 = vmatpush2.msra.mxu0 0.0
        %3016 = vmatprep.subr.mxu0 0.0
        %3017 = vmatpush2.msra.mxu0 0.0
        %3018 = vmatprep.subr.mxu0 0.0
        %3019 = vmatpush2.msra.mxu0 0.0
        %3020 = vmatprep.subr.mxu0 0.0
        %3021 = vmatpush2.msra.mxu0 0.0
        %3022 = vmatprep.subr.mxu0 0.0
        %3023 = vmatpush2.msra.mxu0 0.0
        %3024 = vmatprep.subr.mxu0 0.0
        %3025 = vmatpush2.msra.mxu0 0.0
        %3026 = vmatprep.subr.mxu0 0.0
        %3027 = vmatpush2.msra.mxu0 0.0
        %3028 = vmatprep.subr.mxu0 0.0
        %3029 = vmatpush2.msra.mxu0 0.0
        %3030 = vmatprep.subr.mxu0 0.0
        %3031 = vmatpush2.msra.mxu0 0.0
        %3032 = vmatprep.subr.mxu0 0.0
        %3033 = vmatpush2.msra.mxu0 0.0
        %3034 = vmatprep.subr.mxu0 0.0
        %3035 = vmatpush2.msra.mxu0 0.0
        %3036 = vmatprep.subr.mxu0 0.0
        %3037 = vmatpush2.msra.mxu0 0.0
        %3038 = vmatprep.subr.mxu0 0.0
        %3039 = vmatpush2.msra.mxu0 0.0
        %3040 = vmatprep.subr.mxu0 0.0
        %3041 = vmatpush2.msra.mxu0 0.0
        %3042 = vmatprep.subr.mxu0 0.0
        %3043 = vmatpush2.msra.mxu0 0.0
        %3044 = vmatprep.mubr.f32.mxu0 0.0
        %3045 = vmatmul.mubr.f32.gmra.mxu0 %v2978
        %v3046 = vpop.f32.mrf.mxu0
        %v3047 = vadd.f32 0.0, %v3046
        %v3048 = vpop.f32.mrf.mxu0
        %3049 = vdwg.mxu0
        %v3050 = vadd.f32 %v2809, %v3047
        %s3051 = scalar_lea.vmem %s7, 1
        %v3052 = vld [vmem:[%s3051] sm:$0x1]
        %v3054 = vlaneseq
        %v3055 = vshrl.u32 %v3054, 7
        %v3056 = vsub.s32 0, %v3055
        %v3057 = vrot.slane %v3052, %v3056
        %v3059 = vadd.f32 %v3050, %v3057
        %v3060 = vadd.f32 %v1998, %v3059
        %s3061 = scalar_lea.vmem %s8, 1
        %v3062 = vld [vmem:[%s3061] sm:$0x1]
        %s3063 = scalar_lea.vmem %s9, 1
        %v3064 = vld [vmem:[%s3063] sm:$0x1]
        %v3065 = vsel %vm669, %v3060, 0.0
        %3066 = vadd.xlane.f32.xlu0 %v3065
        %v3067 = vpop.xlane.xlu0 %3066
        %v3068 = vmul.f32 %v3067, %v673
        %v3069 = vsub.f32 %v3060, %v3068
        %v3070 = vmul.f32 %v3069, %v3069
        %v3071 = vsel %vm669, %v3070, 0.0
        %3072 = vadd.xlane.f32.xlu0 %v3071
        %v3073 = vpop.xlane.xlu0 %3072
        %v3074 = vmul.f32 %v3073, %v673
        %v3075 = vadd.f32 %v3074, 1e-12
        %v3076 = vrsqrt.pop %v3075
        %v3077 = vmul.f32 %v3069, %v3076
        %v3079 = vlaneseq
        %v3080 = vshrl.u32 %v3079, 7
        %v3081 = vsub.s32 0, %v3080
        %v3082 = vrot.slane %v3062, %v3081
        %v3084 = vmul.f32 %v3077, %v3082
        %v3086 = vlaneseq
        %v3087 = vshrl.u32 %v3086, 7
        %v3088 = vsub.s32 0, %v3087
        %v3089 = vrot.slane %v3064, %v3088
        %v3091 = vadd.f32 %v3084, %v3089
        %s3092 = scalar_lea.vmem %s10, 32
        %v3093 = vld [vmem:[%s3092] sm:$0xff]
        %v3094 = vld [vmem:[%s3092 + $0x8] sm:$0xff]
        %v3095 = vld [vmem:[%s3092 + $0x10] sm:$0xff]
        %v3096 = vld [vmem:[%s3092 + $0x18] sm:$0xff]
        %s3097 = scalar_lea.vmem %s11, 1
        %v3098 = vld [vmem:[%s3097] sm:$0x1]
        %v3100 = vlaneseq
        %v3101 = vshrl.u32 %v3100, 7
        %v3102 = vsub.s32 0, %v3101
        %v3103 = vrot.slane %v3098, %v3102
        %v3106 = vsel %vm669, %v3091, 0
        %3108 = vmatprep.subr.mxu0 0.0
        %3109 = vmatpush1.msra.mxu0 0.0
        %3110 = vmatprep.subr.mxu0 0.0
        %3111 = vmatpush1.msra.mxu0 0.0
        %3112 = vmatprep.subr.mxu0 0.0
        %3113 = vmatpush1.msra.mxu0 0.0
        %3114 = vmatprep.subr.mxu0 0.0
        %3115 = vmatpush1.msra.mxu0 0.0
        %3116 = vmatprep.subr.mxu0 0.0
        %3117 = vmatpush1.msra.mxu0 0.0
        %3118 = vmatprep.subr.mxu0 0.0
        %3119 = vmatpush1.msra.mxu0 0.0
        %3120 = vmatprep.subr.mxu0 0.0
        %3121 = vmatpush1.msra.mxu0 0.0
        %3122 = vmatprep.subr.mxu0 0.0
        %3123 = vmatpush1.msra.mxu0 0.0
        %3124 = vmatprep.subr.mxu0 0.0
        %3125 = vmatpush1.msra.mxu0 0.0
        %3126 = vmatprep.subr.mxu0 0.0
        %3127 = vmatpush1.msra.mxu0 0.0
        %3128 = vmatprep.subr.mxu0 0.0
        %3129 = vmatpush1.msra.mxu0 0.0
        %3130 = vmatprep.subr.mxu0 0.0
        %3131 = vmatpush1.msra.mxu0 0.0
        %3132 = vmatprep.subr.mxu0 0.0
        %3133 = vmatpush1.msra.mxu0 %v3096
        %3134 = vmatprep.subr.mxu0 0.0
        %3135 = vmatpush1.msra.mxu0 %v3095
        %3136 = vmatprep.subr.mxu0 0.0
        %3137 = vmatpush1.msra.mxu0 %v3094
        %3138 = vmatprep.subr.mxu0 0.0
        %3139 = vmatpush1.msra.mxu0 %v3093
        %3140 = vmatprep.subr.mxu0 0.0
        %3141 = vmatpush2.msra.mxu0 0.0
        %3142 = vmatprep.subr.mxu0 0.0
        %3143 = vmatpush2.msra.mxu0 0.0
        %3144 = vmatprep.subr.mxu0 0.0
        %3145 = vmatpush2.msra.mxu0 0.0
        %3146 = vmatprep.subr.mxu0 0.0
        %3147 = vmatpush2.msra.mxu0 0.0
        %3148 = vmatprep.subr.mxu0 0.0
        %3149 = vmatpush2.msra.mxu0 0.0
        %3150 = vmatprep.subr.mxu0 0.0
        %3151 = vmatpush2.msra.mxu0 0.0
        %3152 = vmatprep.subr.mxu0 0.0
        %3153 = vmatpush2.msra.mxu0 0.0
        %3154 = vmatprep.subr.mxu0 0.0
        %3155 = vmatpush2.msra.mxu0 0.0
        %3156 = vmatprep.subr.mxu0 0.0
        %3157 = vmatpush2.msra.mxu0 0.0
        %3158 = vmatprep.subr.mxu0 0.0
        %3159 = vmatpush2.msra.mxu0 0.0
        %3160 = vmatprep.subr.mxu0 0.0
        %3161 = vmatpush2.msra.mxu0 0.0
        %3162 = vmatprep.subr.mxu0 0.0
        %3163 = vmatpush2.msra.mxu0 0.0
        %3164 = vmatprep.subr.mxu0 0.0
        %3165 = vmatpush2.msra.mxu0 0.0
        %3166 = vmatprep.subr.mxu0 0.0
        %3167 = vmatpush2.msra.mxu0 0.0
        %3168 = vmatprep.subr.mxu0 0.0
        %3169 = vmatpush2.msra.mxu0 0.0
        %3170 = vmatprep.subr.mxu0 0.0
        %3171 = vmatpush2.msra.mxu0 0.0
        %3172 = vmatprep.mubr.f32.mxu0 0.0
        %3173 = vmatmul.mubr.f32.gmra.mxu0 %v3106
        %v3174 = vpop.f32.mrf.mxu0
        %v3175 = vadd.f32 %v3103, %v3174
        %v3176 = vpop.f32.mrf.mxu0
        %3177 = vdwg.mxu0
        %v3178 = vmul.f32 %v3175, %v3175
        %v3179 = vmul.f32 %v3175, %v3178
        %v3180 = vmul.f32 %v3179, 0.044715
        %v3181 = vadd.f32 %v3175, %v3180
        %v3182 = vmul.f32 %v3181, 0.7978846
        %v3183 = vtanh.pop %v3182
        %v3184 = vadd.f32 %v3183, 1.0
        %v3185 = vmul.f32 %v3184, 0.5
        %v3186 = vmul.f32 %v3175, %v3185
        %s3187 = scalar_lea.vmem %s12, 64
        %v3188 = vld [vmem:[%s3187] sm:$0xff]
        %v3189 = vld [vmem:[%s3187 + $0x8] sm:$0xff]
        %v3190 = vld [vmem:[%s3187 + $0x10] sm:$0xff]
        %v3191 = vld [vmem:[%s3187 + $0x18] sm:$0xff]
        %v3192 = vld [vmem:[%s3187 + $0x20] sm:$0xff]
        %v3193 = vld [vmem:[%s3187 + $0x28] sm:$0xff]
        %v3194 = vld [vmem:[%s3187 + $0x30] sm:$0xff]
        %v3195 = vld [vmem:[%s3187 + $0x38] sm:$0xff]
        %s3196 = scalar_lea.vmem %s13, 1
        %v3197 = vld [vmem:[%s3196] sm:$0x1]
        %v3199 = vlaneseq
        %v3200 = vshrl.u32 %v3199, 7
        %v3201 = vsub.s32 0, %v3200
        %v3202 = vrot.slane %v3197, %v3201
        %v3205 = vsel %vm1895, %v3186, 0
        %3207 = vmatprep.subr.mxu0 0.0
        %3208 = vmatpush1.msra.mxu0 0.0
        %3209 = vmatprep.subr.mxu0 0.0
        %3210 = vmatpush1.msra.mxu0 0.0
        %3211 = vmatprep.subr.mxu0 0.0
        %3212 = vmatpush1.msra.mxu0 0.0
        %3213 = vmatprep.subr.mxu0 0.0
        %3214 = vmatpush1.msra.mxu0 0.0
        %3215 = vmatprep.subr.mxu0 0.0
        %3216 = vmatpush1.msra.mxu0 0.0
        %3217 = vmatprep.subr.mxu0 0.0
        %3218 = vmatpush1.msra.mxu0 0.0
        %3219 = vmatprep.subr.mxu0 0.0
        %3220 = vmatpush1.msra.mxu0 0.0
        %3221 = vmatprep.subr.mxu0 0.0
        %3222 = vmatpush1.msra.mxu0 0.0
        %3223 = vmatprep.subr.mxu0 0.0
        %3224 = vmatpush1.msra.mxu0 %v3195
        %3225 = vmatprep.subr.mxu0 0.0
        %3226 = vmatpush1.msra.mxu0 %v3194
        %3227 = vmatprep.subr.mxu0 0.0
        %3228 = vmatpush1.msra.mxu0 %v3193
        %3229 = vmatprep.subr.mxu0 0.0
        %3230 = vmatpush1.msra.mxu0 %v3192
        %3231 = vmatprep.subr.mxu0 0.0
        %3232 = vmatpush1.msra.mxu0 %v3191
        %3233 = vmatprep.subr.mxu0 0.0
        %3234 = vmatpush1.msra.mxu0 %v3190
        %3235 = vmatprep.subr.mxu0 0.0
        %3236 = vmatpush1.msra.mxu0 %v3189
        %3237 = vmatprep.subr.mxu0 0.0
        %3238 = vmatpush1.msra.mxu0 %v3188
        %3239 = vmatprep.subr.mxu0 0.0
        %3240 = vmatpush2.msra.mxu0 0.0
        %3241 = vmatprep.subr.mxu0 0.0
        %3242 = vmatpush2.msra.mxu0 0.0
        %3243 = vmatprep.subr.mxu0 0.0
        %3244 = vmatpush2.msra.mxu0 0.0
        %3245 = vmatprep.subr.mxu0 0.0
        %3246 = vmatpush2.msra.mxu0 0.0
        %3247 = vmatprep.subr.mxu0 0.0
        %3248 = vmatpush2.msra.mxu0 0.0
        %3249 = vmatprep.subr.mxu0 0.0
        %3250 = vmatpush2.msra.mxu0 0.0
        %3251 = vmatprep.subr.mxu0 0.0
        %3252 = vmatpush2.msra.mxu0 0.0
        %3253 = vmatprep.subr.mxu0 0.0
        %3254 = vmatpush2.msra.mxu0 0.0
        %3255 = vmatprep.subr.mxu0 0.0
        %3256 = vmatpush2.msra.mxu0 0.0
        %3257 = vmatprep.subr.mxu0 0.0
        %3258 = vmatpush2.msra.mxu0 0.0
        %3259 = vmatprep.subr.mxu0 0.0
        %3260 = vmatpush2.msra.mxu0 0.0
        %3261 = vmatprep.subr.mxu0 0.0
        %3262 = vmatpush2.msra.mxu0 0.0
        %3263 = vmatprep.subr.mxu0 0.0
        %3264 = vmatpush2.msra.mxu0 0.0
        %3265 = vmatprep.subr.mxu0 0.0
        %3266 = vmatpush2.msra.mxu0 0.0
        %3267 = vmatprep.subr.mxu0 0.0
        %3268 = vmatpush2.msra.mxu0 0.0
        %3269 = vmatprep.subr.mxu0 0.0
        %3270 = vmatpush2.msra.mxu0 0.0
        %3271 = vmatprep.mubr.f32.mxu0 0.0
        %3272 = vmatmul.mubr.f32.gmra.mxu0 %v3205
        %v3273 = vpop.f32.mrf.mxu0
        %v3274 = vadd.f32 %v3202, %v3273
        %v3275 = vpop.f32.mrf.mxu0
        %3276 = vdwg.mxu0
        %v3277 = vadd.f32 %v3091, %v3274
        %s3278 = scalar_lea.vmem %s14, 1
        %v3279 = vld [vmem:[%s3278] sm:$0x1]
        %s3280 = scalar_lea.vmem %s15, 1
        %v3281 = vld [vmem:[%s3280] sm:$0x1]
        %v3282 = vsel %vm669, %v3277, 0.0
        %3283 = vadd.xlane.f32.xlu0 %v3282
        %v3284 = vpop.xlane.xlu0 %3283
        %v3285 = vmul.f32 %v3284, %v673
        %v3286 = vsub.f32 %v3277, %v3285
        %v3287 = vmul.f32 %v3286, %v3286
        %v3288 = vsel %vm669, %v3287, 0.0
        %3289 = vadd.xlane.f32.xlu0 %v3288
        %v3290 = vpop.xlane.xlu0 %3289
        %v3291 = vmul.f32 %v3290, %v673
        %v3292 = vadd.f32 %v3291, 1e-12
        %v3293 = vrsqrt.pop %v3292
        %v3294 = vmul.f32 %v3286, %v3293
        %v3296 = vlaneseq
        %v3297 = vshrl.u32 %v3296, 7
        %v3298 = vsub.s32 0, %v3297
        %v3299 = vrot.slane %v3279, %v3298
        %v3301 = vmul.f32 %v3294, %v3299
        %v3303 = vlaneseq
        %v3304 = vshrl.u32 %v3303, 7
        %v3305 = vsub.s32 0, %v3304
        %v3306 = vrot.slane %v3281, %v3305
        %v3308 = vadd.f32 %v3301, %v3306
        %v3309 = vld [vmem:[#allocation10] sm:$0xff]
        %v3310 = vld [vmem:[#allocation10 + $0x8] sm:$0xff]
        %v3311 = vld [vmem:[#allocation10 + $0x10] sm:$0xff]
        %v3312 = vld [vmem:[#allocation10 + $0x18] sm:$0xff]
        %v3313 = vld [vmem:[%s17] sm:$0x1]
        %v3315 = vsel %vm669, %v3308, 0
        %3317 = vmatprep.subr.mxu0 0.0
        %3318 = vmatpush1.msra.mxu0 0.0
        %3319 = vmatprep.subr.mxu0 0.0
        %3320 = vmatpush1.msra.mxu0 0.0
        %3321 = vmatprep.subr.mxu0 0.0
        %3322 = vmatpush1.msra.mxu0 0.0
        %3323 = vmatprep.subr.mxu0 0.0
        %3324 = vmatpush1.msra.mxu0 0.0
        %3325 = vmatprep.subr.mxu0 0.0
        %3326 = vmatpush1.msra.mxu0 0.0
        %3327 = vmatprep.subr.mxu0 0.0
        %3328 = vmatpush1.msra.mxu0 0.0
        %3329 = vmatprep.subr.mxu0 0.0
        %3330 = vmatpush1.msra.mxu0 0.0
        %3331 = vmatprep.subr.mxu0 0.0
        %3332 = vmatpush1.msra.mxu0 0.0
        %3333 = vmatprep.subr.mxu0 0.0
        %3334 = vmatpush1.msra.mxu0 0.0
        %3335 = vmatprep.subr.mxu0 0.0
        %3336 = vmatpush1.msra.mxu0 0.0
        %3337 = vmatprep.subr.mxu0 0.0
        %3338 = vmatpush1.msra.mxu0 0.0
        %3339 = vmatprep.subr.mxu0 0.0
        %3340 = vmatpush1.msra.mxu0 0.0
        %3341 = vmatprep.subr.mxu0 0.0
        %3342 = vmatpush1.msra.mxu0 %v3312
        %3343 = vmatprep.subr.mxu0 0.0
        %3344 = vmatpush1.msra.mxu0 %v3311
        %3345 = vmatprep.subr.mxu0 0.0
        %3346 = vmatpush1.msra.mxu0 %v3310
        %3347 = vmatprep.subr.mxu0 0.0
        %3348 = vmatpush1.msra.mxu0 %v3309
        %3349 = vmatprep.subr.mxu0 0.0
        %3350 = vmatpush2.msra.mxu0 0.0
        %3351 = vmatprep.subr.mxu0 0.0
        %3352 = vmatpush2.msra.mxu0 0.0
        %3353 = vmatprep.subr.mxu0 0.0
        %3354 = vmatpush2.msra.mxu0 0.0
        %3355 = vmatprep.subr.mxu0 0.0
        %3356 = vmatpush2.msra.mxu0 0.0
        %3357 = vmatprep.subr.mxu0 0.0
        %3358 = vmatpush2.msra.mxu0 0.0
        %3359 = vmatprep.subr.mxu0 0.0
        %3360 = vmatpush2.msra.mxu0 0.0
        %3361 = vmatprep.subr.mxu0 0.0
        %3362 = vmatpush2.msra.mxu0 0.0
        %3363 = vmatprep.subr.mxu0 0.0
        %3364 = vmatpush2.msra.mxu0 0.0
        %3365 = vmatprep.subr.mxu0 0.0
        %3366 = vmatpush2.msra.mxu0 0.0
        %3367 = vmatprep.subr.mxu0 0.0
        %3368 = vmatpush2.msra.mxu0 0.0
        %3369 = vmatprep.subr.mxu0 0.0
        %3370 = vmatpush2.msra.mxu0 0.0
        %3371 = vmatprep.subr.mxu0 0.0
        %3372 = vmatpush2.msra.mxu0 0.0
        %3373 = vmatprep.subr.mxu0 0.0
        %3374 = vmatpush2.msra.mxu0 0.0
        %3375 = vmatprep.subr.mxu0 0.0
        %3376 = vmatpush2.msra.mxu0 0.0
        %3377 = vmatprep.subr.mxu0 0.0
        %3378 = vmatpush2.msra.mxu0 0.0
        %3379 = vmatprep.subr.mxu0 0.0
        %3380 = vmatpush2.msra.mxu0 0.0
        %3381 = vmatprep.mubr.f32.mxu0 0.0
        %3382 = vmatmul.mubr.f32.gmra.mxu0 %v3315
        %v3383 = vpop.f32.mrf.mxu0
        %v3384 = vadd.f32 %v3313, %v3383
        %v3385 = vpop.f32.mrf.mxu0
        %3386 = vdwg.mxu0
        %vm3387 = vcmask 253952
        %3388 = vst.msk [vmem:[%s665] sm:$0x1] %vm3387, %v3384
        %s3389 = sand.u32 %s435, 1
        %s3390 = scalar_lea.sflag [#allocation4], %s3389
        %s3391 = sand.u32 %s435, 1
        %s3392 = scalar_lea.vmem [#allocation11], %s3391
        // Predicated region
        $region113: #{tpu_custom_call.1} parent=91 // pred_check
          %p3393 = pneg %p445
        $region114: #{tpu_custom_call.1} parent=91 // pred_check_branch
          %3395 = sbr.rel (%p3393) target = $region116
        $region115: #{tpu_custom_call.1} parent=91 // pred_region
          %s3397 = ssub.s32 16, 16
          %3398 = vsyncadd %s3390, %s3397
          %s3399 = smul.addr %s39, 16
          %s3400 = scalar_lea.hbm %s18, %s3399
          %s3402 = sshll.u32 %s3392, 4
          %s3403 = int_to_ptr.vmem [resolvable:$true] %s3402
          %3405 = dma.vmem_to_hbm [thread:$0]  %s3403, 16, %s3400, %s3390
        $region116: #{tpu_custom_call.1} parent=91 // pred_fallthru
          _
      $region92: #{tpu_custom_call.1} parent=5 // pred_fallthru
        _
      %p3406 = scmp.le.s32.totalorder 2, %s34
      // Predicated region
      $region117: #{tpu_custom_call.1} parent=5 // pred_check
        %p3407 = pneg %p3406
      $region118: #{tpu_custom_call.1} parent=5 // pred_check_branch
        %3409 = sbr.rel (%p3407) target = $region120
      $region119: #{tpu_custom_call.1} parent=5 // pred_region
        %s3410 = ssub.s32 %s34, 2
        // Predicated region
        $region121: #{tpu_custom_call.1} parent=119 // pred_check
          %p3411 = pneg %p451
        $region122: #{tpu_custom_call.1} parent=119 // pred_check_branch
          %3413 = sbr.rel (%p3411) target = $region124
        $region123: #{tpu_custom_call.1} parent=119 // pred_region
          %s3414 = sand.u32 %s436, 1
          %s3415 = scalar_lea.sflag [#allocation4], %s3414
          %s3416 = sand.u32 %s436, 1
          %s3417 = scalar_lea.vmem [#allocation11], %s3416
          %3418 = dma.done %s3415, 16
        $region124: #{tpu_custom_call.1} parent=119 // pred_fallthru
          _
      $region120: #{tpu_custom_call.1} parent=5 // pred_fallthru
        _
    $region6: #{tpu_custom_call.1} parent=1 // loop_footer
      %s38 = sadd.s32 1, %s34
    $region7: #{tpu_custom_call.1} parent=1 // loop_footer_branch
      %33 = sbr.rel target = $region3
    $region8: #{tpu_custom_call.1} parent=1 // loop_exit
      _
    %3419 = vsyncpa [#allocation3], 1
    %s3420 = scalar_lea.sflag [#allocation3], 1
    %3421 = vsyncpa %s3420, 1
    %3422 = vsyncpa [#allocation6], 1
    %s3423 = scalar_lea.sflag [#allocation6], 1
    %3424 = vsyncpa %s3423, 1
    %3425 = vsyncpa [#allocation9], 1
    %3426 = vsyncpa [#allocation4], 1
    %s3427 = scalar_lea.sflag [#allocation4], 1
    %3428 = vsyncpa %s3427, 1

</llo_original>
